<compile_context>
chip_gen: v6e
topology: v6e:2x2x1
jax: 0.10.0
libtpu: 0.0.40
codegen_flags: <defaults>
</compile_context>

<pallas_src>
import functools
import numpy as np
import jax
import jax.numpy as jnp
from jax.experimental import pallas as pl
from jax.experimental.pallas import tpu as pltpu

BN_EPS = 1e-4
GIN_EPS = 3.0                       # eps = 10 - 7 in the PyTorch module


def _round_up(a, b):
    return (a + b - 1) // b * b


def _vmem_budget_bytes():
    """Per-generation scoped-VMEM budget (~75% of physical: ~96 MiB v5e/v6e, ~48 MiB v7x)."""
    cap = 128 * 1024 * 1024
    try:
        info = pltpu.get_tpu_info()
        cap = int(getattr(info, "vmem_capacity_bytes", None)
                  or getattr(info, "vmem_size_bytes", None) or cap)
    except Exception:
        pass
    cap = max(16 * 1024 * 1024, min(cap, 128 * 1024 * 1024))
    return int(cap * 3 // 4)


# ---------------- in-kernel building blocks -----------------------------------

def _masked_bn(x, keep, gamma, beta):
    # BatchNorm1d (training-mode, biased variance) over the currently-kept rows only.
    cnt = jnp.sum(keep, axis=0, keepdims=True)                  # (1, 1)
    inv = pl.reciprocal(cnt, approx=False)
    mean = jnp.sum(x * keep, axis=0, keepdims=True) * inv
    d = x - mean
    var = jnp.sum(d * d * keep, axis=0, keepdims=True) * inv
    return (d * jax.lax.rsqrt(var + BN_EPS) * gamma + beta) * keep


def _gin_block(y, adj_bf16, wcat, bcat, keep):
    # GINConv + folded SAG projections:
    #   big = ((1+eps)*y + A@y) @ [gw | gw@wrel | gw@wroot] + bias  ->  (h, rel, root)
    # y is fed to the MXU in bf16; accumulation stays f32.
    agg = jnp.dot(adj_bf16, y.astype(jnp.bfloat16), preferred_element_type=jnp.float32)
    z = ((1.0 + GIN_EPS) * y + agg).astype(jnp.bfloat16)
    big = jnp.dot(z, wcat, preferred_element_type=jnp.float32) + bcat
    big = big * keep                       # zero removed / padded dst rows
    c = big.shape[1] - 2
    return big[:, :c], big[:, c:c + 1], big[:, c + 1:c + 2]


# ---------------- whole-resident fused kernels (A read once per layer) ---------

def _first_resident_kernel(x_ref, keep_ref, adj_ref, ew_ref, eb_ref, wcat_ref, bcat_ref,
                           h_ref, s_ref):
    adj = adj_ref[...].astype(jnp.bfloat16)          # int8 -> bf16, only cast of A
    y = jnp.dot(x_ref[...], ew_ref[...], preferred_element_type=jnp.float32) + eb_ref[...]
    h, rel, root = _gin_block(y, adj, wcat_ref[...], bcat_ref[...], keep_ref[...])
    h_ref[...] = h
    s_ref[...] = jnp.tanh(
        jnp.dot(adj, rel.astype(jnp.bfloat16), preferred_element_type=jnp.float32) + root)


def _mid_resident_kernel(h_ref, s_ref, keep_ref, adj_ref, g_ref, b_ref, wcat_ref, bcat_ref,
                         h_out_ref, s_out_ref):
    keep = keep_ref[...]
    adj = adj_ref[...].astype(jnp.bfloat16)
    x = _masked_bn(h_ref[...] * s_ref[...] * keep, keep, g_ref[...], b_ref[...])
    h, rel, root = _gin_block(x, adj, wcat_ref[...], bcat_ref[...], keep)
    h_out_ref[...] = h
    s_out_ref[...] = jnp.tanh(
        jnp.dot(adj, rel.astype(jnp.bfloat16), preferred_element_type=jnp.float32) + root)


def _final_resident_kernel(h_ref, s_ref, keep_ref, adj_ref, g_ref, b_ref, wg_ref, bg_ref,
                           x_ref, gs_ref):
    keep = keep_ref[...]
    adj = adj_ref[...].astype(jnp.bfloat16)
    x = _masked_bn(h_ref[...] * s_ref[...] * keep, keep, g_ref[...], b_ref[...])
    proj = jnp.dot(x.astype(jnp.bfloat16), wg_ref[...],
                   preferred_element_type=jnp.float32) + bg_ref[...]
    x_ref[...] = x
    gs_ref[...] = jnp.tanh(
        jnp.dot(adj, proj[:, 0:1].astype(jnp.bfloat16),
                preferred_element_type=jnp.float32) + proj[:, 1:2])


def _head_kernel(z_ref, g_ref, b_ref, w_ref, bias_ref, o_ref):
    # final BatchNorm1d (training stats over the graph rows) + fused to_mu/to_logvar.
    z = z_ref[...]
    mean = jnp.mean(z, axis=0, keepdims=True)
    d = z - mean
    var = jnp.mean(d * d, axis=0, keepdims=True)
    zn = d * jax.lax.rsqrt(var + BN_EPS) * g_ref[...] + b_ref[...]
    o_ref[...] = jnp.dot(zn, w_ref[...], preferred_element_type=jnp.float32) + bias_ref[...]


# ---------------- row-tiled kernels (A streamed as (tm, N) int8 tiles) ---------

def _gin_tiled_kernel(adj_ref, x_ref, keep_ref, wcat_ref, bcat_ref, big_ref):
    tm = adj_ref.shape[0]
    r0 = pl.multiple_of(pl.program_id(0) * tm, tm)
    adj = adj_ref[...].astype(jnp.bfloat16)                     # streamed int8 tile -> bf16
    agg = jnp.dot(adj, x_ref[...], preferred_element_type=jnp.float32)
    y_t = x_ref[pl.ds(r0, tm), :].astype(jnp.float32)
    z = ((1.0 + GIN_EPS) * y_t + agg).astype(jnp.bfloat16)
    big = jnp.dot(z, wcat_ref[...], preferred_element_type=jnp.float32) + bcat_ref[...]
    big_ref[...] = big * keep_ref[pl.ds(r0, tm), :]


def _score_tiled_kernel(adj_ref, rel_ref, root_ref, s_ref):
    adj = adj_ref[...].astype(jnp.bfloat16)
    s = jnp.dot(adj, rel_ref[...], preferred_element_type=jnp.float32)
    s_ref[...] = jnp.tanh(s + root_ref[...])


# ---------------- pallas_call wrappers ------------------------------------------

def _resident_call(kernel, out_shapes, args, vmem_limit):
    return pl.pallas_call(
        kernel,
        out_shape=tuple(jax.ShapeDtypeStruct(s, jnp.float32) for s in out_shapes),
        in_specs=[pl.BlockSpec(memory_space=pltpu.MemorySpace.VMEM) for _ in args],
        out_specs=tuple(pl.BlockSpec(memory_space=pltpu.MemorySpace.VMEM)
                        for _ in out_shapes),
        compiler_params=pltpu.CompilerParams(vmem_limit_bytes=vmem_limit),
    )(*args)


def _gin_tiled_call(adj, x_bf16, keep_f, wcat, bcat, tm, vmem_limit):
    n = adj.shape[0]
    cin = x_bf16.shape[1]
    cw = wcat.shape[1]
    return pl.pallas_call(
        _gin_tiled_kernel,
        out_shape=jax.ShapeDtypeStruct((n, cw), jnp.float32),
        grid=(n // tm,),
        in_specs=[
            pl.BlockSpec((tm, n), lambda i: (i, 0)),     # A dst-row tile, int8, streamed
            pl.BlockSpec((n, cin), lambda i: (0, 0)),    # x resident (fetched once)
            pl.BlockSpec((n, 1), lambda i: (0, 0)),      # keep mask resident
            pl.BlockSpec((cin, cw), lambda i: (0, 0)),   # folded GIN+SAG weights resident
            pl.BlockSpec((1, cw), lambda i: (0, 0)),
        ],
        out_specs=pl.BlockSpec((tm, cw), lambda i: (i, 0)),
        compiler_params=pltpu.CompilerParams(
            dimension_semantics=("parallel",), vmem_limit_bytes=vmem_limit),
    )(adj, x_bf16, keep_f, wcat, bcat)


def _score_tiled_call(adj, rel_bf16, root, tm, vmem_limit):
    n = adj.shape[0]
    return pl.pallas_call(
        _score_tiled_kernel,
        out_shape=jax.ShapeDtypeStruct((n, 1), jnp.float32),
        grid=(n // tm,),
        in_specs=[
            pl.BlockSpec((tm, n), lambda i: (i, 0)),
            pl.BlockSpec((n, 1), lambda i: (0, 0)),
            pl.BlockSpec((tm, 1), lambda i: (i, 0)),
        ],
        out_specs=pl.BlockSpec((tm, 1), lambda i: (i, 0)),
        compiler_params=pltpu.CompilerParams(
            dimension_semantics=("parallel",), vmem_limit_bytes=vmem_limit),
    )(adj, rel_bf16, root)


# ---------------- host-side weight folding ---------------------------------------

def _fold_gin_sag(gw, gb, wrel, wroot, brel):
    # Fold the SAG GraphConv projections into the GIN Linear: two extra lanes ride in
    # the same MXU pass.  lin_rel bias is folded into the root column.
    wcat = jnp.concatenate([gw, gw @ wrel, gw @ wroot], axis=1)
    bcat = jnp.concatenate([gb, gb @ wrel, gb @ wroot + brel], axis=1)
    return wcat.astype(jnp.bfloat16), bcat.astype(jnp.float32)


def _fold_global_sag(wrel, wroot, brel):
    wg = jnp.concatenate([wrel, wroot], axis=1).astype(jnp.bfloat16)
    bg = jnp.concatenate([jnp.zeros_like(brel), brel], axis=1).astype(jnp.float32)
    return wg, bg


# ---------------- JAX glue: data-dependent per-graph selection -------------------

def _sag_topk_keep(score, active, batch, ratio, num_graphs):
    # TODO(synk): dynamic per-graph top-k has no clean Pallas equivalent; done here
    # as an O(N log N) single-key argsort between the fused kernels.
    n = score.shape[0]
    act_i = active.astype(jnp.int32)
    n_active = jnp.zeros((num_graphs,), jnp.int32).at[batch].add(act_i)
    k = jnp.ceil(jnp.float32(ratio) * n_active.astype(jnp.float32)).astype(jnp.int32)
    n_total = jnp.zeros((num_graphs,), jnp.int32).at[batch].add(1)
    start = jnp.cumsum(n_total) - n_total
    # single packed key: graph-id major, descending score minor (tanh score in (-1,1));
    # inactive / padding rows are pushed to the end of their graph's block.
    key = batch.astype(jnp.float32) * 4.0 + jnp.where(active, 1.0 - score, 3.0)
    order = jnp.argsort(key)
    rank_sorted = jnp.arange(n, dtype=jnp.int32) - start[batch[order]]
    rank = jnp.zeros((n,), jnp.int32).at[order].set(rank_sorted)
    return active & (rank < k[batch])


def _gate_bn_xla(h, score, keep_f, gamma, beta):
    # SAGPooling gate + masked BatchNorm as an XLA pre-pass for the tiled regime
    # (pure elementwise + one masked reduction -> no cross-tile reduction in Pallas).
    xg = h * score * keep_f
    cnt = jnp.sum(keep_f)
    mean = jnp.sum(xg, axis=0, keepdims=True) / cnt
    d = xg - mean
    var = jnp.sum(d * d * keep_f, axis=0, keepdims=True) / cnt
    return (d * jax.lax.rsqrt(var + BN_EPS) * gamma + beta) * keep_f


# ---------------- Parameters ------------------------------------------------------

def init_params(key, in_channels, hidden_channels, gnn_layers, latent_size, num_layers):
    gnn_dim_add = (latent_size - hidden_channels) // gnn_layers
    gnn_channels = ([hidden_channels]
                    + [hidden_channels + i * gnn_dim_add for i in range(1, num_layers)]
                    + [latent_size])
    keys = iter(jax.random.split(key, 4 * num_layers + 8))

    def lin(k, fan_in, fan_out):
        k1, k2 = jax.random.split(k)
        bound = 1.0 / np.sqrt(fan_in)
        w = jax.random.uniform(k1, (fan_in, fan_out), jnp.float32, -bound, bound)
        b = jax.random.uniform(k2, (1, fan_out), jnp.float32, -bound, bound)
        return w, b

    params = {}
    params["enc0_w"], params["enc0_b"] = lin(next(keys), in_channels, hidden_channels)
    params["gin"], params["sag"], params["norm"] = [], [], []
    for cin, cout in zip(gnn_channels[:-1], gnn_channels[1:]):
        params["gin"].append(lin(next(keys), cin, cout))
        wrel, brel = lin(next(keys), cout, 1)
        wroot, _ = lin(next(keys), cout, 1)            # lin_root has no bias
        params["sag"].append((wrel, wroot, brel))
        params["norm"].append((jnp.ones((1, cout), jnp.float32),
                               jnp.zeros((1, cout), jnp.float32)))
    wrel, brel = lin(next(keys), latent_size, 1)
    wroot, _ = lin(next(keys), latent_size, 1)
    params["global_sag"] = (wrel, wroot, brel)
    params["bn"] = (jnp.ones((1, latent_size), jnp.float32),
                    jnp.zeros((1, latent_size), jnp.float32))
    mu_w, mu_b = lin(next(keys), latent_size, latent_size)
    lv_w, lv_b = lin(next(keys), latent_size, latent_size)
    # to_mu / to_logvar fused into a single Linear with concatenated outputs
    params["head_w"] = jnp.concatenate([mu_w, lv_w], axis=1)
    params["head_b"] = jnp.concatenate([mu_b, lv_b], axis=1)
    return params, gnn_channels


# ---------------- Forward -----------------------------------------------------------

def graph_encoder_forward(params, x, edge_index, batch, ptr, *, num_layers, num_graphs,
                          force_path=None, tile_m=512):
    del ptr                                    # delta_ptr is unused by the PyTorch forward()
    pool_ratio = 1.0 - 1.0 / num_layers
    n_real = x.shape[0]
    budget = _vmem_budget_bytes()
    gins, sags, norms = params["gin"], params["sag"], params["norm"]
    L = len(gins)
    cmax = max(w.shape[1] for w, _ in gins) + 2

    # ---- pick the execution regime from the per-generation VMEM budget -------------
    if force_path == "resident":
        use_tiled = False
    elif force_path == "tiled":
        use_tiled = True
    else:
        n8 = _round_up(n_real, 8)
        resident_bytes = 3 * n8 * n8 + 10 * n8 * cmax * 4 + (2 << 20)
        use_tiled = resident_bytes > int(0.7 * budget)

    if use_tiled:
        tm = _round_up(max(32, min(tile_m, _round_up(n_real, 32))), 32)
        n = _round_up(n_real, tm)
    else:
        tm = 0
        n = _round_up(n_real, 8)

    pad = n - n_real
    xf = jnp.pad(x.astype(jnp.float32), ((0, pad), (0, 0)))
    batch_p = jnp.pad(batch.astype(jnp.int32), (0, pad))   # pads live in graph 0, never active
    active0 = jnp.arange(n) < n_real

    # Dense adjacency A[dst, src]: int32 scatter-add, stored as int8 (exact for edge
    # multiplicity <= 127).  It is NEVER re-masked -- removed nodes are handled by
    # zeroing their feature rows, so stale entries contribute exactly 0.
    adj = jnp.zeros((n, n), jnp.int32).at[edge_index[1], edge_index[0]].add(1)
    adj = adj.astype(jnp.int8)

    enc_w = params["enc0_w"].astype(jnp.bfloat16)
    enc_b = params["enc0_b"]
    keep = active0

    if not use_tiled:
        # ------------------ whole-resident regime: A read ONCE per layer -------------
        wcat, bcat = _fold_gin_sag(*gins[0], *sags[0])
        h, score = _resident_call(
            _first_resident_kernel,
            [(n, gins[0][0].shape[1]), (n, 1)],
            [xf.astype(jnp.bfloat16), active0.astype(jnp.float32)[:, None], adj,
             enc_w, enc_b, wcat, bcat], budget)
        keep = _sag_topk_keep(score[:, 0], keep, batch_p, pool_ratio, num_graphs)
        for li in range(1, L):
            wcat, bcat = _fold_gin_sag(*gins[li], *sags[li])
            gamma, beta = norms[li - 1]
            h, score = _resident_call(
                _mid_resident_kernel,
                [(n, gins[li][0].shape[1]), (n, 1)],
                [h, score, keep.astype(jnp.float32)[:, None], adj, gamma, beta,
                 wcat, bcat], budget)
            keep = _sag_topk_keep(score[:, 0], keep, batch_p, pool_ratio, num_graphs)
        gamma, beta = norms[L - 1]
        wg, bg = _fold_global_sag(*params["global_sag"])
        x_out, gscore = _resident_call(
            _final_resident_kernel,
            [(n, h.shape[1]), (n, 1)],
            [h, score, keep.astype(jnp.float32)[:, None], adj, gamma, beta, wg, bg],
            budget)
    else:
        # --------------- row-tiled regime: A streamed as (tm, N) int8 tiles ----------
        # enc0 / gate+masked-BN stay in XLA glue (tiny dense + memory-bound elementwise),
        # so the A-streaming Pallas kernels carry no cross-tile reduction.
        y = jnp.dot(xf.astype(jnp.bfloat16), enc_w,
                    preferred_element_type=jnp.float32) + enc_b
        x_in, h, score = y, None, None
        for li in range(L):
            if li > 0:
                gamma, beta = norms[li - 1]
                x_in = _gate_bn_xla(h, score, keep.astype(jnp.float32)[:, None],
                                    gamma, beta)
            wcat, bcat = _fold_gin_sag(*gins[li], *sags[li])
            big = _gin_tiled_call(adj, x_in.astype(jnp.bfloat16),
                                  keep.astype(jnp.float32)[:, None], wcat, bcat,
                                  tm, budget)
            c = gins[li][0].shape[1]
            h = big[:, :c]
            score = _score_tiled_call(adj, big[:, c:c + 1].astype(jnp.bfloat16),
                                      big[:, c + 1:c + 2], tm, budget)
            keep = _sag_topk_keep(score[:, 0], keep, batch_p, pool_ratio, num_graphs)
        gamma, beta = norms[L - 1]
        x_out = _gate_bn_xla(h, score, keep.astype(jnp.float32)[:, None], gamma, beta)
        wg, bg = _fold_global_sag(*params["global_sag"])
        proj = jnp.dot(x_out.astype(jnp.bfloat16), wg,
                       preferred_element_type=jnp.float32) + bg
        gscore = _score_tiled_call(adj, proj[:, 0:1].astype(jnp.bfloat16),
                                   proj[:, 1:2], tm, budget)

    # ---- global SAGPooling (ratio = 1, int): keep the single best node per graph ----
    s = jnp.where(keep, gscore[:, 0], -jnp.inf)
    per_graph = jnp.where(batch_p[None, :] == jnp.arange(num_graphs)[:, None],
                          s[None, :], -jnp.inf)                        # (G, N)
    top_idx = jnp.argmax(per_graph, axis=1)                             # (G,)
    prev_z = x_out[top_idx] * gscore[top_idx]

    # ---- final BatchNorm (training-mode stats over the graph rows) + fused head -----
    bn_g, bn_b = params["bn"]
    out, = _resident_call(_head_kernel, [(num_graphs, params["head_w"].shape[1])],
                          [prev_z, bn_g, bn_b, params["head_w"], params["head_b"]],
                          budget)
    latent = params["head_w"].shape[1] // 2
    return out[:, :latent], out[:, latent:]


# ---------------- Demo ---------------------------------------------------------------

if __name__ == "__main__":
    in_channels = 4
    hidden_channels = 8
    gnn_layers = 2
    latent_size = 32
    num_layers = 3

    key = jax.random.PRNGKey(0)
    kp, kx = jax.random.split(key)
    params, gnn_channels = init_params(kp, in_channels, hidden_channels,
                                       gnn_layers, latent_size, num_layers)

    # two graphs: 40 + 24 = 64 nodes; undirected chains plus a closing edge (cycles)
    nodes_per_graph = [40, 24]
    n_total = sum(nodes_per_graph)
    ptr_np = np.cumsum([0] + nodes_per_graph)
    batch_np = np.concatenate([np.full(m, g, dtype=np.int32)
                               for g, m in enumerate(nodes_per_graph)])
    src, dst = [], []
    for g, m in enumerate(nodes_per_graph):
        off = int(ptr_np[g])
        for i in range(m - 1):
            src += [off + i, off + i + 1]
            dst += [off + i + 1, off + i]
        src += [off, off + m - 1]
        dst += [off + m - 1, off]
    edge_np = np.stack([src, dst]).astype(np.int32)
    # int8 adjacency is exact only up to edge multiplicity 127 -- verify on the host.
    _, counts = np.unique(edge_np[0].astype(np.int64) * n_total + edge_np[1],
                          return_counts=True)
    assert counts.max() <= 127
    edge_index = jnp.asarray(edge_np)
    batch = jnp.asarray(batch_np)
    ptr = jnp.asarray(ptr_np, jnp.int32)
    x = jax.random.normal(kx, (n_total, in_channels), jnp.float32)

    common = dict(num_layers=num_layers, num_graphs=len(nodes_per_graph))
    fwd_resident = jax.jit(functools.partial(graph_encoder_forward,
                                             force_path="resident", **common))
    fwd_tiled = jax.jit(functools.partial(graph_encoder_forward,
                                          force_path="tiled", tile_m=32, **common))

    mu_r, lv_r = fwd_resident(params, x, edge_index, batch, ptr)
    mu_t, lv_t = fwd_tiled(params, x, edge_index, batch, ptr)
    jax.block_until_ready((mu_r, lv_r, mu_t, lv_t))

    G = len(nodes_per_graph)
    for m_, v_ in ((mu_r, lv_r), (mu_t, lv_t)):
        assert m_.shape == (G, latent_size) and v_.shape == (G, latent_size)
        assert bool(jnp.all(jnp.isfinite(m_))) and bool(jnp.all(jnp.isfinite(v_)))
    # both regimes implement the same math (bf16 MXU dots, f32 accumulation)
    assert bool(jnp.allclose(mu_r, mu_t, atol=2e-2, rtol=2e-2))
    assert bool(jnp.allclose(lv_r, lv_t, atol=2e-2, rtol=2e-2))
    print("KERNEL_OK")
</pallas_src>

<mosaic_0001>
module attributes {stable_mosaic.version = 11 : i64} {
  func.func private @main(%arg0: i32) attributes {dimension_semantics = [#tpu.dimension_semantics<core_parallel>], iteration_bounds = array<i64: 2>, tpu.core_type = #tpu.core_type<sc_scalar_subcore>, window_params = []} {
    return
  }
}

module attributes {stable_mosaic.version = 11 : i64} {
  func.func private @main(%arg0: i32) attributes {dimension_semantics = [#tpu.dimension_semantics<core_parallel>], iteration_bounds = array<i64: 2>, tpu.core_type = #tpu.core_type<sc_scalar_subcore>, window_params = []} {
    return
  }
}

module attributes {stable_mosaic.version = 11 : i64} {
  func.func @_first_resident_kernel(%arg0: memref<64x4xbf16, #tpu.memory_space<vmem>>, %arg1: memref<64x1xf32, #tpu.memory_space<vmem>>, %arg2: memref<64x64xi8, #tpu.memory_space<vmem>>, %arg3: memref<4x8xbf16, #tpu.memory_space<vmem>>, %arg4: memref<1x8xf32, #tpu.memory_space<vmem>>, %arg5: memref<8x22xbf16, #tpu.memory_space<vmem>>, %arg6: memref<1x22xf32, #tpu.memory_space<vmem>>, %arg7: memref<64x20xf32, #tpu.memory_space<vmem>>, %arg8: memref<64x1xf32, #tpu.memory_space<vmem>>) attributes {dimension_semantics = [], scalar_prefetch = 0 : i64, scratch_operands = 0 : i64, tpu.core_type = #tpu.core_type<tc>} {
    %c0 = arith.constant 0 : index
    %c0_0 = arith.constant 0 : index
    %0 = vector.load %arg2[%c0, %c0_0] : memref<64x64xi8, #tpu.memory_space<vmem>>, vector<64x64xi8>
    %1 = arith.sitofp %0 : vector<64x64xi8> to vector<64x64xbf16>
    %c0_1 = arith.constant 0 : index
    %c0_2 = arith.constant 0 : index
    %2 = vector.load %arg0[%c0_1, %c0_2] : memref<64x4xbf16, #tpu.memory_space<vmem>>, vector<64x4xbf16>
    %c0_3 = arith.constant 0 : index
    %c0_4 = arith.constant 0 : index
    %3 = vector.load %arg3[%c0_3, %c0_4] : memref<4x8xbf16, #tpu.memory_space<vmem>>, vector<4x8xbf16>
    %cst = arith.constant dense<0.000000e+00> : vector<64x8xf32>
    %4 = tpu.matmul %2, %3, %cst {dimension_numbers = #tpu.dot_dimension_numbers<[1], [0], [0], [1], [0, 0, 1, 1], [], []>} : vector<64x4xbf16>, vector<4x8xbf16>, vector<64x8xf32> -> vector<64x8xf32>
    %c0_5 = arith.constant 0 : index
    %c0_6 = arith.constant 0 : index
    %5 = vector.load %arg4[%c0_5, %c0_6] : memref<1x8xf32, #tpu.memory_space<vmem>>, vector<1x8xf32>
    %6 = vector.broadcast %5 : vector<1x8xf32> to vector<64x8xf32>
    %7 = arith.addf %4, %6 : vector<64x8xf32>
    %c0_7 = arith.constant 0 : index
    %c0_8 = arith.constant 0 : index
    %8 = vector.load %arg5[%c0_7, %c0_8] : memref<8x22xbf16, #tpu.memory_space<vmem>>, vector<8x22xbf16>
    %c0_9 = arith.constant 0 : index
    %c0_10 = arith.constant 0 : index
    %9 = vector.load %arg6[%c0_9, %c0_10] : memref<1x22xf32, #tpu.memory_space<vmem>>, vector<1x22xf32>
    %c0_11 = arith.constant 0 : index
    %c0_12 = arith.constant 0 : index
    %10 = vector.load %arg1[%c0_11, %c0_12] : memref<64x1xf32, #tpu.memory_space<vmem>>, vector<64x1xf32>
    %11 = arith.truncf %7 : vector<64x8xf32> to vector<64x8xbf16>
    %cst_13 = arith.constant dense<0.000000e+00> : vector<64x8xf32>
    %12 = tpu.matmul %1, %11, %cst_13 {dimension_numbers = #tpu.dot_dimension_numbers<[1], [0], [0], [1], [0, 0, 1, 1], [], []>} : vector<64x64xbf16>, vector<64x8xbf16>, vector<64x8xf32> -> vector<64x8xf32>
    %cst_14 = arith.constant 4.000000e+00 : f32
    %13 = vector.broadcast %cst_14 : f32 to vector<64x8xf32>
    %14 = arith.mulf %13, %7 : vector<64x8xf32>
    %15 = arith.addf %14, %12 : vector<64x8xf32>
    %16 = arith.truncf %15 : vector<64x8xf32> to vector<64x8xbf16>
    %cst_15 = arith.constant dense<0.000000e+00> : vector<64x22xf32>
    %17 = tpu.matmul %16, %8, %cst_15 {dimension_numbers = #tpu.dot_dimension_numbers<[1], [0], [0], [1], [0, 0, 1, 1], [], []>} : vector<64x8xbf16>, vector<8x22xbf16>, vector<64x22xf32> -> vector<64x22xf32>
    %18 = vector.broadcast %9 : vector<1x22xf32> to vector<64x22xf32>
    %19 = arith.addf %17, %18 : vector<64x22xf32>
    %20 = vector.broadcast %10 : vector<64x1xf32> to vector<64x22xf32>
    %21 = arith.mulf %19, %20 : vector<64x22xf32>
    %22 = vector.extract_strided_slice %21 {offsets = [0, 0], sizes = [64, 20], strides = [1, 1]} : vector<64x22xf32> to vector<64x20xf32>
    %23 = vector.extract_strided_slice %21 {offsets = [0, 20], sizes = [64, 1], strides = [1, 1]} : vector<64x22xf32> to vector<64x1xf32>
    %24 = vector.extract_strided_slice %21 {offsets = [0, 21], sizes = [64, 1], strides = [1, 1]} : vector<64x22xf32> to vector<64x1xf32>
    %c0_16 = arith.constant 0 : index
    %c0_17 = arith.constant 0 : index
    %25 = vector.load %arg7[%c0_16, %c0_17] : memref<64x20xf32, #tpu.memory_space<vmem>>, vector<64x20xf32>
    tpu.vector_store %arg7[%c0_16, %c0_17], %22 {strides = array<i32>} : memref<64x20xf32, #tpu.memory_space<vmem>>, vector<64x20xf32>,
    %26 = arith.truncf %23 : vector<64x1xf32> to vector<64x1xbf16>
    %cst_18 = arith.constant dense<0.000000e+00> : vector<64x1xf32>
    %27 = tpu.matmul %1, %26, %cst_18 {dimension_numbers = #tpu.dot_dimension_numbers<[1], [0], [0], [1], [0, 0, 1, 1], [], []>} : vector<64x64xbf16>, vector<64x1xbf16>, vector<64x1xf32> -> vector<64x1xf32>
    %28 = arith.addf %27, %24 : vector<64x1xf32>
    %29 = math.tanh %28 : vector<64x1xf32>
    %c0_19 = arith.constant 0 : index
    %c0_20 = arith.constant 0 : index
    %30 = vector.load %arg8[%c0_19, %c0_20] : memref<64x1xf32, #tpu.memory_space<vmem>>, vector<64x1xf32>
    tpu.vector_store %arg8[%c0_19, %c0_20], %29 {strides = array<i32>} : memref<64x1xf32, #tpu.memory_space<vmem>>, vector<64x1xf32>,
    return
  }
}

module attributes {stable_mosaic.version = 11 : i64} {
  func.func @_mid_resident_kernel(%arg0: memref<64x20xf32, #tpu.memory_space<vmem>>, %arg1: memref<64x1xf32, #tpu.memory_space<vmem>>, %arg2: memref<64x1xf32, #tpu.memory_space<vmem>>, %arg3: memref<64x64xi8, #tpu.memory_space<vmem>>, %arg4: memref<1x20xf32, #tpu.memory_space<vmem>>, %arg5: memref<1x20xf32, #tpu.memory_space<vmem>>, %arg6: memref<20x34xbf16, #tpu.memory_space<vmem>>, %arg7: memref<1x34xf32, #tpu.memory_space<vmem>>, %arg8: memref<64x32xf32, #tpu.memory_space<vmem>>, %arg9: memref<64x1xf32, #tpu.memory_space<vmem>>) attributes {dimension_semantics = [], scalar_prefetch = 0 : i64, scratch_operands = 0 : i64, tpu.core_type = #tpu.core_type<tc>} {
    %c0 = arith.constant 0 : index
    %c0_0 = arith.constant 0 : index
    %0 = vector.load %arg2[%c0, %c0_0] : memref<64x1xf32, #tpu.memory_space<vmem>>, vector<64x1xf32>
    %c0_1 = arith.constant 0 : index
    %c0_2 = arith.constant 0 : index
    %1 = vector.load %arg3[%c0_1, %c0_2] : memref<64x64xi8, #tpu.memory_space<vmem>>, vector<64x64xi8>
    %2 = arith.sitofp %1 : vector<64x64xi8> to vector<64x64xbf16>
    %c0_3 = arith.constant 0 : index
    %c0_4 = arith.constant 0 : index
    %3 = vector.load %arg0[%c0_3, %c0_4] : memref<64x20xf32, #tpu.memory_space<vmem>>, vector<64x20xf32>
    %c0_5 = arith.constant 0 : index
    %c0_6 = arith.constant 0 : index
    %4 = vector.load %arg1[%c0_5, %c0_6] : memref<64x1xf32, #tpu.memory_space<vmem>>, vector<64x1xf32>
    %5 = vector.broadcast %4 : vector<64x1xf32> to vector<64x20xf32>
    %6 = arith.mulf %3, %5 : vector<64x20xf32>
    %7 = vector.broadcast %0 : vector<64x1xf32> to vector<64x20xf32>
    %8 = arith.mulf %6, %7 : vector<64x20xf32>
    %c0_7 = arith.constant 0 : index
    %c0_8 = arith.constant 0 : index
    %9 = vector.load %arg4[%c0_7, %c0_8] : memref<1x20xf32, #tpu.memory_space<vmem>>, vector<1x20xf32>
    %c0_9 = arith.constant 0 : index
    %c0_10 = arith.constant 0 : index
    %10 = vector.load %arg5[%c0_9, %c0_10] : memref<1x20xf32, #tpu.memory_space<vmem>>, vector<1x20xf32>
    %cst = arith.constant dense<0.000000e+00> : vector<1xf32>
    %11 = vector.multi_reduction <add>, %0, %cst [0] : vector<64x1xf32> to vector<1xf32>
    %12 = vector.shape_cast %11 : vector<1xf32> to vector<1x1xf32>
    %13 = tpu.reciprocal %12 : vector<1x1xf32> -> vector<1x1xf32>
    %14 = vector.broadcast %0 : vector<64x1xf32> to vector<64x20xf32>
    %15 = arith.mulf %8, %14 : vector<64x20xf32>
    %cst_11 = arith.constant dense<0.000000e+00> : vector<20xf32>
    %16 = vector.multi_reduction <add>, %15, %cst_11 [0] : vector<64x20xf32> to vector<20xf32>
    %17 = vector.shape_cast %16 : vector<20xf32> to vector<1x20xf32>
    %18 = vector.broadcast %13 : vector<1x1xf32> to vector<1x20xf32>
    %19 = arith.mulf %17, %18 : vector<1x20xf32>
    %20 = vector.broadcast %19 : vector<1x20xf32> to vector<64x20xf32>
    %21 = arith.subf %8, %20 : vector<64x20xf32>
    %22 = arith.mulf %21, %21 : vector<64x20xf32>
    %23 = vector.broadcast %0 : vector<64x1xf32> to vector<64x20xf32>
    %24 = arith.mulf %22, %23 : vector<64x20xf32>
    %cst_12 = arith.constant dense<0.000000e+00> : vector<20xf32>
    %25 = vector.multi_reduction <add>, %24, %cst_12 [0] : vector<64x20xf32> to vector<20xf32>
    %26 = vector.shape_cast %25 : vector<20xf32> to vector<1x20xf32>
    %27 = vector.broadcast %13 : vector<1x1xf32> to vector<1x20xf32>
    %28 = arith.mulf %26, %27 : vector<1x20xf32>
    %cst_13 = arith.constant 9.99999974E-5 : f32
    %29 = vector.broadcast %cst_13 : f32 to vector<1x20xf32>
    %30 = arith.addf %28, %29 : vector<1x20xf32>
    %31 = math.rsqrt %30 : vector<1x20xf32>
    %32 = vector.broadcast %31 : vector<1x20xf32> to vector<64x20xf32>
    %33 = arith.mulf %21, %32 : vector<64x20xf32>
    %34 = vector.broadcast %9 : vector<1x20xf32> to vector<64x20xf32>
    %35 = arith.mulf %33, %34 : vector<64x20xf32>
    %36 = vector.broadcast %10 : vector<1x20xf32> to vector<64x20xf32>
    %37 = arith.addf %35, %36 : vector<64x20xf32>
    %38 = vector.broadcast %0 : vector<64x1xf32> to vector<64x20xf32>
    %39 = arith.mulf %37, %38 : vector<64x20xf32>
    %c0_14 = arith.constant 0 : index
    %c0_15 = arith.constant 0 : index
    %40 = vector.load %arg6[%c0_14, %c0_15] : memref<20x34xbf16, #tpu.memory_space<vmem>>, vector<20x34xbf16>
    %c0_16 = arith.constant 0 : index
    %c0_17 = arith.constant 0 : index
    %41 = vector.load %arg7[%c0_16, %c0_17] : memref<1x34xf32, #tpu.memory_space<vmem>>, vector<1x34xf32>
    %42 = arith.truncf %39 : vector<64x20xf32> to vector<64x20xbf16>
    %cst_18 = arith.constant dense<0.000000e+00> : vector<64x20xf32>
    %43 = tpu.matmul %2, %42, %cst_18 {dimension_numbers = #tpu.dot_dimension_numbers<[1], [0], [0], [1], [0, 0, 1, 1], [], []>} : vector<64x64xbf16>, vector<64x20xbf16>, vector<64x20xf32> -> vector<64x20xf32>
    %cst_19 = arith.constant 4.000000e+00 : f32
    %44 = vector.broadcast %cst_19 : f32 to vector<64x20xf32>
    %45 = arith.mulf %44, %39 : vector<64x20xf32>
    %46 = arith.addf %45, %43 : vector<64x20xf32>
    %47 = arith.truncf %46 : vector<64x20xf32> to vector<64x20xbf16>
    %cst_20 = arith.constant dense<0.000000e+00> : vector<64x34xf32>
    %48 = tpu.matmul %47, %40, %cst_20 {dimension_numbers = #tpu.dot_dimension_numbers<[1], [0], [0], [1], [0, 0, 1, 1], [], []>} : vector<64x20xbf16>, vector<20x34xbf16>, vector<64x34xf32> -> vector<64x34xf32>
    %49 = vector.broadcast %41 : vector<1x34xf32> to vector<64x34xf32>
    %50 = arith.addf %48, %49 : vector<64x34xf32>
    %51 = vector.broadcast %0 : vector<64x1xf32> to vector<64x34xf32>
    %52 = arith.mulf %50, %51 : vector<64x34xf32>
    %53 = vector.extract_strided_slice %52 {offsets = [0, 0], sizes = [64, 32], strides = [1, 1]} : vector<64x34xf32> to vector<64x32xf32>
    %54 = vector.extract_strided_slice %52 {offsets = [0, 32], sizes = [64, 1], strides = [1, 1]} : vector<64x34xf32> to vector<64x1xf32>
    %55 = vector.extract_strided_slice %52 {offsets = [0, 33], sizes = [64, 1], strides = [1, 1]} : vector<64x34xf32> to vector<64x1xf32>
    %c0_21 = arith.constant 0 : index
    %c0_22 = arith.constant 0 : index
    %56 = vector.load %arg8[%c0_21, %c0_22] : memref<64x32xf32, #tpu.memory_space<vmem>>, vector<64x32xf32>
    tpu.vector_store %arg8[%c0_21, %c0_22], %53 {strides = array<i32>} : memref<64x32xf32, #tpu.memory_space<vmem>>, vector<64x32xf32>,
    %57 = arith.truncf %54 : vector<64x1xf32> to vector<64x1xbf16>
    %cst_23 = arith.constant dense<0.000000e+00> : vector<64x1xf32>
    %58 = tpu.matmul %2, %57, %cst_23 {dimension_numbers = #tpu.dot_dimension_numbers<[1], [0], [0], [1], [0, 0, 1, 1], [], []>} : vector<64x64xbf16>, vector<64x1xbf16>, vector<64x1xf32> -> vector<64x1xf32>
    %59 = arith.addf %58, %55 : vector<64x1xf32>
    %60 = math.tanh %59 : vector<64x1xf32>
    %c0_24 = arith.constant 0 : index
    %c0_25 = arith.constant 0 : index
    %61 = vector.load %arg9[%c0_24, %c0_25] : memref<64x1xf32, #tpu.memory_space<vmem>>, vector<64x1xf32>
    tpu.vector_store %arg9[%c0_24, %c0_25], %60 {strides = array<i32>} : memref<64x1xf32, #tpu.memory_space<vmem>>, vector<64x1xf32>,
    return
  }
}

module attributes {stable_mosaic.version = 11 : i64} {
  func.func @_mid_resident_kernel(%arg0: memref<64x32xf32, #tpu.memory_space<vmem>>, %arg1: memref<64x1xf32, #tpu.memory_space<vmem>>, %arg2: memref<64x1xf32, #tpu.memory_space<vmem>>, %arg3: memref<64x64xi8, #tpu.memory_space<vmem>>, %arg4: memref<1x32xf32, #tpu.memory_space<vmem>>, %arg5: memref<1x32xf32, #tpu.memory_space<vmem>>, %arg6: memref<32x34xbf16, #tpu.memory_space<vmem>>, %arg7: memref<1x34xf32, #tpu.memory_space<vmem>>, %arg8: memref<64x32xf32, #tpu.memory_space<vmem>>, %arg9: memref<64x1xf32, #tpu.memory_space<vmem>>) attributes {dimension_semantics = [], scalar_prefetch = 0 : i64, scratch_operands = 0 : i64, tpu.core_type = #tpu.core_type<tc>} {
    %c0 = arith.constant 0 : index
    %c0_0 = arith.constant 0 : index
    %0 = vector.load %arg2[%c0, %c0_0] : memref<64x1xf32, #tpu.memory_space<vmem>>, vector<64x1xf32>
    %c0_1 = arith.constant 0 : index
    %c0_2 = arith.constant 0 : index
    %1 = vector.load %arg3[%c0_1, %c0_2] : memref<64x64xi8, #tpu.memory_space<vmem>>, vector<64x64xi8>
    %2 = arith.sitofp %1 : vector<64x64xi8> to vector<64x64xbf16>
    %c0_3 = arith.constant 0 : index
    %c0_4 = arith.constant 0 : index
    %3 = vector.load %arg0[%c0_3, %c0_4] : memref<64x32xf32, #tpu.memory_space<vmem>>, vector<64x32xf32>
    %c0_5 = arith.constant 0 : index
    %c0_6 = arith.constant 0 : index
    %4 = vector.load %arg1[%c0_5, %c0_6] : memref<64x1xf32, #tpu.memory_space<vmem>>, vector<64x1xf32>
    %5 = vector.broadcast %4 : vector<64x1xf32> to vector<64x32xf32>
    %6 = arith.mulf %3, %5 : vector<64x32xf32>
    %7 = vector.broadcast %0 : vector<64x1xf32> to vector<64x32xf32>
    %8 = arith.mulf %6, %7 : vector<64x32xf32>
    %c0_7 = arith.constant 0 : index
    %c0_8 = arith.constant 0 : index
    %9 = vector.load %arg4[%c0_7, %c0_8] : memref<1x32xf32, #tpu.memory_space<vmem>>, vector<1x32xf32>
    %c0_9 = arith.constant 0 : index
    %c0_10 = arith.constant 0 : index
    %10 = vector.load %arg5[%c0_9, %c0_10] : memref<1x32xf32, #tpu.memory_space<vmem>>, vector<1x32xf32>
    %cst = arith.constant dense<0.000000e+00> : vector<1xf32>
    %11 = vector.multi_reduction <add>, %0, %cst [0] : vector<64x1xf32> to vector<1xf32>
    %12 = vector.shape_cast %11 : vector<1xf32> to vector<1x1xf32>
    %13 = tpu.reciprocal %12 : vector<1x1xf32> -> vector<1x1xf32>
    %14 = vector.broadcast %0 : vector<64x1xf32> to vector<64x32xf32>
    %15 = arith.mulf %8, %14 : vector<64x32xf32>
    %cst_11 = arith.constant dense<0.000000e+00> : vector<32xf32>
    %16 = vector.multi_reduction <add>, %15, %cst_11 [0] : vector<64x32xf32> to vector<32xf32>
    %17 = vector.shape_cast %16 : vector<32xf32> to vector<1x32xf32>
    %18 = vector.broadcast %13 : vector<1x1xf32> to vector<1x32xf32>
    %19 = arith.mulf %17, %18 : vector<1x32xf32>
    %20 = vector.broadcast %19 : vector<1x32xf32> to vector<64x32xf32>
    %21 = arith.subf %8, %20 : vector<64x32xf32>
    %22 = arith.mulf %21, %21 : vector<64x32xf32>
    %23 = vector.broadcast %0 : vector<64x1xf32> to vector<64x32xf32>
    %24 = arith.mulf %22, %23 : vector<64x32xf32>
    %cst_12 = arith.constant dense<0.000000e+00> : vector<32xf32>
    %25 = vector.multi_reduction <add>, %24, %cst_12 [0] : vector<64x32xf32> to vector<32xf32>
    %26 = vector.shape_cast %25 : vector<32xf32> to vector<1x32xf32>
    %27 = vector.broadcast %13 : vector<1x1xf32> to vector<1x32xf32>
    %28 = arith.mulf %26, %27 : vector<1x32xf32>
    %cst_13 = arith.constant 9.99999974E-5 : f32
    %29 = vector.broadcast %cst_13 : f32 to vector<1x32xf32>
    %30 = arith.addf %28, %29 : vector<1x32xf32>
    %31 = math.rsqrt %30 : vector<1x32xf32>
    %32 = vector.broadcast %31 : vector<1x32xf32> to vector<64x32xf32>
    %33 = arith.mulf %21, %32 : vector<64x32xf32>
    %34 = vector.broadcast %9 : vector<1x32xf32> to vector<64x32xf32>
    %35 = arith.mulf %33, %34 : vector<64x32xf32>
    %36 = vector.broadcast %10 : vector<1x32xf32> to vector<64x32xf32>
    %37 = arith.addf %35, %36 : vector<64x32xf32>
    %38 = vector.broadcast %0 : vector<64x1xf32> to vector<64x32xf32>
    %39 = arith.mulf %37, %38 : vector<64x32xf32>
    %c0_14 = arith.constant 0 : index
    %c0_15 = arith.constant 0 : index
    %40 = vector.load %arg6[%c0_14, %c0_15] : memref<32x34xbf16, #tpu.memory_space<vmem>>, vector<32x34xbf16>
    %c0_16 = arith.constant 0 : index
    %c0_17 = arith.constant 0 : index
    %41 = vector.load %arg7[%c0_16, %c0_17] : memref<1x34xf32, #tpu.memory_space<vmem>>, vector<1x34xf32>
    %42 = arith.truncf %39 : vector<64x32xf32> to vector<64x32xbf16>
    %cst_18 = arith.constant dense<0.000000e+00> : vector<64x32xf32>
    %43 = tpu.matmul %2, %42, %cst_18 {dimension_numbers = #tpu.dot_dimension_numbers<[1], [0], [0], [1], [0, 0, 1, 1], [], []>} : vector<64x64xbf16>, vector<64x32xbf16>, vector<64x32xf32> -> vector<64x32xf32>
    %cst_19 = arith.constant 4.000000e+00 : f32
    %44 = vector.broadcast %cst_19 : f32 to vector<64x32xf32>
    %45 = arith.mulf %44, %39 : vector<64x32xf32>
    %46 = arith.addf %45, %43 : vector<64x32xf32>
    %47 = arith.truncf %46 : vector<64x32xf32> to vector<64x32xbf16>
    %cst_20 = arith.constant dense<0.000000e+00> : vector<64x34xf32>
    %48 = tpu.matmul %47, %40, %cst_20 {dimension_numbers = #tpu.dot_dimension_numbers<[1], [0], [0], [1], [0, 0, 1, 1], [], []>} : vector<64x32xbf16>, vector<32x34xbf16>, vector<64x34xf32> -> vector<64x34xf32>
    %49 = vector.broadcast %41 : vector<1x34xf32> to vector<64x34xf32>
    %50 = arith.addf %48, %49 : vector<64x34xf32>
    %51 = vector.broadcast %0 : vector<64x1xf32> to vector<64x34xf32>
    %52 = arith.mulf %50, %51 : vector<64x34xf32>
    %53 = vector.extract_strided_slice %52 {offsets = [0, 0], sizes = [64, 32], strides = [1, 1]} : vector<64x34xf32> to vector<64x32xf32>
    %54 = vector.extract_strided_slice %52 {offsets = [0, 32], sizes = [64, 1], strides = [1, 1]} : vector<64x34xf32> to vector<64x1xf32>
    %55 = vector.extract_strided_slice %52 {offsets = [0, 33], sizes = [64, 1], strides = [1, 1]} : vector<64x34xf32> to vector<64x1xf32>
    %c0_21 = arith.constant 0 : index
    %c0_22 = arith.constant 0 : index
    %56 = vector.load %arg8[%c0_21, %c0_22] : memref<64x32xf32, #tpu.memory_space<vmem>>, vector<64x32xf32>
    tpu.vector_store %arg8[%c0_21, %c0_22], %53 {strides = array<i32>} : memref<64x32xf32, #tpu.memory_space<vmem>>, vector<64x32xf32>,
    %57 = arith.truncf %54 : vector<64x1xf32> to vector<64x1xbf16>
    %cst_23 = arith.constant dense<0.000000e+00> : vector<64x1xf32>
    %58 = tpu.matmul %2, %57, %cst_23 {dimension_numbers = #tpu.dot_dimension_numbers<[1], [0], [0], [1], [0, 0, 1, 1], [], []>} : vector<64x64xbf16>, vector<64x1xbf16>, vector<64x1xf32> -> vector<64x1xf32>
    %59 = arith.addf %58, %55 : vector<64x1xf32>
    %60 = math.tanh %59 : vector<64x1xf32>
    %c0_24 = arith.constant 0 : index
    %c0_25 = arith.constant 0 : index
    %61 = vector.load %arg9[%c0_24, %c0_25] : memref<64x1xf32, #tpu.memory_space<vmem>>, vector<64x1xf32>
    tpu.vector_store %arg9[%c0_24, %c0_25], %60 {strides = array<i32>} : memref<64x1xf32, #tpu.memory_space<vmem>>, vector<64x1xf32>,
    return
  }
}

module attributes {stable_mosaic.version = 11 : i64} {
  func.func @_final_resident_kernel(%arg0: memref<64x32xf32, #tpu.memory_space<vmem>>, %arg1: memref<64x1xf32, #tpu.memory_space<vmem>>, %arg2: memref<64x1xf32, #tpu.memory_space<vmem>>, %arg3: memref<64x64xi8, #tpu.memory_space<vmem>>, %arg4: memref<1x32xf32, #tpu.memory_space<vmem>>, %arg5: memref<1x32xf32, #tpu.memory_space<vmem>>, %arg6: memref<32x2xbf16, #tpu.memory_space<vmem>>, %arg7: memref<1x2xf32, #tpu.memory_space<vmem>>, %arg8: memref<64x32xf32, #tpu.memory_space<vmem>>, %arg9: memref<64x1xf32, #tpu.memory_space<vmem>>) attributes {dimension_semantics = [], scalar_prefetch = 0 : i64, scratch_operands = 0 : i64, tpu.core_type = #tpu.core_type<tc>} {
    %c0 = arith.constant 0 : index
    %c0_0 = arith.constant 0 : index
    %0 = vector.load %arg2[%c0, %c0_0] : memref<64x1xf32, #tpu.memory_space<vmem>>, vector<64x1xf32>
    %c0_1 = arith.constant 0 : index
    %c0_2 = arith.constant 0 : index
    %1 = vector.load %arg3[%c0_1, %c0_2] : memref<64x64xi8, #tpu.memory_space<vmem>>, vector<64x64xi8>
    %2 = arith.sitofp %1 : vector<64x64xi8> to vector<64x64xbf16>
    %c0_3 = arith.constant 0 : index
    %c0_4 = arith.constant 0 : index
    %3 = vector.load %arg0[%c0_3, %c0_4] : memref<64x32xf32, #tpu.memory_space<vmem>>, vector<64x32xf32>
    %c0_5 = arith.constant 0 : index
    %c0_6 = arith.constant 0 : index
    %4 = vector.load %arg1[%c0_5, %c0_6] : memref<64x1xf32, #tpu.memory_space<vmem>>, vector<64x1xf32>
    %5 = vector.broadcast %4 : vector<64x1xf32> to vector<64x32xf32>
    %6 = arith.mulf %3, %5 : vector<64x32xf32>
    %7 = vector.broadcast %0 : vector<64x1xf32> to vector<64x32xf32>
    %8 = arith.mulf %6, %7 : vector<64x32xf32>
    %c0_7 = arith.constant 0 : index
    %c0_8 = arith.constant 0 : index
    %9 = vector.load %arg4[%c0_7, %c0_8] : memref<1x32xf32, #tpu.memory_space<vmem>>, vector<1x32xf32>
    %c0_9 = arith.constant 0 : index
    %c0_10 = arith.constant 0 : index
    %10 = vector.load %arg5[%c0_9, %c0_10] : memref<1x32xf32, #tpu.memory_space<vmem>>, vector<1x32xf32>
    %cst = arith.constant dense<0.000000e+00> : vector<1xf32>
    %11 = vector.multi_reduction <add>, %0, %cst [0] : vector<64x1xf32> to vector<1xf32>
    %12 = vector.shape_cast %11 : vector<1xf32> to vector<1x1xf32>
    %13 = tpu.reciprocal %12 : vector<1x1xf32> -> vector<1x1xf32>
    %14 = vector.broadcast %0 : vector<64x1xf32> to vector<64x32xf32>
    %15 = arith.mulf %8, %14 : vector<64x32xf32>
    %cst_11 = arith.constant dense<0.000000e+00> : vector<32xf32>
    %16 = vector.multi_reduction <add>, %15, %cst_11 [0] : vector<64x32xf32> to vector<32xf32>
    %17 = vector.shape_cast %16 : vector<32xf32> to vector<1x32xf32>
    %18 = vector.broadcast %13 : vector<1x1xf32> to vector<1x32xf32>
    %19 = arith.mulf %17, %18 : vector<1x32xf32>
    %20 = vector.broadcast %19 : vector<1x32xf32> to vector<64x32xf32>
    %21 = arith.subf %8, %20 : vector<64x32xf32>
    %22 = arith.mulf %21, %21 : vector<64x32xf32>
    %23 = vector.broadcast %0 : vector<64x1xf32> to vector<64x32xf32>
    %24 = arith.mulf %22, %23 : vector<64x32xf32>
    %cst_12 = arith.constant dense<0.000000e+00> : vector<32xf32>
    %25 = vector.multi_reduction <add>, %24, %cst_12 [0] : vector<64x32xf32> to vector<32xf32>
    %26 = vector.shape_cast %25 : vector<32xf32> to vector<1x32xf32>
    %27 = vector.broadcast %13 : vector<1x1xf32> to vector<1x32xf32>
    %28 = arith.mulf %26, %27 : vector<1x32xf32>
    %cst_13 = arith.constant 9.99999974E-5 : f32
    %29 = vector.broadcast %cst_13 : f32 to vector<1x32xf32>
    %30 = arith.addf %28, %29 : vector<1x32xf32>
    %31 = math.rsqrt %30 : vector<1x32xf32>
    %32 = vector.broadcast %31 : vector<1x32xf32> to vector<64x32xf32>
    %33 = arith.mulf %21, %32 : vector<64x32xf32>
    %34 = vector.broadcast %9 : vector<1x32xf32> to vector<64x32xf32>
    %35 = arith.mulf %33, %34 : vector<64x32xf32>
    %36 = vector.broadcast %10 : vector<1x32xf32> to vector<64x32xf32>
    %37 = arith.addf %35, %36 : vector<64x32xf32>
    %38 = vector.broadcast %0 : vector<64x1xf32> to vector<64x32xf32>
    %39 = arith.mulf %37, %38 : vector<64x32xf32>
    %40 = arith.truncf %39 : vector<64x32xf32> to vector<64x32xbf16>
    %c0_14 = arith.constant 0 : index
    %c0_15 = arith.constant 0 : index
    %41 = vector.load %arg6[%c0_14, %c0_15] : memref<32x2xbf16, #tpu.memory_space<vmem>>, vector<32x2xbf16>
    %cst_16 = arith.constant dense<0.000000e+00> : vector<64x2xf32>
    %42 = tpu.matmul %40, %41, %cst_16 {dimension_numbers = #tpu.dot_dimension_numbers<[1], [0], [0], [1], [0, 0, 1, 1], [], []>} : vector<64x32xbf16>, vector<32x2xbf16>, vector<64x2xf32> -> vector<64x2xf32>
    %c0_17 = arith.constant 0 : index
    %c0_18 = arith.constant 0 : index
    %43 = vector.load %arg7[%c0_17, %c0_18] : memref<1x2xf32, #tpu.memory_space<vmem>>, vector<1x2xf32>
    %44 = vector.broadcast %43 : vector<1x2xf32> to vector<64x2xf32>
    %45 = arith.addf %42, %44 : vector<64x2xf32>
    %c0_19 = arith.constant 0 : index
    %c0_20 = arith.constant 0 : index
    %46 = vector.load %arg8[%c0_19, %c0_20] : memref<64x32xf32, #tpu.memory_space<vmem>>, vector<64x32xf32>
    tpu.vector_store %arg8[%c0_19, %c0_20], %39 {strides = array<i32>} : memref<64x32xf32, #tpu.memory_space<vmem>>, vector<64x32xf32>,
    %47 = vector.extract_strided_slice %45 {offsets = [0, 0], sizes = [64, 1], strides = [1, 1]} : vector<64x2xf32> to vector<64x1xf32>
    %48 = arith.truncf %47 : vector<64x1xf32> to vector<64x1xbf16>
    %cst_21 = arith.constant dense<0.000000e+00> : vector<64x1xf32>
    %49 = tpu.matmul %2, %48, %cst_21 {dimension_numbers = #tpu.dot_dimension_numbers<[1], [0], [0], [1], [0, 0, 1, 1], [], []>} : vector<64x64xbf16>, vector<64x1xbf16>, vector<64x1xf32> -> vector<64x1xf32>
    %50 = vector.extract_strided_slice %45 {offsets = [0, 1], sizes = [64, 1], strides = [1, 1]} : vector<64x2xf32> to vector<64x1xf32>
    %51 = arith.addf %49, %50 : vector<64x1xf32>
    %52 = math.tanh %51 : vector<64x1xf32>
    %c0_22 = arith.constant 0 : index
    %c0_23 = arith.constant 0 : index
    %53 = vector.load %arg9[%c0_22, %c0_23] : memref<64x1xf32, #tpu.memory_space<vmem>>, vector<64x1xf32>
    tpu.vector_store %arg9[%c0_22, %c0_23], %52 {strides = array<i32>} : memref<64x1xf32, #tpu.memory_space<vmem>>, vector<64x1xf32>,
    return
  }
}

module attributes {stable_mosaic.version = 11 : i64} {
  func.func @_head_kernel(%arg0: memref<2x32xf32, #tpu.memory_space<vmem>>, %arg1: memref<1x32xf32, #tpu.memory_space<vmem>>, %arg2: memref<1x32xf32, #tpu.memory_space<vmem>>, %arg3: memref<32x64xf32, #tpu.memory_space<vmem>>, %arg4: memref<1x64xf32, #tpu.memory_space<vmem>>, %arg5: memref<2x64xf32, #tpu.memory_space<vmem>>) attributes {dimension_semantics = [], scalar_prefetch = 0 : i64, scratch_operands = 0 : i64, tpu.core_type = #tpu.core_type<tc>} {
    %c0 = arith.constant 0 : index
    %c0_0 = arith.constant 0 : index
    %0 = vector.load %arg0[%c0, %c0_0] : memref<2x32xf32, #tpu.memory_space<vmem>>, vector<2x32xf32>
    %cst = arith.constant dense<0.000000e+00> : vector<32xf32>
    %1 = vector.multi_reduction <add>, %0, %cst [0] : vector<2x32xf32> to vector<32xf32>
    %2 = vector.shape_cast %1 : vector<32xf32> to vector<1x32xf32>
    %cst_1 = arith.constant 2.000000e+00 : f32
    %3 = vector.broadcast %cst_1 : f32 to vector<1x32xf32>
    %4 = arith.divf %2, %3 : vector<1x32xf32>
    %5 = vector.broadcast %4 : vector<1x32xf32> to vector<2x32xf32>
    %6 = arith.subf %0, %5 : vector<2x32xf32>
    %7 = arith.mulf %6, %6 : vector<2x32xf32>
    %cst_2 = arith.constant dense<0.000000e+00> : vector<32xf32>
    %8 = vector.multi_reduction <add>, %7, %cst_2 [0] : vector<2x32xf32> to vector<32xf32>
    %9 = vector.shape_cast %8 : vector<32xf32> to vector<1x32xf32>
    %cst_3 = arith.constant 2.000000e+00 : f32
    %10 = vector.broadcast %cst_3 : f32 to vector<1x32xf32>
    %11 = arith.divf %9, %10 : vector<1x32xf32>
    %cst_4 = arith.constant 9.99999974E-5 : f32
    %12 = vector.broadcast %cst_4 : f32 to vector<1x32xf32>
    %13 = arith.addf %11, %12 : vector<1x32xf32>
    %14 = math.rsqrt %13 : vector<1x32xf32>
    %15 = vector.broadcast %14 : vector<1x32xf32> to vector<2x32xf32>
    %16 = arith.mulf %6, %15 : vector<2x32xf32>
    %c0_5 = arith.constant 0 : index
    %c0_6 = arith.constant 0 : index
    %17 = vector.load %arg1[%c0_5, %c0_6] : memref<1x32xf32, #tpu.memory_space<vmem>>, vector<1x32xf32>
    %18 = vector.broadcast %17 : vector<1x32xf32> to vector<2x32xf32>
    %19 = arith.mulf %16, %18 : vector<2x32xf32>
    %c0_7 = arith.constant 0 : index
    %c0_8 = arith.constant 0 : index
    %20 = vector.load %arg2[%c0_7, %c0_8] : memref<1x32xf32, #tpu.memory_space<vmem>>, vector<1x32xf32>
    %21 = vector.broadcast %20 : vector<1x32xf32> to vector<2x32xf32>
    %22 = arith.addf %19, %21 : vector<2x32xf32>
    %c0_9 = arith.constant 0 : index
    %c0_10 = arith.constant 0 : index
    %23 = vector.load %arg3[%c0_9, %c0_10] : memref<32x64xf32, #tpu.memory_space<vmem>>, vector<32x64xf32>
    %cst_11 = arith.constant dense<0.000000e+00> : vector<2x64xf32>
    %24 = tpu.matmul %22, %23, %cst_11 {dimension_numbers = #tpu.dot_dimension_numbers<[1], [0], [0], [1], [0, 0, 1, 1], [], []>} : vector<2x32xf32>, vector<32x64xf32>, vector<2x64xf32> -> vector<2x64xf32>
    %c0_12 = arith.constant 0 : index
    %c0_13 = arith.constant 0 : index
    %25 = vector.load %arg4[%c0_12, %c0_13] : memref<1x64xf32, #tpu.memory_space<vmem>>, vector<1x64xf32>
    %26 = vector.broadcast %25 : vector<1x64xf32> to vector<2x64xf32>
    %27 = arith.addf %24, %26 : vector<2x64xf32>
    %c0_14 = arith.constant 0 : index
    %c0_15 = arith.constant 0 : index
    %28 = vector.load %arg5[%c0_14, %c0_15] : memref<2x64xf32, #tpu.memory_space<vmem>>, vector<2x64xf32>
    tpu.vector_store %arg5[%c0_14, %c0_15], %27 {strides = array<i32>} : memref<2x64xf32, #tpu.memory_space<vmem>>, vector<2x64xf32>,
    return
  }
}

</mosaic_0001>

<llo_original>
// kernel: graph_encoder_forward.5
$region0: #{graph_encoder_forward.5}
  #allocation0 [shape = 'u32[]', space=smem, size = 0x4, offset = 0x4, fixed_abs, tag = 'smem constant byte address 0x4 - core index']
  #allocation1 [shape = 'u32[144,128]{1,0:T(1,128)}', space=vmem, size = 0x12000, scoped, tag = 'internal scratch']
  %s0 = inlined_call_operand.vmem [shape: bf16[64,4], index: 0, kind: input, shape index: {}]
  %s1 = inlined_call_operand.vmem [shape: f32[64,1], index: 1, kind: input, shape index: {}]
  %s2 = inlined_call_operand.vmem [shape: s8[64,64], index: 2, kind: input, shape index: {}]
  %s3 = inlined_call_operand.vmem [shape: bf16[4,8], index: 3, kind: input, shape index: {}]
  %s4 = inlined_call_operand.vmem [shape: f32[1,8], index: 4, kind: input, shape index: {}]
  %s5 = inlined_call_operand.vmem [shape: bf16[8,22], index: 5, kind: input, shape index: {}]
  %s6 = inlined_call_operand.vmem [shape: f32[1,22], index: 6, kind: input, shape index: {}]
  %s7 = inlined_call_operand.vmem [shape: f32[64,20], index: 7, kind: output, shape index: {0}]
  %s8 = inlined_call_operand.vmem [shape: f32[64,1], index: 8, kind: output, shape index: {1}]
  %9 = xla_tuple %s7, %s8
  %s10 = sld [smem:[#allocation0]]
  $region46: #{graph_encoder_forward.5} parent=0
    _
  %s12 = ssub.s32 1, %s10
  %s13 = scalar_select 0, %s12, %s10
  // Predicated region
  $region2: #{graph_encoder_forward.5} parent=0 // pred_check
    _
  $region3: #{graph_encoder_forward.5} parent=0 // pred_check_branch
    %15 = sbr.rel (0) target = $region5
  $region4: #{graph_encoder_forward.5} parent=0 // pred_region
    _
  $region5: #{graph_encoder_forward.5} parent=0 // pred_fallthru
    _
  // Predicated region
  $region6: #{graph_encoder_forward.5} parent=0 // pred_check
    _
  $region7: #{graph_encoder_forward.5} parent=0 // pred_check_branch
    %17 = sbr.rel (0) target = $region9
  $region8: #{graph_encoder_forward.5} parent=0 // pred_region
    _
  $region9: #{graph_encoder_forward.5} parent=0 // pred_fallthru
    _
  // Predicated region
  $region10: #{graph_encoder_forward.5} parent=0 // pred_check
    _
  $region11: #{graph_encoder_forward.5} parent=0 // pred_check_branch
    %19 = sbr.rel (0) target = $region13
  $region12: #{graph_encoder_forward.5} parent=0 // pred_region
    _
  $region13: #{graph_encoder_forward.5} parent=0 // pred_fallthru
    _
  // Predicated region
  $region14: #{graph_encoder_forward.5} parent=0 // pred_check
    _
  $region15: #{graph_encoder_forward.5} parent=0 // pred_check_branch
    %21 = sbr.rel (0) target = $region17
  $region16: #{graph_encoder_forward.5} parent=0 // pred_region
    _
  $region17: #{graph_encoder_forward.5} parent=0 // pred_fallthru
    _
  // Predicated region
  $region18: #{graph_encoder_forward.5} parent=0 // pred_check
    _
  $region19: #{graph_encoder_forward.5} parent=0 // pred_check_branch
    %23 = sbr.rel (0) target = $region21
  $region20: #{graph_encoder_forward.5} parent=0 // pred_region
    _
  $region21: #{graph_encoder_forward.5} parent=0 // pred_fallthru
    _
  // Predicated region
  $region22: #{graph_encoder_forward.5} parent=0 // pred_check
    _
  $region23: #{graph_encoder_forward.5} parent=0 // pred_check_branch
    %25 = sbr.rel (0) target = $region25
  $region24: #{graph_encoder_forward.5} parent=0 // pred_region
    _
  $region25: #{graph_encoder_forward.5} parent=0 // pred_fallthru
    _
  // Predicated region
  $region26: #{graph_encoder_forward.5} parent=0 // pred_check
    _
  $region27: #{graph_encoder_forward.5} parent=0 // pred_check_branch
    %27 = sbr.rel (0) target = $region29
  $region28: #{graph_encoder_forward.5} parent=0 // pred_region
    _
  $region29: #{graph_encoder_forward.5} parent=0 // pred_fallthru
    _
  %v29 = vld [vmem:[%s2] sm:$0xff]
  %v30 = vld [vmem:[%s2 + $0x8] sm:$0xff]
  %v31 = vunpack.c.l.s8.bf16 %v29
  %v32 = vunpack.c.h.s8.bf16 %v29
  %v33 = vunpack.c.l.s8.bf16 %v30
  %v34 = vunpack.c.h.s8.bf16 %v30
  %v35 = vld [vmem:[%s0] sm:$0xf]
  %v36 = vld [vmem:[%s0 + $0x4] sm:$0xf]
  %v37 = vld [vmem:[%s0 + $0x8] sm:$0xf]
  %v38 = vld [vmem:[%s0 + $0xc] sm:$0xf]
  %v39 = vld [vmem:[%s0 + $0x10] sm:$0xf]
  %v40 = vld [vmem:[%s0 + $0x14] sm:$0xf]
  %v41 = vld [vmem:[%s0 + $0x18] sm:$0xf]
  %v42 = vld [vmem:[%s0 + $0x1c] sm:$0xf]
  %v43 = vld [vmem:[%s3] sm:$0x3]
  %v44 = vld [vmem:[%s4] sm:$0x1]
  %v46 = vlaneseq
  %v47 = vshrl.u32 %v46, 7
  %v48 = vsub.s32 0, %v47
  %v49 = vrot.slane %v44, %v48
  %v59 = vunpack.c.l.b16 %v35
  %v60 = vunpack.c.l.b16 %v36
  %v61 = vunpack.c.l.b16 %v37
  %v62 = vunpack.c.l.b16 %v38
  %v63 = vunpack.c.l.b16 %v39
  %v64 = vunpack.c.l.b16 %v40
  %v65 = vunpack.c.l.b16 %v41
  %v66 = vunpack.c.l.b16 %v42
  %v67 = vpack.c.b16 %v60, %v59
  %v68 = vpack.c.b16 %v62, %v61
  %v69 = vpack.c.b16 %v64, %v63
  %v70 = vpack.c.b16 %v66, %v65
  %vm71 = vcmask 31744
  %v73 = vsel %vm71, %v67, 0
  %v76 = vsel %vm71, %v68, 0
  %v79 = vsel %vm71, %v69, 0
  %v82 = vsel %vm71, %v70, 0
  %vm84 = vcmask 1041408
  %v86 = vsel %vm84, %v43, 0
  %88 = vmatprep.subr.bf16.mxu0 0
  %89 = vmatpush1.bf16.msra.mxu0 0
  %90 = vmatprep.subr.bf16.mxu0 0
  %91 = vmatpush1.bf16.msra.mxu0 0
  %92 = vmatprep.subr.bf16.mxu0 0
  %93 = vmatpush1.bf16.msra.mxu0 0
  %94 = vmatprep.subr.bf16.mxu0 0
  %95 = vmatpush1.bf16.msra.mxu0 0
  %96 = vmatprep.subr.bf16.mxu0 0
  %97 = vmatpush1.bf16.msra.mxu0 0
  %98 = vmatprep.subr.bf16.mxu0 0
  %99 = vmatpush1.bf16.msra.mxu0 0
  %100 = vmatprep.subr.bf16.mxu0 0
  %101 = vmatpush1.bf16.msra.mxu0 0
  %102 = vmatprep.subr.bf16.mxu0 0
  %103 = vmatpush1.bf16.msra.mxu0 %v86
  %104 = vmatprep.subr.bf16.mxu0 0
  %105 = vmatpush2.bf16.msra.mxu0 0
  %106 = vmatprep.subr.bf16.mxu0 0
  %107 = vmatpush2.bf16.msra.mxu0 0
  %108 = vmatprep.subr.bf16.mxu0 0
  %109 = vmatpush2.bf16.msra.mxu0 0
  %110 = vmatprep.subr.bf16.mxu0 0
  %111 = vmatpush2.bf16.msra.mxu0 0
  %112 = vmatprep.subr.bf16.mxu0 0
  %113 = vmatpush2.bf16.msra.mxu0 0
  %114 = vmatprep.subr.bf16.mxu0 0
  %115 = vmatpush2.bf16.msra.mxu0 0
  %116 = vmatprep.subr.bf16.mxu0 0
  %117 = vmatpush2.bf16.msra.mxu0 0
  %118 = vmatprep.subr.bf16.mxu0 0
  %119 = vmatpush2.bf16.msra.mxu0 0
  %120 = vmatprep.mubr.bf16.mxu0 0
  %121 = vmatmul.mubr.bf16.gmra.mxu0 %v73
  %v122 = vpop.f32.mrf.mxu0
  %v123 = vadd.f32 %v49, %v122
  %v124 = vpop.f32.mrf.mxu0
  %v125 = vpop.f32.mrf.mxu0
  %v126 = vadd.f32 %v49, %v125
  %v127 = vpop.f32.mrf.mxu0
  %128 = vmatprep.mubr.bf16.mxu0 0
  %129 = vmatmul.mubr.bf16.gmra.mxu0 %v76
  %v130 = vpop.f32.mrf.mxu0
  %v131 = vadd.f32 %v49, %v130
  %v132 = vpop.f32.mrf.mxu0
  %v133 = vpop.f32.mrf.mxu0
  %v134 = vadd.f32 %v49, %v133
  %v135 = vpop.f32.mrf.mxu0
  %136 = vmatprep.mubr.bf16.mxu0 0
  %137 = vmatmul.mubr.bf16.gmra.mxu0 %v79
  %v138 = vpop.f32.mrf.mxu0
  %v139 = vadd.f32 %v49, %v138
  %v140 = vpop.f32.mrf.mxu0
  %v141 = vpop.f32.mrf.mxu0
  %v142 = vadd.f32 %v49, %v141
  %v143 = vpop.f32.mrf.mxu0
  %144 = vmatprep.mubr.bf16.mxu0 0
  %145 = vmatmul.mubr.bf16.gmra.mxu0 %v82
  %v146 = vpop.f32.mrf.mxu0
  %v147 = vadd.f32 %v49, %v146
  %v148 = vpop.f32.mrf.mxu0
  %v149 = vpop.f32.mrf.mxu0
  %v150 = vadd.f32 %v49, %v149
  %v151 = vpop.f32.mrf.mxu0
  %152 = vdwg.mxu0
  %v153 = vld [vmem:[%s5] sm:$0xf]
  %v154 = vld [vmem:[%s6] sm:$0x1]
  %v155 = vld [vmem:[%s1] sm:$0xff]
  %v156 = vld [vmem:[%s1 + $0x8] sm:$0xff]
  %v157 = vld [vmem:[%s1 + $0x10] sm:$0xff]
  %v158 = vld [vmem:[%s1 + $0x18] sm:$0xff]
  %v159 = vld [vmem:[%s1 + $0x20] sm:$0xff]
  %v160 = vld [vmem:[%s1 + $0x28] sm:$0xff]
  %v161 = vld [vmem:[%s1 + $0x30] sm:$0xff]
  %v162 = vld [vmem:[%s1 + $0x38] sm:$0xff]
  %v163 = vpack.c.bf16 %v126, %v123
  %v164 = vpack.c.bf16 %v134, %v131
  %v165 = vpack.c.bf16 %v142, %v139
  %v166 = vpack.c.bf16 %v150, %v147
  %vm167 = vcmask 523264
  %v169 = vsel %vm167, %v31, 0
  %v172 = vsel %vm167, %v32, 0
  %v175 = vsel %vm167, %v33, 0
  %v178 = vsel %vm167, %v34, 0
  %180 = vmatprep.subr.bf16.mxu0 0
  %181 = vmatpush1.bf16.msra.mxu0 0
  %182 = vmatprep.subr.bf16.mxu0 0
  %183 = vmatpush1.bf16.msra.mxu0 0
  %184 = vmatprep.subr.bf16.mxu0 0
  %185 = vmatpush1.bf16.msra.mxu0 0
  %186 = vmatprep.subr.bf16.mxu0 0
  %187 = vmatpush1.bf16.msra.mxu0 0
  %188 = vmatprep.subr.bf16.mxu0 0
  %189 = vmatpush1.bf16.msra.mxu0 %v166
  %190 = vmatprep.subr.bf16.mxu0 0
  %191 = vmatpush1.bf16.msra.mxu0 %v165
  %192 = vmatprep.subr.bf16.mxu0 0
  %193 = vmatpush1.bf16.msra.mxu0 %v164
  %194 = vmatprep.subr.bf16.mxu0 0
  %195 = vmatpush1.bf16.msra.mxu0 %v163
  %196 = vmatprep.subr.bf16.mxu0 0
  %197 = vmatpush2.bf16.msra.mxu0 0
  %198 = vmatprep.subr.bf16.mxu0 0
  %199 = vmatpush2.bf16.msra.mxu0 0
  %200 = vmatprep.subr.bf16.mxu0 0
  %201 = vmatpush2.bf16.msra.mxu0 0
  %202 = vmatprep.subr.bf16.mxu0 0
  %203 = vmatpush2.bf16.msra.mxu0 0
  %204 = vmatprep.subr.bf16.mxu0 0
  %205 = vmatpush2.bf16.msra.mxu0 0
  %206 = vmatprep.subr.bf16.mxu0 0
  %207 = vmatpush2.bf16.msra.mxu0 0
  %208 = vmatprep.subr.bf16.mxu0 0
  %209 = vmatpush2.bf16.msra.mxu0 0
  %210 = vmatprep.subr.bf16.mxu0 0
  %211 = vmatpush2.bf16.msra.mxu0 0
  %212 = vmatprep.mubr.bf16.mxu0 0
  %213 = vmatmul.mubr.bf16.gmra.mxu0 %v169
  %v214 = vpop.f32.mrf.mxu0
  %v215 = vadd.f32 0.0, %v214
  %v216 = vpop.f32.mrf.mxu0
  %v217 = vpop.f32.mrf.mxu0
  %v218 = vadd.f32 0.0, %v217
  %v219 = vpop.f32.mrf.mxu0
  %220 = vmatprep.mubr.bf16.mxu0 0
  %221 = vmatmul.mubr.bf16.gmra.mxu0 %v172
  %v222 = vpop.f32.mrf.mxu0
  %v223 = vadd.f32 0.0, %v222
  %v224 = vpop.f32.mrf.mxu0
  %v225 = vpop.f32.mrf.mxu0
  %v226 = vadd.f32 0.0, %v225
  %v227 = vpop.f32.mrf.mxu0
  %228 = vmatprep.mubr.bf16.mxu0 0
  %229 = vmatmul.mubr.bf16.gmra.mxu0 %v175
  %v230 = vpop.f32.mrf.mxu0
  %v231 = vadd.f32 0.0, %v230
  %v232 = vpop.f32.mrf.mxu0
  %v233 = vpop.f32.mrf.mxu0
  %v234 = vadd.f32 0.0, %v233
  %v235 = vpop.f32.mrf.mxu0
  %236 = vmatprep.mubr.bf16.mxu0 0
  %237 = vmatmul.mubr.bf16.gmra.mxu0 %v178
  %v238 = vpop.f32.mrf.mxu0
  %v239 = vadd.f32 0.0, %v238
  %v240 = vpop.f32.mrf.mxu0
  %v241 = vpop.f32.mrf.mxu0
  %v242 = vadd.f32 0.0, %v241
  %v243 = vpop.f32.mrf.mxu0
  %244 = vdwg.mxu0
  %v245 = vmul.f32 %v123, 4.0
  %v246 = vmul.f32 %v126, 4.0
  %v247 = vmul.f32 %v131, 4.0
  %v248 = vmul.f32 %v134, 4.0
  %v249 = vmul.f32 %v139, 4.0
  %v250 = vmul.f32 %v142, 4.0
  %v251 = vmul.f32 %v147, 4.0
  %v252 = vmul.f32 %v150, 4.0
  %v253 = vadd.f32 %v245, %v215
  %v254 = vadd.f32 %v246, %v218
  %v255 = vadd.f32 %v247, %v223
  %v256 = vadd.f32 %v248, %v226
  %v257 = vadd.f32 %v249, %v231
  %v258 = vadd.f32 %v250, %v234
  %v259 = vadd.f32 %v251, %v239
  %v260 = vadd.f32 %v252, %v242
  %v261 = vpack.c.bf16 %v254, %v253
  %v262 = vpack.c.bf16 %v256, %v255
  %v263 = vpack.c.bf16 %v258, %v257
  %v264 = vpack.c.bf16 %v260, %v259
  %v266 = vlaneseq
  %v267 = vshrl.u32 %v266, 7
  %v268 = vsub.s32 0, %v267
  %v269 = vrot.slane %v154, %v268
  %vm271 = vcmask 64512
  %v273 = vsel %vm271, %v261, 0
  %v276 = vsel %vm271, %v262, 0
  %v279 = vsel %vm271, %v263, 0
  %v282 = vsel %vm271, %v264, 0
  %vm284 = vcmask 1043456
  %v286 = vsel %vm284, %v153, 0
  %288 = vmatprep.subr.bf16.mxu0 0
  %289 = vmatpush1.bf16.msra.mxu0 0
  %290 = vmatprep.subr.bf16.mxu0 0
  %291 = vmatpush1.bf16.msra.mxu0 0
  %292 = vmatprep.subr.bf16.mxu0 0
  %293 = vmatpush1.bf16.msra.mxu0 0
  %294 = vmatprep.subr.bf16.mxu0 0
  %295 = vmatpush1.bf16.msra.mxu0 0
  %296 = vmatprep.subr.bf16.mxu0 0
  %297 = vmatpush1.bf16.msra.mxu0 0
  %298 = vmatprep.subr.bf16.mxu0 0
  %299 = vmatpush1.bf16.msra.mxu0 0
  %300 = vmatprep.subr.bf16.mxu0 0
  %301 = vmatpush1.bf16.msra.mxu0 0
  %302 = vmatprep.subr.bf16.mxu0 0
  %303 = vmatpush1.bf16.msra.mxu0 %v286
  %304 = vmatprep.subr.bf16.mxu0 0
  %305 = vmatpush2.bf16.msra.mxu0 0
  %306 = vmatprep.subr.bf16.mxu0 0
  %307 = vmatpush2.bf16.msra.mxu0 0
  %308 = vmatprep.subr.bf16.mxu0 0
  %309 = vmatpush2.bf16.msra.mxu0 0
  %310 = vmatprep.subr.bf16.mxu0 0
  %311 = vmatpush2.bf16.msra.mxu0 0
  %312 = vmatprep.subr.bf16.mxu0 0
  %313 = vmatpush2.bf16.msra.mxu0 0
  %314 = vmatprep.subr.bf16.mxu0 0
  %315 = vmatpush2.bf16.msra.mxu0 0
  %316 = vmatprep.subr.bf16.mxu0 0
  %317 = vmatpush2.bf16.msra.mxu0 0
  %318 = vmatprep.subr.bf16.mxu0 0
  %319 = vmatpush2.bf16.msra.mxu0 0
  %320 = vmatprep.mubr.bf16.mxu0 0
  %321 = vmatmul.mubr.bf16.gmra.mxu0 %v273
  %v322 = vpop.f32.mrf.mxu0
  %v323 = vadd.f32 %v269, %v322
  %v324 = vpop.f32.mrf.mxu0
  %v325 = vpop.f32.mrf.mxu0
  %v326 = vadd.f32 %v269, %v325
  %v327 = vpop.f32.mrf.mxu0
  %328 = vmatprep.mubr.bf16.mxu0 0
  %329 = vmatmul.mubr.bf16.gmra.mxu0 %v276
  %v330 = vpop.f32.mrf.mxu0
  %v331 = vadd.f32 %v269, %v330
  %v332 = vpop.f32.mrf.mxu0
  %v333 = vpop.f32.mrf.mxu0
  %v334 = vadd.f32 %v269, %v333
  %v335 = vpop.f32.mrf.mxu0
  %336 = vmatprep.mubr.bf16.mxu0 0
  %337 = vmatmul.mubr.bf16.gmra.mxu0 %v279
  %v338 = vpop.f32.mrf.mxu0
  %v339 = vadd.f32 %v269, %v338
  %v340 = vpop.f32.mrf.mxu0
  %v341 = vpop.f32.mrf.mxu0
  %v342 = vadd.f32 %v269, %v341
  %v343 = vpop.f32.mrf.mxu0
  %344 = vmatprep.mubr.bf16.mxu0 0
  %345 = vmatmul.mubr.bf16.gmra.mxu0 %v282
  %v346 = vpop.f32.mrf.mxu0
  %v347 = vadd.f32 %v269, %v346
  %v348 = vpop.f32.mrf.mxu0
  %v349 = vpop.f32.mrf.mxu0
  %v350 = vadd.f32 %v269, %v349
  %v351 = vpop.f32.mrf.mxu0
  %352 = vdwg.mxu0
  %354 = vset.pattern.permute.xlu0 0
  %355 = vperm.xlu0 %354, %v155
  %v356 = vpop.permute.xlu0 %355
  %359 = vset.pattern.permute.xlu0 0
  %360 = vperm.xlu0 %359, %v156
  %v361 = vpop.permute.xlu0 %360
  %364 = vset.pattern.permute.xlu0 0
  %365 = vperm.xlu0 %364, %v157
  %v366 = vpop.permute.xlu0 %365
  %369 = vset.pattern.permute.xlu0 0
  %370 = vperm.xlu0 %369, %v158
  %v371 = vpop.permute.xlu0 %370
  %374 = vset.pattern.permute.xlu0 0
  %375 = vperm.xlu0 %374, %v159
  %v376 = vpop.permute.xlu0 %375
  %379 = vset.pattern.permute.xlu0 0
  %380 = vperm.xlu0 %379, %v160
  %v381 = vpop.permute.xlu0 %380
  %384 = vset.pattern.permute.xlu0 0
  %385 = vperm.xlu0 %384, %v161
  %v386 = vpop.permute.xlu0 %385
  %389 = vset.pattern.permute.xlu0 0
  %390 = vperm.xlu0 %389, %v162
  %v391 = vpop.permute.xlu0 %390
  %v393 = vmul.f32 %v323, %v356
  %v394 = vmul.f32 %v326, %v361
  %v395 = vmul.f32 %v331, %v366
  %v396 = vmul.f32 %v334, %v371
  %v397 = vmul.f32 %v339, %v376
  %v398 = vmul.f32 %v342, %v381
  %v399 = vmul.f32 %v347, %v386
  %v400 = vmul.f32 %v350, %v391
  %vm401 = vcmask 162816
  %402 = vst.msk [vmem:[%s7] sm:$0xff] %vm401, %v393
  %403 = vst.msk [vmem:[%s7 + $0x8] sm:$0xff] %vm401, %v394
  %404 = vst.msk [vmem:[%s7 + $0x10] sm:$0xff] %vm401, %v395
  %405 = vst.msk [vmem:[%s7 + $0x18] sm:$0xff] %vm401, %v396
  %406 = vst.msk [vmem:[%s7 + $0x20] sm:$0xff] %vm401, %v397
  %407 = vst.msk [vmem:[%s7 + $0x28] sm:$0xff] %vm401, %v398
  %408 = vst.msk [vmem:[%s7 + $0x30] sm:$0xff] %vm401, %v399
  %409 = vst.msk [vmem:[%s7 + $0x38] sm:$0xff] %vm401, %v400
  %v410 = vpack.c.bf16 %v394, %v393
  %v411 = vpack.c.bf16 %v396, %v395
  %v412 = vpack.c.bf16 %v398, %v397
  %v413 = vpack.c.bf16 %v400, %v399
  %418 = vrot.lane.b32.xlu0 %v410, 108
  %v419 = vpop.permute.xlu0 %418
  %420 = vrot.lane.b32.xlu0 %v411, 108
  %v421 = vpop.permute.xlu0 %420
  %422 = vrot.lane.b32.xlu0 %v412, 108
  %v423 = vpop.permute.xlu0 %422
  %424 = vrot.lane.b32.xlu0 %v413, 108
  %v425 = vpop.permute.xlu0 %424
  %438 = vrot.lane.b32.xlu0 %v393, 107
  %v439 = vpop.permute.xlu0 %438
  %440 = vrot.lane.b32.xlu0 %v394, 107
  %v441 = vpop.permute.xlu0 %440
  %442 = vrot.lane.b32.xlu0 %v395, 107
  %v443 = vpop.permute.xlu0 %442
  %444 = vrot.lane.b32.xlu0 %v396, 107
  %v445 = vpop.permute.xlu0 %444
  %446 = vrot.lane.b32.xlu0 %v397, 107
  %v447 = vpop.permute.xlu0 %446
  %448 = vrot.lane.b32.xlu0 %v398, 107
  %v449 = vpop.permute.xlu0 %448
  %450 = vrot.lane.b32.xlu0 %v399, 107
  %v451 = vpop.permute.xlu0 %450
  %452 = vrot.lane.b32.xlu0 %v400, 107
  %v453 = vpop.permute.xlu0 %452
  %462 = vmatprep.subr.bf16.mxu0 0
  %463 = vmatpush1.bf16.msra.mxu0 0
  %464 = vmatprep.subr.bf16.mxu0 0
  %465 = vmatpush1.bf16.msra.mxu0 0
  %466 = vmatprep.subr.bf16.mxu0 0
  %467 = vmatpush1.bf16.msra.mxu0 0
  %468 = vmatprep.subr.bf16.mxu0 0
  %469 = vmatpush1.bf16.msra.mxu0 0
  %470 = vmatprep.subr.bf16.mxu0 0
  %471 = vmatpush1.bf16.msra.mxu0 %v425
  %472 = vmatprep.subr.bf16.mxu0 0
  %473 = vmatpush1.bf16.msra.mxu0 %v423
  %474 = vmatprep.subr.bf16.mxu0 0
  %475 = vmatpush1.bf16.msra.mxu0 %v421
  %476 = vmatprep.subr.bf16.mxu0 0
  %477 = vmatpush1.bf16.msra.mxu0 %v419
  %478 = vmatprep.subr.bf16.mxu0 0
  %479 = vmatpush2.bf16.msra.mxu0 0
  %480 = vmatprep.subr.bf16.mxu0 0
  %481 = vmatpush2.bf16.msra.mxu0 0
  %482 = vmatprep.subr.bf16.mxu0 0
  %483 = vmatpush2.bf16.msra.mxu0 0
  %484 = vmatprep.subr.bf16.mxu0 0
  %485 = vmatpush2.bf16.msra.mxu0 0
  %486 = vmatprep.subr.bf16.mxu0 0
  %487 = vmatpush2.bf16.msra.mxu0 0
  %488 = vmatprep.subr.bf16.mxu0 0
  %489 = vmatpush2.bf16.msra.mxu0 0
  %490 = vmatprep.subr.bf16.mxu0 0
  %491 = vmatpush2.bf16.msra.mxu0 0
  %492 = vmatprep.subr.bf16.mxu0 0
  %493 = vmatpush2.bf16.msra.mxu0 0
  %494 = vmatprep.mubr.bf16.mxu0 0
  %495 = vmatmul.mubr.bf16.gmra.mxu0 %v169
  %v496 = vpop.f32.mrf.mxu0
  %v497 = vadd.f32 %v439, %v496
  %v498 = vpop.f32.mrf.mxu0
  %v499 = vpop.f32.mrf.mxu0
  %v500 = vadd.f32 %v441, %v499
  %v501 = vpop.f32.mrf.mxu0
  %502 = vmatprep.mubr.bf16.mxu0 0
  %503 = vmatmul.mubr.bf16.gmra.mxu0 %v172
  %v504 = vpop.f32.mrf.mxu0
  %v505 = vadd.f32 %v443, %v504
  %v506 = vpop.f32.mrf.mxu0
  %v507 = vpop.f32.mrf.mxu0
  %v508 = vadd.f32 %v445, %v507
  %v509 = vpop.f32.mrf.mxu0
  %510 = vmatprep.mubr.bf16.mxu0 0
  %511 = vmatmul.mubr.bf16.gmra.mxu0 %v175
  %v512 = vpop.f32.mrf.mxu0
  %v513 = vadd.f32 %v447, %v512
  %v514 = vpop.f32.mrf.mxu0
  %v515 = vpop.f32.mrf.mxu0
  %v516 = vadd.f32 %v449, %v515
  %v517 = vpop.f32.mrf.mxu0
  %518 = vmatprep.mubr.bf16.mxu0 0
  %519 = vmatmul.mubr.bf16.gmra.mxu0 %v178
  %v520 = vpop.f32.mrf.mxu0
  %v521 = vadd.f32 %v451, %v520
  %v522 = vpop.f32.mrf.mxu0
  %v523 = vpop.f32.mrf.mxu0
  %v524 = vadd.f32 %v453, %v523
  %v525 = vpop.f32.mrf.mxu0
  %526 = vdwg.mxu0
  %v527 = vtanh.pop %v497
  %v528 = vtanh.pop %v500
  %v529 = vtanh.pop %v505
  %v530 = vtanh.pop %v508
  %v531 = vtanh.pop %v513
  %v532 = vtanh.pop %v516
  %v533 = vtanh.pop %v521
  %v534 = vtanh.pop %v524
  %vm535 = vcmask 7168
  %536 = vst.msk [vmem:[%s8] sm:$0xff] %vm535, %v527
  %537 = vst.msk [vmem:[%s8 + $0x8] sm:$0xff] %vm535, %v528
  %538 = vst.msk [vmem:[%s8 + $0x10] sm:$0xff] %vm535, %v529
  %539 = vst.msk [vmem:[%s8 + $0x18] sm:$0xff] %vm535, %v530
  %540 = vst.msk [vmem:[%s8 + $0x20] sm:$0xff] %vm535, %v531
  %541 = vst.msk [vmem:[%s8 + $0x28] sm:$0xff] %vm535, %v532
  %542 = vst.msk [vmem:[%s8 + $0x30] sm:$0xff] %vm535, %v533
  %543 = vst.msk [vmem:[%s8 + $0x38] sm:$0xff] %vm535, %v534
  // Predicated region
  $region30: #{graph_encoder_forward.5} parent=0 // pred_check
    _
  $region31: #{graph_encoder_forward.5} parent=0 // pred_check_branch
    %545 = sbr.rel (0) target = $region33
  $region32: #{graph_encoder_forward.5} parent=0 // pred_region
    _
  $region33: #{graph_encoder_forward.5} parent=0 // pred_fallthru
    _
  // Predicated region
  $region34: #{graph_encoder_forward.5} parent=0 // pred_check
    _
  $region35: #{graph_encoder_forward.5} parent=0 // pred_check_branch
    %547 = sbr.rel (0) target = $region37
  $region36: #{graph_encoder_forward.5} parent=0 // pred_region
    _
  $region37: #{graph_encoder_forward.5} parent=0 // pred_fallthru
    _
  // Predicated region
  $region38: #{graph_encoder_forward.5} parent=0 // pred_check
    _
  $region39: #{graph_encoder_forward.5} parent=0 // pred_check_branch
    %549 = sbr.rel (0) target = $region41
  $region40: #{graph_encoder_forward.5} parent=0 // pred_region
    _
  $region41: #{graph_encoder_forward.5} parent=0 // pred_fallthru
    _
  // Predicated region
  $region42: #{graph_encoder_forward.5} parent=0 // pred_check
    _
  $region43: #{graph_encoder_forward.5} parent=0 // pred_check_branch
    %551 = sbr.rel (0) target = $region45
  $region44: #{graph_encoder_forward.5} parent=0 // pred_region
    _
  $region45: #{graph_encoder_forward.5} parent=0 // pred_fallthru
    _

// kernel: graph_encoder_forward.6
$region0: #{graph_encoder_forward.6}
  #allocation0 [shape = 'u32[]', space=smem, size = 0x4, offset = 0x4, fixed_abs, tag = 'smem constant byte address 0x4 - core index']
  #allocation1 [shape = 'u32[144,128]{1,0:T(1,128)}', space=vmem, size = 0x12000, scoped, tag = 'internal scratch']
  %s0 = inlined_call_operand.vmem [shape: f32[64,20], index: 0, kind: input, shape index: {}]
  %s1 = inlined_call_operand.vmem [shape: f32[64,1], index: 1, kind: input, shape index: {}]
  %s2 = inlined_call_operand.vmem [shape: f32[64,1], index: 2, kind: input, shape index: {}]
  %s3 = inlined_call_operand.vmem [shape: s8[64,64], index: 3, kind: input, shape index: {}]
  %s4 = inlined_call_operand.vmem [shape: f32[1,20], index: 4, kind: input, shape index: {}]
  %s5 = inlined_call_operand.vmem [shape: f32[1,20], index: 5, kind: input, shape index: {}]
  %s6 = inlined_call_operand.vmem [shape: bf16[20,34], index: 6, kind: input, shape index: {}]
  %s7 = inlined_call_operand.vmem [shape: f32[1,34], index: 7, kind: input, shape index: {}]
  %s8 = inlined_call_operand.vmem [shape: f32[64,32], index: 8, kind: output, shape index: {0}]
  %s9 = inlined_call_operand.vmem [shape: f32[64,1], index: 9, kind: output, shape index: {1}]
  %10 = xla_tuple %s8, %s9
  %s11 = sld [smem:[#allocation0]]
  $region50: #{graph_encoder_forward.6} parent=0
    _
  %s13 = ssub.s32 1, %s11
  %s14 = scalar_select 0, %s13, %s11
  // Predicated region
  $region2: #{graph_encoder_forward.6} parent=0 // pred_check
    _
  $region3: #{graph_encoder_forward.6} parent=0 // pred_check_branch
    %16 = sbr.rel (0) target = $region5
  $region4: #{graph_encoder_forward.6} parent=0 // pred_region
    _
  $region5: #{graph_encoder_forward.6} parent=0 // pred_fallthru
    _
  // Predicated region
  $region6: #{graph_encoder_forward.6} parent=0 // pred_check
    _
  $region7: #{graph_encoder_forward.6} parent=0 // pred_check_branch
    %18 = sbr.rel (0) target = $region9
  $region8: #{graph_encoder_forward.6} parent=0 // pred_region
    _
  $region9: #{graph_encoder_forward.6} parent=0 // pred_fallthru
    _
  // Predicated region
  $region10: #{graph_encoder_forward.6} parent=0 // pred_check
    _
  $region11: #{graph_encoder_forward.6} parent=0 // pred_check_branch
    %20 = sbr.rel (0) target = $region13
  $region12: #{graph_encoder_forward.6} parent=0 // pred_region
    _
  $region13: #{graph_encoder_forward.6} parent=0 // pred_fallthru
    _
  // Predicated region
  $region14: #{graph_encoder_forward.6} parent=0 // pred_check
    _
  $region15: #{graph_encoder_forward.6} parent=0 // pred_check_branch
    %22 = sbr.rel (0) target = $region17
  $region16: #{graph_encoder_forward.6} parent=0 // pred_region
    _
  $region17: #{graph_encoder_forward.6} parent=0 // pred_fallthru
    _
  // Predicated region
  $region18: #{graph_encoder_forward.6} parent=0 // pred_check
    _
  $region19: #{graph_encoder_forward.6} parent=0 // pred_check_branch
    %24 = sbr.rel (0) target = $region21
  $region20: #{graph_encoder_forward.6} parent=0 // pred_region
    _
  $region21: #{graph_encoder_forward.6} parent=0 // pred_fallthru
    _
  // Predicated region
  $region22: #{graph_encoder_forward.6} parent=0 // pred_check
    _
  $region23: #{graph_encoder_forward.6} parent=0 // pred_check_branch
    %26 = sbr.rel (0) target = $region25
  $region24: #{graph_encoder_forward.6} parent=0 // pred_region
    _
  $region25: #{graph_encoder_forward.6} parent=0 // pred_fallthru
    _
  // Predicated region
  $region26: #{graph_encoder_forward.6} parent=0 // pred_check
    _
  $region27: #{graph_encoder_forward.6} parent=0 // pred_check_branch
    %28 = sbr.rel (0) target = $region29
  $region28: #{graph_encoder_forward.6} parent=0 // pred_region
    _
  $region29: #{graph_encoder_forward.6} parent=0 // pred_fallthru
    _
  // Predicated region
  $region30: #{graph_encoder_forward.6} parent=0 // pred_check
    _
  $region31: #{graph_encoder_forward.6} parent=0 // pred_check_branch
    %30 = sbr.rel (0) target = $region33
  $region32: #{graph_encoder_forward.6} parent=0 // pred_region
    _
  $region33: #{graph_encoder_forward.6} parent=0 // pred_fallthru
    _
  %v32 = vld [vmem:[%s2] sm:$0xff]
  %v33 = vld [vmem:[%s2 + $0x8] sm:$0xff]
  %v34 = vld [vmem:[%s2 + $0x10] sm:$0xff]
  %v35 = vld [vmem:[%s2 + $0x18] sm:$0xff]
  %v36 = vld [vmem:[%s2 + $0x20] sm:$0xff]
  %v37 = vld [vmem:[%s2 + $0x28] sm:$0xff]
  %v38 = vld [vmem:[%s2 + $0x30] sm:$0xff]
  %v39 = vld [vmem:[%s2 + $0x38] sm:$0xff]
  %v40 = vld [vmem:[%s3] sm:$0xff]
  %v41 = vld [vmem:[%s3 + $0x8] sm:$0xff]
  %v42 = vunpack.c.l.s8.bf16 %v40
  %v43 = vunpack.c.h.s8.bf16 %v40
  %v44 = vunpack.c.l.s8.bf16 %v41
  %v45 = vunpack.c.h.s8.bf16 %v41
  %v46 = vld [vmem:[%s0] sm:$0xff]
  %v47 = vld [vmem:[%s0 + $0x8] sm:$0xff]
  %v48 = vld [vmem:[%s0 + $0x10] sm:$0xff]
  %v49 = vld [vmem:[%s0 + $0x18] sm:$0xff]
  %v50 = vld [vmem:[%s0 + $0x20] sm:$0xff]
  %v51 = vld [vmem:[%s0 + $0x28] sm:$0xff]
  %v52 = vld [vmem:[%s0 + $0x30] sm:$0xff]
  %v53 = vld [vmem:[%s0 + $0x38] sm:$0xff]
  %v54 = vld [vmem:[%s1] sm:$0xff]
  %v55 = vld [vmem:[%s1 + $0x8] sm:$0xff]
  %v56 = vld [vmem:[%s1 + $0x10] sm:$0xff]
  %v57 = vld [vmem:[%s1 + $0x18] sm:$0xff]
  %v58 = vld [vmem:[%s1 + $0x20] sm:$0xff]
  %v59 = vld [vmem:[%s1 + $0x28] sm:$0xff]
  %v60 = vld [vmem:[%s1 + $0x30] sm:$0xff]
  %v61 = vld [vmem:[%s1 + $0x38] sm:$0xff]
  %63 = vset.pattern.permute.xlu0 0
  %64 = vperm.xlu0 %63, %v54
  %v65 = vpop.permute.xlu0 %64
  %68 = vset.pattern.permute.xlu0 0
  %69 = vperm.xlu0 %68, %v55
  %v70 = vpop.permute.xlu0 %69
  %73 = vset.pattern.permute.xlu0 0
  %74 = vperm.xlu0 %73, %v56
  %v75 = vpop.permute.xlu0 %74
  %78 = vset.pattern.permute.xlu0 0
  %79 = vperm.xlu0 %78, %v57
  %v80 = vpop.permute.xlu0 %79
  %83 = vset.pattern.permute.xlu0 0
  %84 = vperm.xlu0 %83, %v58
  %v85 = vpop.permute.xlu0 %84
  %88 = vset.pattern.permute.xlu0 0
  %89 = vperm.xlu0 %88, %v59
  %v90 = vpop.permute.xlu0 %89
  %93 = vset.pattern.permute.xlu0 0
  %94 = vperm.xlu0 %93, %v60
  %v95 = vpop.permute.xlu0 %94
  %98 = vset.pattern.permute.xlu0 0
  %99 = vperm.xlu0 %98, %v61
  %v100 = vpop.permute.xlu0 %99
  %v102 = vmul.f32 %v46, %v65
  %v103 = vmul.f32 %v47, %v70
  %v104 = vmul.f32 %v48, %v75
  %v105 = vmul.f32 %v49, %v80
  %v106 = vmul.f32 %v50, %v85
  %v107 = vmul.f32 %v51, %v90
  %v108 = vmul.f32 %v52, %v95
  %v109 = vmul.f32 %v53, %v100
  %111 = vset.pattern.permute.xlu0 0
  %112 = vperm.xlu0 %111, %v32
  %v113 = vpop.permute.xlu0 %112
  %116 = vset.pattern.permute.xlu0 0
  %117 = vperm.xlu0 %116, %v33
  %v118 = vpop.permute.xlu0 %117
  %121 = vset.pattern.permute.xlu0 0
  %122 = vperm.xlu0 %121, %v34
  %v123 = vpop.permute.xlu0 %122
  %126 = vset.pattern.permute.xlu0 0
  %127 = vperm.xlu0 %126, %v35
  %v128 = vpop.permute.xlu0 %127
  %131 = vset.pattern.permute.xlu0 0
  %132 = vperm.xlu0 %131, %v36
  %v133 = vpop.permute.xlu0 %132
  %136 = vset.pattern.permute.xlu0 0
  %137 = vperm.xlu0 %136, %v37
  %v138 = vpop.permute.xlu0 %137
  %141 = vset.pattern.permute.xlu0 0
  %142 = vperm.xlu0 %141, %v38
  %v143 = vpop.permute.xlu0 %142
  %146 = vset.pattern.permute.xlu0 0
  %147 = vperm.xlu0 %146, %v39
  %v148 = vpop.permute.xlu0 %147
  %v150 = vmul.f32 %v102, %v113
  %v151 = vmul.f32 %v103, %v118
  %v152 = vmul.f32 %v104, %v123
  %v153 = vmul.f32 %v105, %v128
  %v154 = vmul.f32 %v106, %v133
  %v155 = vmul.f32 %v107, %v138
  %v156 = vmul.f32 %v108, %v143
  %v157 = vmul.f32 %v109, %v148
  %v158 = vld [vmem:[%s4] sm:$0x1]
  %v159 = vld [vmem:[%s5] sm:$0x1]
  %vm160 = vcmask 7168
  %v161 = vsel %vm160, %v32, 0.0
  %v162 = vsel %vm160, %v33, 0.0
  %v163 = vadd.f32 %v161, %v162
  %v164 = vsel %vm160, %v34, 0.0
  %v165 = vadd.f32 %v163, %v164
  %v166 = vsel %vm160, %v35, 0.0
  %v167 = vadd.f32 %v165, %v166
  %v168 = vsel %vm160, %v36, 0.0
  %v169 = vadd.f32 %v167, %v168
  %v170 = vsel %vm160, %v37, 0.0
  %v171 = vadd.f32 %v169, %v170
  %v172 = vsel %vm160, %v38, 0.0
  %v173 = vadd.f32 %v171, %v172
  %v174 = vsel %vm160, %v39, 0.0
  %v175 = vadd.f32 %v173, %v174
  %v176 = vrot.slane %v175, 4
  %v177 = vadd.f32 %v175, %v176
  %v178 = vrot.slane %v177, 2
  %v179 = vadd.f32 %v177, %v178
  %v180 = vrot.slane %v179, 1
  %v181 = vadd.f32 %v179, %v180
  %v182 = vrcp.pop %v181
  %v183 = vmul.f32 %v150, %v113
  %v184 = vmul.f32 %v151, %v118
  %v185 = vmul.f32 %v152, %v123
  %v186 = vmul.f32 %v153, %v128
  %v187 = vmul.f32 %v154, %v133
  %v188 = vmul.f32 %v155, %v138
  %v189 = vmul.f32 %v156, %v143
  %v190 = vmul.f32 %v157, %v148
  %vm191 = vcmask 162816
  %v192 = vsel %vm191, %v183, 0.0
  %v193 = vsel %vm191, %v184, 0.0
  %v194 = vadd.f32 %v192, %v193
  %v195 = vsel %vm191, %v185, 0.0
  %v196 = vadd.f32 %v194, %v195
  %v197 = vsel %vm191, %v186, 0.0
  %v198 = vadd.f32 %v196, %v197
  %v199 = vsel %vm191, %v187, 0.0
  %v200 = vadd.f32 %v198, %v199
  %v201 = vsel %vm191, %v188, 0.0
  %v202 = vadd.f32 %v200, %v201
  %v203 = vsel %vm191, %v189, 0.0
  %v204 = vadd.f32 %v202, %v203
  %v205 = vsel %vm191, %v190, 0.0
  %v206 = vadd.f32 %v204, %v205
  %v207 = vrot.slane %v206, 4
  %v208 = vadd.f32 %v206, %v207
  %v209 = vrot.slane %v208, 2
  %v210 = vadd.f32 %v208, %v209
  %v211 = vrot.slane %v210, 1
  %v212 = vadd.f32 %v210, %v211
  %214 = vset.pattern.permute.xlu0 0
  %215 = vperm.xlu0 %214, %v182
  %v216 = vpop.permute.xlu0 %215
  %v218 = vmul.f32 %v212, %v216
  %v219 = vsub.f32 %v150, %v218
  %v220 = vsub.f32 %v151, %v218
  %v221 = vsub.f32 %v152, %v218
  %v222 = vsub.f32 %v153, %v218
  %v223 = vsub.f32 %v154, %v218
  %v224 = vsub.f32 %v155, %v218
  %v225 = vsub.f32 %v156, %v218
  %v226 = vsub.f32 %v157, %v218
  %v227 = vmul.f32 %v219, %v219
  %v228 = vmul.f32 %v220, %v220
  %v229 = vmul.f32 %v221, %v221
  %v230 = vmul.f32 %v222, %v222
  %v231 = vmul.f32 %v223, %v223
  %v232 = vmul.f32 %v224, %v224
  %v233 = vmul.f32 %v225, %v225
  %v234 = vmul.f32 %v226, %v226
  %v235 = vmul.f32 %v227, %v113
  %v236 = vmul.f32 %v228, %v118
  %v237 = vmul.f32 %v229, %v123
  %v238 = vmul.f32 %v230, %v128
  %v239 = vmul.f32 %v231, %v133
  %v240 = vmul.f32 %v232, %v138
  %v241 = vmul.f32 %v233, %v143
  %v242 = vmul.f32 %v234, %v148
  %v243 = vsel %vm191, %v235, 0.0
  %v244 = vsel %vm191, %v236, 0.0
  %v245 = vadd.f32 %v243, %v244
  %v246 = vsel %vm191, %v237, 0.0
  %v247 = vadd.f32 %v245, %v246
  %v248 = vsel %vm191, %v238, 0.0
  %v249 = vadd.f32 %v247, %v248
  %v250 = vsel %vm191, %v239, 0.0
  %v251 = vadd.f32 %v249, %v250
  %v252 = vsel %vm191, %v240, 0.0
  %v253 = vadd.f32 %v251, %v252
  %v254 = vsel %vm191, %v241, 0.0
  %v255 = vadd.f32 %v253, %v254
  %v256 = vsel %vm191, %v242, 0.0
  %v257 = vadd.f32 %v255, %v256
  %v258 = vrot.slane %v257, 4
  %v259 = vadd.f32 %v257, %v258
  %v260 = vrot.slane %v259, 2
  %v261 = vadd.f32 %v259, %v260
  %v262 = vrot.slane %v261, 1
  %v263 = vadd.f32 %v261, %v262
  %v264 = vmul.f32 %v263, %v216
  %v265 = vadd.f32 %v264, 0.0001
  %v266 = vrsqrt.pop %v265
  %v267 = vmul.f32 %v219, %v266
  %v268 = vmul.f32 %v220, %v266
  %v269 = vmul.f32 %v221, %v266
  %v270 = vmul.f32 %v222, %v266
  %v271 = vmul.f32 %v223, %v266
  %v272 = vmul.f32 %v224, %v266
  %v273 = vmul.f32 %v225, %v266
  %v274 = vmul.f32 %v226, %v266
  %v276 = vlaneseq
  %v277 = vshrl.u32 %v276, 7
  %v278 = vsub.s32 0, %v277
  %v279 = vrot.slane %v158, %v278
  %v281 = vmul.f32 %v267, %v279
  %v282 = vmul.f32 %v268, %v279
  %v283 = vmul.f32 %v269, %v279
  %v284 = vmul.f32 %v270, %v279
  %v285 = vmul.f32 %v271, %v279
  %v286 = vmul.f32 %v272, %v279
  %v287 = vmul.f32 %v273, %v279
  %v288 = vmul.f32 %v274, %v279
  %v290 = vlaneseq
  %v291 = vshrl.u32 %v290, 7
  %v292 = vsub.s32 0, %v291
  %v293 = vrot.slane %v159, %v292
  %v295 = vadd.f32 %v281, %v293
  %v296 = vadd.f32 %v282, %v293
  %v297 = vadd.f32 %v283, %v293
  %v298 = vadd.f32 %v284, %v293
  %v299 = vadd.f32 %v285, %v293
  %v300 = vadd.f32 %v286, %v293
  %v301 = vadd.f32 %v287, %v293
  %v302 = vadd.f32 %v288, %v293
  %v303 = vmul.f32 %v295, %v113
  %v304 = vmul.f32 %v296, %v118
  %v305 = vmul.f32 %v297, %v123
  %v306 = vmul.f32 %v298, %v128
  %v307 = vmul.f32 %v299, %v133
  %v308 = vmul.f32 %v300, %v138
  %v309 = vmul.f32 %v301, %v143
  %v310 = vmul.f32 %v302, %v148
  %v311 = vld [vmem:[%s6] sm:$0xf]
  %v312 = vld [vmem:[%s6 + $0x4] sm:$0xf]
  %v313 = vld [vmem:[%s6 + $0x8] sm:$0x3]
  %v314 = vld [vmem:[%s7] sm:$0x1]
  %v315 = vpack.c.bf16 %v304, %v303
  %v316 = vpack.c.bf16 %v306, %v305
  %v317 = vpack.c.bf16 %v308, %v307
  %v318 = vpack.c.bf16 %v310, %v309
  %vm319 = vcmask 523264
  %v321 = vsel %vm319, %v42, 0
  %v324 = vsel %vm319, %v43, 0
  %v327 = vsel %vm319, %v44, 0
  %v330 = vsel %vm319, %v45, 0
  %332 = vmatprep.subr.bf16.mxu0 0
  %333 = vmatpush1.bf16.msra.mxu0 0
  %334 = vmatprep.subr.bf16.mxu0 0
  %335 = vmatpush1.bf16.msra.mxu0 0
  %336 = vmatprep.subr.bf16.mxu0 0
  %337 = vmatpush1.bf16.msra.mxu0 0
  %338 = vmatprep.subr.bf16.mxu0 0
  %339 = vmatpush1.bf16.msra.mxu0 0
  %340 = vmatprep.subr.bf16.mxu0 0
  %341 = vmatpush1.bf16.msra.mxu0 %v318
  %342 = vmatprep.subr.bf16.mxu0 0
  %343 = vmatpush1.bf16.msra.mxu0 %v317
  %344 = vmatprep.subr.bf16.mxu0 0
  %345 = vmatpush1.bf16.msra.mxu0 %v316
  %346 = vmatprep.subr.bf16.mxu0 0
  %347 = vmatpush1.bf16.msra.mxu0 %v315
  %348 = vmatprep.subr.bf16.mxu0 0
  %349 = vmatpush2.bf16.msra.mxu0 0
  %350 = vmatprep.subr.bf16.mxu0 0
  %351 = vmatpush2.bf16.msra.mxu0 0
  %352 = vmatprep.subr.bf16.mxu0 0
  %353 = vmatpush2.bf16.msra.mxu0 0
  %354 = vmatprep.subr.bf16.mxu0 0
  %355 = vmatpush2.bf16.msra.mxu0 0
  %356 = vmatprep.subr.bf16.mxu0 0
  %357 = vmatpush2.bf16.msra.mxu0 0
  %358 = vmatprep.subr.bf16.mxu0 0
  %359 = vmatpush2.bf16.msra.mxu0 0
  %360 = vmatprep.subr.bf16.mxu0 0
  %361 = vmatpush2.bf16.msra.mxu0 0
  %362 = vmatprep.subr.bf16.mxu0 0
  %363 = vmatpush2.bf16.msra.mxu0 0
  %364 = vmatprep.mubr.bf16.mxu0 0
  %365 = vmatmul.mubr.bf16.gmra.mxu0 %v321
  %v366 = vpop.f32.mrf.mxu0
  %v367 = vadd.f32 0.0, %v366
  %v368 = vpop.f32.mrf.mxu0
  %v369 = vpop.f32.mrf.mxu0
  %v370 = vadd.f32 0.0, %v369
  %v371 = vpop.f32.mrf.mxu0
  %372 = vmatprep.mubr.bf16.mxu0 0
  %373 = vmatmul.mubr.bf16.gmra.mxu0 %v324
  %v374 = vpop.f32.mrf.mxu0
  %v375 = vadd.f32 0.0, %v374
  %v376 = vpop.f32.mrf.mxu0
  %v377 = vpop.f32.mrf.mxu0
  %v378 = vadd.f32 0.0, %v377
  %v379 = vpop.f32.mrf.mxu0
  %380 = vmatprep.mubr.bf16.mxu0 0
  %381 = vmatmul.mubr.bf16.gmra.mxu0 %v327
  %v382 = vpop.f32.mrf.mxu0
  %v383 = vadd.f32 0.0, %v382
  %v384 = vpop.f32.mrf.mxu0
  %v385 = vpop.f32.mrf.mxu0
  %v386 = vadd.f32 0.0, %v385
  %v387 = vpop.f32.mrf.mxu0
  %388 = vmatprep.mubr.bf16.mxu0 0
  %389 = vmatmul.mubr.bf16.gmra.mxu0 %v330
  %v390 = vpop.f32.mrf.mxu0
  %v391 = vadd.f32 0.0, %v390
  %v392 = vpop.f32.mrf.mxu0
  %v393 = vpop.f32.mrf.mxu0
  %v394 = vadd.f32 0.0, %v393
  %v395 = vpop.f32.mrf.mxu0
  %396 = vdwg.mxu0
  %v397 = vmul.f32 %v303, 4.0
  %v398 = vmul.f32 %v304, 4.0
  %v399 = vmul.f32 %v305, 4.0
  %v400 = vmul.f32 %v306, 4.0
  %v401 = vmul.f32 %v307, 4.0
  %v402 = vmul.f32 %v308, 4.0
  %v403 = vmul.f32 %v309, 4.0
  %v404 = vmul.f32 %v310, 4.0
  %v405 = vadd.f32 %v397, %v367
  %v406 = vadd.f32 %v398, %v370
  %v407 = vadd.f32 %v399, %v375
  %v408 = vadd.f32 %v400, %v378
  %v409 = vadd.f32 %v401, %v383
  %v410 = vadd.f32 %v402, %v386
  %v411 = vadd.f32 %v403, %v391
  %v412 = vadd.f32 %v404, %v394
  %v413 = vpack.c.bf16 %v406, %v405
  %v414 = vpack.c.bf16 %v408, %v407
  %v415 = vpack.c.bf16 %v410, %v409
  %v416 = vpack.c.bf16 %v412, %v411
  %v418 = vlaneseq
  %v419 = vshrl.u32 %v418, 7
  %v420 = vsub.s32 0, %v419
  %v421 = vrot.slane %v314, %v420
  %v426 = vunpack.c.l.b16 %v311
  %v427 = vunpack.c.l.b16 %v312
  %v428 = vunpack.c.l.b16 %v313
  %v429 = vpack.c.b16 %v427, %v426
  %v430 = vpack.c.b16 %v428, %v428
  %v433 = vsel %vm191, %v413, 0
  %v436 = vsel %vm191, %v414, 0
  %v439 = vsel %vm191, %v415, 0
  %v442 = vsel %vm191, %v416, 0
  %vm444 = vcmask 1041408
  %v446 = vsel %vm444, %v430, 0
  %448 = vmatprep.subr.bf16.mxu0 0
  %449 = vmatpush1.bf16.msra.mxu0 0
  %450 = vmatprep.subr.bf16.mxu0 0
  %451 = vmatpush1.bf16.msra.mxu0 0
  %452 = vmatprep.subr.bf16.mxu0 0
  %453 = vmatpush1.bf16.msra.mxu0 0
  %454 = vmatprep.subr.bf16.mxu0 0
  %455 = vmatpush1.bf16.msra.mxu0 0
  %456 = vmatprep.subr.bf16.mxu0 0
  %457 = vmatpush1.bf16.msra.mxu0 0
  %458 = vmatprep.subr.bf16.mxu0 0
  %459 = vmatpush1.bf16.msra.mxu0 0
  %460 = vmatprep.subr.bf16.mxu0 0
  %461 = vmatpush1.bf16.msra.mxu0 %v446
  %462 = vmatprep.subr.bf16.mxu0 0
  %463 = vmatpush1.bf16.msra.mxu0 %v429
  %464 = vmatprep.subr.bf16.mxu0 0
  %465 = vmatpush2.bf16.msra.mxu0 0
  %466 = vmatprep.subr.bf16.mxu0 0
  %467 = vmatpush2.bf16.msra.mxu0 0
  %468 = vmatprep.subr.bf16.mxu0 0
  %469 = vmatpush2.bf16.msra.mxu0 0
  %470 = vmatprep.subr.bf16.mxu0 0
  %471 = vmatpush2.bf16.msra.mxu0 0
  %472 = vmatprep.subr.bf16.mxu0 0
  %473 = vmatpush2.bf16.msra.mxu0 0
  %474 = vmatprep.subr.bf16.mxu0 0
  %475 = vmatpush2.bf16.msra.mxu0 0
  %476 = vmatprep.subr.bf16.mxu0 0
  %477 = vmatpush2.bf16.msra.mxu0 0
  %478 = vmatprep.subr.bf16.mxu0 0
  %479 = vmatpush2.bf16.msra.mxu0 0
  %480 = vmatprep.mubr.bf16.mxu0 0
  %481 = vmatmul.mubr.bf16.gmra.mxu0 %v433
  %v482 = vpop.f32.mrf.mxu0
  %v483 = vadd.f32 %v421, %v482
  %v484 = vpop.f32.mrf.mxu0
  %v485 = vpop.f32.mrf.mxu0
  %v486 = vadd.f32 %v421, %v485
  %v487 = vpop.f32.mrf.mxu0
  %488 = vmatprep.mubr.bf16.mxu0 0
  %489 = vmatmul.mubr.bf16.gmra.mxu0 %v436
  %v490 = vpop.f32.mrf.mxu0
  %v491 = vadd.f32 %v421, %v490
  %v492 = vpop.f32.mrf.mxu0
  %v493 = vpop.f32.mrf.mxu0
  %v494 = vadd.f32 %v421, %v493
  %v495 = vpop.f32.mrf.mxu0
  %496 = vmatprep.mubr.bf16.mxu0 0
  %497 = vmatmul.mubr.bf16.gmra.mxu0 %v439
  %v498 = vpop.f32.mrf.mxu0
  %v499 = vadd.f32 %v421, %v498
  %v500 = vpop.f32.mrf.mxu0
  %v501 = vpop.f32.mrf.mxu0
  %v502 = vadd.f32 %v421, %v501
  %v503 = vpop.f32.mrf.mxu0
  %504 = vmatprep.mubr.bf16.mxu0 0
  %505 = vmatmul.mubr.bf16.gmra.mxu0 %v442
  %v506 = vpop.f32.mrf.mxu0
  %v507 = vadd.f32 %v421, %v506
  %v508 = vpop.f32.mrf.mxu0
  %v509 = vpop.f32.mrf.mxu0
  %v510 = vadd.f32 %v421, %v509
  %v511 = vpop.f32.mrf.mxu0
  %512 = vdwg.mxu0
  %v513 = vmul.f32 %v483, %v113
  %v514 = vmul.f32 %v486, %v118
  %v515 = vmul.f32 %v491, %v123
  %v516 = vmul.f32 %v494, %v128
  %v517 = vmul.f32 %v499, %v133
  %v518 = vmul.f32 %v502, %v138
  %v519 = vmul.f32 %v507, %v143
  %v520 = vmul.f32 %v510, %v148
  %vm521 = vcmask 261120
  %522 = vst.msk [vmem:[%s8] sm:$0xff] %vm521, %v513
  %523 = vst.msk [vmem:[%s8 + $0x8] sm:$0xff] %vm521, %v514
  %524 = vst.msk [vmem:[%s8 + $0x10] sm:$0xff] %vm521, %v515
  %525 = vst.msk [vmem:[%s8 + $0x18] sm:$0xff] %vm521, %v516
  %526 = vst.msk [vmem:[%s8 + $0x20] sm:$0xff] %vm521, %v517
  %527 = vst.msk [vmem:[%s8 + $0x28] sm:$0xff] %vm521, %v518
  %528 = vst.msk [vmem:[%s8 + $0x30] sm:$0xff] %vm521, %v519
  %529 = vst.msk [vmem:[%s8 + $0x38] sm:$0xff] %vm521, %v520
  %v530 = vpack.c.bf16 %v514, %v513
  %v531 = vpack.c.bf16 %v516, %v515
  %v532 = vpack.c.bf16 %v518, %v517
  %v533 = vpack.c.bf16 %v520, %v519
  %538 = vrot.lane.b32.xlu0 %v530, 96
  %v539 = vpop.permute.xlu0 %538
  %540 = vrot.lane.b32.xlu0 %v531, 96
  %v541 = vpop.permute.xlu0 %540
  %542 = vrot.lane.b32.xlu0 %v532, 96
  %v543 = vpop.permute.xlu0 %542
  %544 = vrot.lane.b32.xlu0 %v533, 96
  %v545 = vpop.permute.xlu0 %544
  %558 = vrot.lane.b32.xlu0 %v513, 95
  %v559 = vpop.permute.xlu0 %558
  %560 = vrot.lane.b32.xlu0 %v514, 95
  %v561 = vpop.permute.xlu0 %560
  %562 = vrot.lane.b32.xlu0 %v515, 95
  %v563 = vpop.permute.xlu0 %562
  %564 = vrot.lane.b32.xlu0 %v516, 95
  %v565 = vpop.permute.xlu0 %564
  %566 = vrot.lane.b32.xlu0 %v517, 95
  %v567 = vpop.permute.xlu0 %566
  %568 = vrot.lane.b32.xlu0 %v518, 95
  %v569 = vpop.permute.xlu0 %568
  %570 = vrot.lane.b32.xlu0 %v519, 95
  %v571 = vpop.permute.xlu0 %570
  %572 = vrot.lane.b32.xlu0 %v520, 95
  %v573 = vpop.permute.xlu0 %572
  %582 = vmatprep.subr.bf16.mxu0 0
  %583 = vmatpush1.bf16.msra.mxu0 0
  %584 = vmatprep.subr.bf16.mxu0 0
  %585 = vmatpush1.bf16.msra.mxu0 0
  %586 = vmatprep.subr.bf16.mxu0 0
  %587 = vmatpush1.bf16.msra.mxu0 0
  %588 = vmatprep.subr.bf16.mxu0 0
  %589 = vmatpush1.bf16.msra.mxu0 0
  %590 = vmatprep.subr.bf16.mxu0 0
  %591 = vmatpush1.bf16.msra.mxu0 %v545
  %592 = vmatprep.subr.bf16.mxu0 0
  %593 = vmatpush1.bf16.msra.mxu0 %v543
  %594 = vmatprep.subr.bf16.mxu0 0
  %595 = vmatpush1.bf16.msra.mxu0 %v541
  %596 = vmatprep.subr.bf16.mxu0 0
  %597 = vmatpush1.bf16.msra.mxu0 %v539
  %598 = vmatprep.subr.bf16.mxu0 0
  %599 = vmatpush2.bf16.msra.mxu0 0
  %600 = vmatprep.subr.bf16.mxu0 0
  %601 = vmatpush2.bf16.msra.mxu0 0
  %602 = vmatprep.subr.bf16.mxu0 0
  %603 = vmatpush2.bf16.msra.mxu0 0
  %604 = vmatprep.subr.bf16.mxu0 0
  %605 = vmatpush2.bf16.msra.mxu0 0
  %606 = vmatprep.subr.bf16.mxu0 0
  %607 = vmatpush2.bf16.msra.mxu0 0
  %608 = vmatprep.subr.bf16.mxu0 0
  %609 = vmatpush2.bf16.msra.mxu0 0
  %610 = vmatprep.subr.bf16.mxu0 0
  %611 = vmatpush2.bf16.msra.mxu0 0
  %612 = vmatprep.subr.bf16.mxu0 0
  %613 = vmatpush2.bf16.msra.mxu0 0
  %614 = vmatprep.mubr.bf16.mxu0 0
  %615 = vmatmul.mubr.bf16.gmra.mxu0 %v321
  %v616 = vpop.f32.mrf.mxu0
  %v617 = vadd.f32 %v559, %v616
  %v618 = vpop.f32.mrf.mxu0
  %v619 = vpop.f32.mrf.mxu0
  %v620 = vadd.f32 %v561, %v619
  %v621 = vpop.f32.mrf.mxu0
  %622 = vmatprep.mubr.bf16.mxu0 0
  %623 = vmatmul.mubr.bf16.gmra.mxu0 %v324
  %v624 = vpop.f32.mrf.mxu0
  %v625 = vadd.f32 %v563, %v624
  %v626 = vpop.f32.mrf.mxu0
  %v627 = vpop.f32.mrf.mxu0
  %v628 = vadd.f32 %v565, %v627
  %v629 = vpop.f32.mrf.mxu0
  %630 = vmatprep.mubr.bf16.mxu0 0
  %631 = vmatmul.mubr.bf16.gmra.mxu0 %v327
  %v632 = vpop.f32.mrf.mxu0
  %v633 = vadd.f32 %v567, %v632
  %v634 = vpop.f32.mrf.mxu0
  %v635 = vpop.f32.mrf.mxu0
  %v636 = vadd.f32 %v569, %v635
  %v637 = vpop.f32.mrf.mxu0
  %638 = vmatprep.mubr.bf16.mxu0 0
  %639 = vmatmul.mubr.bf16.gmra.mxu0 %v330
  %v640 = vpop.f32.mrf.mxu0
  %v641 = vadd.f32 %v571, %v640
  %v642 = vpop.f32.mrf.mxu0
  %v643 = vpop.f32.mrf.mxu0
  %v644 = vadd.f32 %v573, %v643
  %v645 = vpop.f32.mrf.mxu0
  %646 = vdwg.mxu0
  %v647 = vtanh.pop %v617
  %v648 = vtanh.pop %v620
  %v649 = vtanh.pop %v625
  %v650 = vtanh.pop %v628
  %v651 = vtanh.pop %v633
  %v652 = vtanh.pop %v636
  %v653 = vtanh.pop %v641
  %v654 = vtanh.pop %v644
  %655 = vst.msk [vmem:[%s9] sm:$0xff] %vm160, %v647
  %656 = vst.msk [vmem:[%s9 + $0x8] sm:$0xff] %vm160, %v648
  %657 = vst.msk [vmem:[%s9 + $0x10] sm:$0xff] %vm160, %v649
  %658 = vst.msk [vmem:[%s9 + $0x18] sm:$0xff] %vm160, %v650
  %659 = vst.msk [vmem:[%s9 + $0x20] sm:$0xff] %vm160, %v651
  %660 = vst.msk [vmem:[%s9 + $0x28] sm:$0xff] %vm160, %v652
  %661 = vst.msk [vmem:[%s9 + $0x30] sm:$0xff] %vm160, %v653
  %662 = vst.msk [vmem:[%s9 + $0x38] sm:$0xff] %vm160, %v654
  // Predicated region
  $region34: #{graph_encoder_forward.6} parent=0 // pred_check
    _
  $region35: #{graph_encoder_forward.6} parent=0 // pred_check_branch
    %664 = sbr.rel (0) target = $region37
  $region36: #{graph_encoder_forward.6} parent=0 // pred_region
    _
  $region37: #{graph_encoder_forward.6} parent=0 // pred_fallthru
    _
  // Predicated region
  $region38: #{graph_encoder_forward.6} parent=0 // pred_check
    _
  $region39: #{graph_encoder_forward.6} parent=0 // pred_check_branch
    %666 = sbr.rel (0) target = $region41
  $region40: #{graph_encoder_forward.6} parent=0 // pred_region
    _
  $region41: #{graph_encoder_forward.6} parent=0 // pred_fallthru
    _
  // Predicated region
  $region42: #{graph_encoder_forward.6} parent=0 // pred_check
    _
  $region43: #{graph_encoder_forward.6} parent=0 // pred_check_branch
    %668 = sbr.rel (0) target = $region45
  $region44: #{graph_encoder_forward.6} parent=0 // pred_region
    _
  $region45: #{graph_encoder_forward.6} parent=0 // pred_fallthru
    _
  // Predicated region
  $region46: #{graph_encoder_forward.6} parent=0 // pred_check
    _
  $region47: #{graph_encoder_forward.6} parent=0 // pred_check_branch
    %670 = sbr.rel (0) target = $region49
  $region48: #{graph_encoder_forward.6} parent=0 // pred_region
    _
  $region49: #{graph_encoder_forward.6} parent=0 // pred_fallthru
    _

// kernel: graph_encoder_forward.8
$region0: #{graph_encoder_forward.8}
  #allocation0 [shape = 'u32[]', space=smem, size = 0x4, offset = 0x4, fixed_abs, tag = 'smem constant byte address 0x4 - core index']
  #allocation1 [shape = 'u32[144,128]{1,0:T(1,128)}', space=vmem, size = 0x12000, scoped, tag = 'internal scratch']
  %s0 = inlined_call_operand.vmem [shape: f32[64,32], index: 0, kind: input, shape index: {}]
  %s1 = inlined_call_operand.vmem [shape: f32[64,1], index: 1, kind: input, shape index: {}]
  %s2 = inlined_call_operand.vmem [shape: f32[64,1], index: 2, kind: input, shape index: {}]
  %s3 = inlined_call_operand.vmem [shape: s8[64,64], index: 3, kind: input, shape index: {}]
  %s4 = inlined_call_operand.vmem [shape: f32[1,32], index: 4, kind: input, shape index: {}]
  %s5 = inlined_call_operand.vmem [shape: f32[1,32], index: 5, kind: input, shape index: {}]
  %s6 = inlined_call_operand.vmem [shape: bf16[32,2], index: 6, kind: input, shape index: {}]
  %s7 = inlined_call_operand.vmem [shape: f32[1,2], index: 7, kind: input, shape index: {}]
  %s8 = inlined_call_operand.vmem [shape: f32[64,32], index: 8, kind: output, shape index: {0}]
  %s9 = inlined_call_operand.vmem [shape: f32[64,1], index: 9, kind: output, shape index: {1}]
  %10 = xla_tuple %s8, %s9
  %s11 = sld [smem:[#allocation0]]
  $region50: #{graph_encoder_forward.8} parent=0
    _
  %s13 = ssub.s32 1, %s11
  %s14 = scalar_select 0, %s13, %s11
  // Predicated region
  $region2: #{graph_encoder_forward.8} parent=0 // pred_check
    _
  $region3: #{graph_encoder_forward.8} parent=0 // pred_check_branch
    %16 = sbr.rel (0) target = $region5
  $region4: #{graph_encoder_forward.8} parent=0 // pred_region
    _
  $region5: #{graph_encoder_forward.8} parent=0 // pred_fallthru
    _
  // Predicated region
  $region6: #{graph_encoder_forward.8} parent=0 // pred_check
    _
  $region7: #{graph_encoder_forward.8} parent=0 // pred_check_branch
    %18 = sbr.rel (0) target = $region9
  $region8: #{graph_encoder_forward.8} parent=0 // pred_region
    _
  $region9: #{graph_encoder_forward.8} parent=0 // pred_fallthru
    _
  // Predicated region
  $region10: #{graph_encoder_forward.8} parent=0 // pred_check
    _
  $region11: #{graph_encoder_forward.8} parent=0 // pred_check_branch
    %20 = sbr.rel (0) target = $region13
  $region12: #{graph_encoder_forward.8} parent=0 // pred_region
    _
  $region13: #{graph_encoder_forward.8} parent=0 // pred_fallthru
    _
  // Predicated region
  $region14: #{graph_encoder_forward.8} parent=0 // pred_check
    _
  $region15: #{graph_encoder_forward.8} parent=0 // pred_check_branch
    %22 = sbr.rel (0) target = $region17
  $region16: #{graph_encoder_forward.8} parent=0 // pred_region
    _
  $region17: #{graph_encoder_forward.8} parent=0 // pred_fallthru
    _
  // Predicated region
  $region18: #{graph_encoder_forward.8} parent=0 // pred_check
    _
  $region19: #{graph_encoder_forward.8} parent=0 // pred_check_branch
    %24 = sbr.rel (0) target = $region21
  $region20: #{graph_encoder_forward.8} parent=0 // pred_region
    _
  $region21: #{graph_encoder_forward.8} parent=0 // pred_fallthru
    _
  // Predicated region
  $region22: #{graph_encoder_forward.8} parent=0 // pred_check
    _
  $region23: #{graph_encoder_forward.8} parent=0 // pred_check_branch
    %26 = sbr.rel (0) target = $region25
  $region24: #{graph_encoder_forward.8} parent=0 // pred_region
    _
  $region25: #{graph_encoder_forward.8} parent=0 // pred_fallthru
    _
  // Predicated region
  $region26: #{graph_encoder_forward.8} parent=0 // pred_check
    _
  $region27: #{graph_encoder_forward.8} parent=0 // pred_check_branch
    %28 = sbr.rel (0) target = $region29
  $region28: #{graph_encoder_forward.8} parent=0 // pred_region
    _
  $region29: #{graph_encoder_forward.8} parent=0 // pred_fallthru
    _
  // Predicated region
  $region30: #{graph_encoder_forward.8} parent=0 // pred_check
    _
  $region31: #{graph_encoder_forward.8} parent=0 // pred_check_branch
    %30 = sbr.rel (0) target = $region33
  $region32: #{graph_encoder_forward.8} parent=0 // pred_region
    _
  $region33: #{graph_encoder_forward.8} parent=0 // pred_fallthru
    _
  %v32 = vld [vmem:[%s2] sm:$0xff]
  %v33 = vld [vmem:[%s2 + $0x8] sm:$0xff]
  %v34 = vld [vmem:[%s2 + $0x10] sm:$0xff]
  %v35 = vld [vmem:[%s2 + $0x18] sm:$0xff]
  %v36 = vld [vmem:[%s2 + $0x20] sm:$0xff]
  %v37 = vld [vmem:[%s2 + $0x28] sm:$0xff]
  %v38 = vld [vmem:[%s2 + $0x30] sm:$0xff]
  %v39 = vld [vmem:[%s2 + $0x38] sm:$0xff]
  %v40 = vld [vmem:[%s3] sm:$0xff]
  %v41 = vld [vmem:[%s3 + $0x8] sm:$0xff]
  %v42 = vunpack.c.l.s8.bf16 %v40
  %v43 = vunpack.c.h.s8.bf16 %v40
  %v44 = vunpack.c.l.s8.bf16 %v41
  %v45 = vunpack.c.h.s8.bf16 %v41
  %v46 = vld [vmem:[%s0] sm:$0xff]
  %v47 = vld [vmem:[%s0 + $0x8] sm:$0xff]
  %v48 = vld [vmem:[%s0 + $0x10] sm:$0xff]
  %v49 = vld [vmem:[%s0 + $0x18] sm:$0xff]
  %v50 = vld [vmem:[%s0 + $0x20] sm:$0xff]
  %v51 = vld [vmem:[%s0 + $0x28] sm:$0xff]
  %v52 = vld [vmem:[%s0 + $0x30] sm:$0xff]
  %v53 = vld [vmem:[%s0 + $0x38] sm:$0xff]
  %v54 = vld [vmem:[%s1] sm:$0xff]
  %v55 = vld [vmem:[%s1 + $0x8] sm:$0xff]
  %v56 = vld [vmem:[%s1 + $0x10] sm:$0xff]
  %v57 = vld [vmem:[%s1 + $0x18] sm:$0xff]
  %v58 = vld [vmem:[%s1 + $0x20] sm:$0xff]
  %v59 = vld [vmem:[%s1 + $0x28] sm:$0xff]
  %v60 = vld [vmem:[%s1 + $0x30] sm:$0xff]
  %v61 = vld [vmem:[%s1 + $0x38] sm:$0xff]
  %63 = vset.pattern.permute.xlu0 0
  %64 = vperm.xlu0 %63, %v54
  %v65 = vpop.permute.xlu0 %64
  %68 = vset.pattern.permute.xlu0 0
  %69 = vperm.xlu0 %68, %v55
  %v70 = vpop.permute.xlu0 %69
  %73 = vset.pattern.permute.xlu0 0
  %74 = vperm.xlu0 %73, %v56
  %v75 = vpop.permute.xlu0 %74
  %78 = vset.pattern.permute.xlu0 0
  %79 = vperm.xlu0 %78, %v57
  %v80 = vpop.permute.xlu0 %79
  %83 = vset.pattern.permute.xlu0 0
  %84 = vperm.xlu0 %83, %v58
  %v85 = vpop.permute.xlu0 %84
  %88 = vset.pattern.permute.xlu0 0
  %89 = vperm.xlu0 %88, %v59
  %v90 = vpop.permute.xlu0 %89
  %93 = vset.pattern.permute.xlu0 0
  %94 = vperm.xlu0 %93, %v60
  %v95 = vpop.permute.xlu0 %94
  %98 = vset.pattern.permute.xlu0 0
  %99 = vperm.xlu0 %98, %v61
  %v100 = vpop.permute.xlu0 %99
  %v102 = vmul.f32 %v46, %v65
  %v103 = vmul.f32 %v47, %v70
  %v104 = vmul.f32 %v48, %v75
  %v105 = vmul.f32 %v49, %v80
  %v106 = vmul.f32 %v50, %v85
  %v107 = vmul.f32 %v51, %v90
  %v108 = vmul.f32 %v52, %v95
  %v109 = vmul.f32 %v53, %v100
  %111 = vset.pattern.permute.xlu0 0
  %112 = vperm.xlu0 %111, %v32
  %v113 = vpop.permute.xlu0 %112
  %116 = vset.pattern.permute.xlu0 0
  %117 = vperm.xlu0 %116, %v33
  %v118 = vpop.permute.xlu0 %117
  %121 = vset.pattern.permute.xlu0 0
  %122 = vperm.xlu0 %121, %v34
  %v123 = vpop.permute.xlu0 %122
  %126 = vset.pattern.permute.xlu0 0
  %127 = vperm.xlu0 %126, %v35
  %v128 = vpop.permute.xlu0 %127
  %131 = vset.pattern.permute.xlu0 0
  %132 = vperm.xlu0 %131, %v36
  %v133 = vpop.permute.xlu0 %132
  %136 = vset.pattern.permute.xlu0 0
  %137 = vperm.xlu0 %136, %v37
  %v138 = vpop.permute.xlu0 %137
  %141 = vset.pattern.permute.xlu0 0
  %142 = vperm.xlu0 %141, %v38
  %v143 = vpop.permute.xlu0 %142
  %146 = vset.pattern.permute.xlu0 0
  %147 = vperm.xlu0 %146, %v39
  %v148 = vpop.permute.xlu0 %147
  %v150 = vmul.f32 %v102, %v113
  %v151 = vmul.f32 %v103, %v118
  %v152 = vmul.f32 %v104, %v123
  %v153 = vmul.f32 %v105, %v128
  %v154 = vmul.f32 %v106, %v133
  %v155 = vmul.f32 %v107, %v138
  %v156 = vmul.f32 %v108, %v143
  %v157 = vmul.f32 %v109, %v148
  %v158 = vld [vmem:[%s4] sm:$0x1]
  %v159 = vld [vmem:[%s5] sm:$0x1]
  %vm160 = vcmask 7168
  %v161 = vsel %vm160, %v32, 0.0
  %v162 = vsel %vm160, %v33, 0.0
  %v163 = vadd.f32 %v161, %v162
  %v164 = vsel %vm160, %v34, 0.0
  %v165 = vadd.f32 %v163, %v164
  %v166 = vsel %vm160, %v35, 0.0
  %v167 = vadd.f32 %v165, %v166
  %v168 = vsel %vm160, %v36, 0.0
  %v169 = vadd.f32 %v167, %v168
  %v170 = vsel %vm160, %v37, 0.0
  %v171 = vadd.f32 %v169, %v170
  %v172 = vsel %vm160, %v38, 0.0
  %v173 = vadd.f32 %v171, %v172
  %v174 = vsel %vm160, %v39, 0.0
  %v175 = vadd.f32 %v173, %v174
  %v176 = vrot.slane %v175, 4
  %v177 = vadd.f32 %v175, %v176
  %v178 = vrot.slane %v177, 2
  %v179 = vadd.f32 %v177, %v178
  %v180 = vrot.slane %v179, 1
  %v181 = vadd.f32 %v179, %v180
  %v182 = vrcp.pop %v181
  %v183 = vmul.f32 %v150, %v113
  %v184 = vmul.f32 %v151, %v118
  %v185 = vmul.f32 %v152, %v123
  %v186 = vmul.f32 %v153, %v128
  %v187 = vmul.f32 %v154, %v133
  %v188 = vmul.f32 %v155, %v138
  %v189 = vmul.f32 %v156, %v143
  %v190 = vmul.f32 %v157, %v148
  %vm191 = vcmask 261120
  %v192 = vsel %vm191, %v183, 0.0
  %v193 = vsel %vm191, %v184, 0.0
  %v194 = vadd.f32 %v192, %v193
  %v195 = vsel %vm191, %v185, 0.0
  %v196 = vadd.f32 %v194, %v195
  %v197 = vsel %vm191, %v186, 0.0
  %v198 = vadd.f32 %v196, %v197
  %v199 = vsel %vm191, %v187, 0.0
  %v200 = vadd.f32 %v198, %v199
  %v201 = vsel %vm191, %v188, 0.0
  %v202 = vadd.f32 %v200, %v201
  %v203 = vsel %vm191, %v189, 0.0
  %v204 = vadd.f32 %v202, %v203
  %v205 = vsel %vm191, %v190, 0.0
  %v206 = vadd.f32 %v204, %v205
  %v207 = vrot.slane %v206, 4
  %v208 = vadd.f32 %v206, %v207
  %v209 = vrot.slane %v208, 2
  %v210 = vadd.f32 %v208, %v209
  %v211 = vrot.slane %v210, 1
  %v212 = vadd.f32 %v210, %v211
  %214 = vset.pattern.permute.xlu0 0
  %215 = vperm.xlu0 %214, %v182
  %v216 = vpop.permute.xlu0 %215
  %v218 = vmul.f32 %v212, %v216
  %v219 = vsub.f32 %v150, %v218
  %v220 = vsub.f32 %v151, %v218
  %v221 = vsub.f32 %v152, %v218
  %v222 = vsub.f32 %v153, %v218
  %v223 = vsub.f32 %v154, %v218
  %v224 = vsub.f32 %v155, %v218
  %v225 = vsub.f32 %v156, %v218
  %v226 = vsub.f32 %v157, %v218
  %v227 = vmul.f32 %v219, %v219
  %v228 = vmul.f32 %v220, %v220
  %v229 = vmul.f32 %v221, %v221
  %v230 = vmul.f32 %v222, %v222
  %v231 = vmul.f32 %v223, %v223
  %v232 = vmul.f32 %v224, %v224
  %v233 = vmul.f32 %v225, %v225
  %v234 = vmul.f32 %v226, %v226
  %v235 = vmul.f32 %v227, %v113
  %v236 = vmul.f32 %v228, %v118
  %v237 = vmul.f32 %v229, %v123
  %v238 = vmul.f32 %v230, %v128
  %v239 = vmul.f32 %v231, %v133
  %v240 = vmul.f32 %v232, %v138
  %v241 = vmul.f32 %v233, %v143
  %v242 = vmul.f32 %v234, %v148
  %v243 = vsel %vm191, %v235, 0.0
  %v244 = vsel %vm191, %v236, 0.0
  %v245 = vadd.f32 %v243, %v244
  %v246 = vsel %vm191, %v237, 0.0
  %v247 = vadd.f32 %v245, %v246
  %v248 = vsel %vm191, %v238, 0.0
  %v249 = vadd.f32 %v247, %v248
  %v250 = vsel %vm191, %v239, 0.0
  %v251 = vadd.f32 %v249, %v250
  %v252 = vsel %vm191, %v240, 0.0
  %v253 = vadd.f32 %v251, %v252
  %v254 = vsel %vm191, %v241, 0.0
  %v255 = vadd.f32 %v253, %v254
  %v256 = vsel %vm191, %v242, 0.0
  %v257 = vadd.f32 %v255, %v256
  %v258 = vrot.slane %v257, 4
  %v259 = vadd.f32 %v257, %v258
  %v260 = vrot.slane %v259, 2
  %v261 = vadd.f32 %v259, %v260
  %v262 = vrot.slane %v261, 1
  %v263 = vadd.f32 %v261, %v262
  %v264 = vmul.f32 %v263, %v216
  %v265 = vadd.f32 %v264, 0.0001
  %v266 = vrsqrt.pop %v265
  %v267 = vmul.f32 %v219, %v266
  %v268 = vmul.f32 %v220, %v266
  %v269 = vmul.f32 %v221, %v266
  %v270 = vmul.f32 %v222, %v266
  %v271 = vmul.f32 %v223, %v266
  %v272 = vmul.f32 %v224, %v266
  %v273 = vmul.f32 %v225, %v266
  %v274 = vmul.f32 %v226, %v266
  %v276 = vlaneseq
  %v277 = vshrl.u32 %v276, 7
  %v278 = vsub.s32 0, %v277
  %v279 = vrot.slane %v158, %v278
  %v281 = vmul.f32 %v267, %v279
  %v282 = vmul.f32 %v268, %v279
  %v283 = vmul.f32 %v269, %v279
  %v284 = vmul.f32 %v270, %v279
  %v285 = vmul.f32 %v271, %v279
  %v286 = vmul.f32 %v272, %v279
  %v287 = vmul.f32 %v273, %v279
  %v288 = vmul.f32 %v274, %v279
  %v290 = vlaneseq
  %v291 = vshrl.u32 %v290, 7
  %v292 = vsub.s32 0, %v291
  %v293 = vrot.slane %v159, %v292
  %v295 = vadd.f32 %v281, %v293
  %v296 = vadd.f32 %v282, %v293
  %v297 = vadd.f32 %v283, %v293
  %v298 = vadd.f32 %v284, %v293
  %v299 = vadd.f32 %v285, %v293
  %v300 = vadd.f32 %v286, %v293
  %v301 = vadd.f32 %v287, %v293
  %v302 = vadd.f32 %v288, %v293
  %v303 = vmul.f32 %v295, %v113
  %v304 = vmul.f32 %v296, %v118
  %v305 = vmul.f32 %v297, %v123
  %v306 = vmul.f32 %v298, %v128
  %v307 = vmul.f32 %v299, %v133
  %v308 = vmul.f32 %v300, %v138
  %v309 = vmul.f32 %v301, %v143
  %v310 = vmul.f32 %v302, %v148
  %v311 = vpack.c.bf16 %v304, %v303
  %v312 = vpack.c.bf16 %v306, %v305
  %v313 = vpack.c.bf16 %v308, %v307
  %v314 = vpack.c.bf16 %v310, %v309
  %v315 = vld [vmem:[%s6] sm:$0xf]
  %v316 = vld [vmem:[%s6 + $0x4] sm:$0xf]
  %v317 = vld [vmem:[%s6 + $0x8] sm:$0xf]
  %v318 = vld [vmem:[%s6 + $0xc] sm:$0xf]
  %v319 = vld [vmem:[%s7] sm:$0x1]
  %v321 = vlaneseq
  %v322 = vshrl.u32 %v321, 7
  %v323 = vsub.s32 0, %v322
  %v324 = vrot.slane %v319, %v323
  %v330 = vunpack.c.l.b16 %v315
  %v331 = vunpack.c.l.b16 %v316
  %v332 = vunpack.c.l.b16 %v317
  %v333 = vunpack.c.l.b16 %v318
  %v334 = vpack.c.b16 %v331, %v330
  %v335 = vpack.c.b16 %v333, %v332
  %v339 = vsel %vm191, %v311, 0
  %v342 = vsel %vm191, %v312, 0
  %v345 = vsel %vm191, %v313, 0
  %v348 = vsel %vm191, %v314, 0
  %350 = vmatprep.subr.bf16.mxu0 0
  %351 = vmatpush1.bf16.msra.mxu0 0
  %352 = vmatprep.subr.bf16.mxu0 0
  %353 = vmatpush1.bf16.msra.mxu0 0
  %354 = vmatprep.subr.bf16.mxu0 0
  %355 = vmatpush1.bf16.msra.mxu0 0
  %356 = vmatprep.subr.bf16.mxu0 0
  %357 = vmatpush1.bf16.msra.mxu0 0
  %358 = vmatprep.subr.bf16.mxu0 0
  %359 = vmatpush1.bf16.msra.mxu0 0
  %360 = vmatprep.subr.bf16.mxu0 0
  %361 = vmatpush1.bf16.msra.mxu0 0
  %362 = vmatprep.subr.bf16.mxu0 0
  %363 = vmatpush1.bf16.msra.mxu0 %v335
  %364 = vmatprep.subr.bf16.mxu0 0
  %365 = vmatpush1.bf16.msra.mxu0 %v334
  %366 = vmatprep.subr.bf16.mxu0 0
  %367 = vmatpush2.bf16.msra.mxu0 0
  %368 = vmatprep.subr.bf16.mxu0 0
  %369 = vmatpush2.bf16.msra.mxu0 0
  %370 = vmatprep.subr.bf16.mxu0 0
  %371 = vmatpush2.bf16.msra.mxu0 0
  %372 = vmatprep.subr.bf16.mxu0 0
  %373 = vmatpush2.bf16.msra.mxu0 0
  %374 = vmatprep.subr.bf16.mxu0 0
  %375 = vmatpush2.bf16.msra.mxu0 0
  %376 = vmatprep.subr.bf16.mxu0 0
  %377 = vmatpush2.bf16.msra.mxu0 0
  %378 = vmatprep.subr.bf16.mxu0 0
  %379 = vmatpush2.bf16.msra.mxu0 0
  %380 = vmatprep.subr.bf16.mxu0 0
  %381 = vmatpush2.bf16.msra.mxu0 0
  %382 = vmatprep.mubr.bf16.mxu0 0
  %383 = vmatmul.mubr.bf16.gmra.mxu0 %v339
  %v384 = vpop.f32.mrf.mxu0
  %v385 = vadd.f32 %v324, %v384
  %v386 = vpop.f32.mrf.mxu0
  %v387 = vpop.f32.mrf.mxu0
  %v388 = vadd.f32 %v324, %v387
  %v389 = vpop.f32.mrf.mxu0
  %390 = vmatprep.mubr.bf16.mxu0 0
  %391 = vmatmul.mubr.bf16.gmra.mxu0 %v342
  %v392 = vpop.f32.mrf.mxu0
  %v393 = vadd.f32 %v324, %v392
  %v394 = vpop.f32.mrf.mxu0
  %v395 = vpop.f32.mrf.mxu0
  %v396 = vadd.f32 %v324, %v395
  %v397 = vpop.f32.mrf.mxu0
  %398 = vmatprep.mubr.bf16.mxu0 0
  %399 = vmatmul.mubr.bf16.gmra.mxu0 %v345
  %v400 = vpop.f32.mrf.mxu0
  %v401 = vadd.f32 %v324, %v400
  %v402 = vpop.f32.mrf.mxu0
  %v403 = vpop.f32.mrf.mxu0
  %v404 = vadd.f32 %v324, %v403
  %v405 = vpop.f32.mrf.mxu0
  %406 = vmatprep.mubr.bf16.mxu0 0
  %407 = vmatmul.mubr.bf16.gmra.mxu0 %v348
  %v408 = vpop.f32.mrf.mxu0
  %v409 = vadd.f32 %v324, %v408
  %v410 = vpop.f32.mrf.mxu0
  %v411 = vpop.f32.mrf.mxu0
  %v412 = vadd.f32 %v324, %v411
  %v413 = vpop.f32.mrf.mxu0
  %414 = vdwg.mxu0
  %415 = vst.msk [vmem:[%s8] sm:$0xff] %vm191, %v303
  %416 = vst.msk [vmem:[%s8 + $0x8] sm:$0xff] %vm191, %v304
  %417 = vst.msk [vmem:[%s8 + $0x10] sm:$0xff] %vm191, %v305
  %418 = vst.msk [vmem:[%s8 + $0x18] sm:$0xff] %vm191, %v306
  %419 = vst.msk [vmem:[%s8 + $0x20] sm:$0xff] %vm191, %v307
  %420 = vst.msk [vmem:[%s8 + $0x28] sm:$0xff] %vm191, %v308
  %421 = vst.msk [vmem:[%s8 + $0x30] sm:$0xff] %vm191, %v309
  %422 = vst.msk [vmem:[%s8 + $0x38] sm:$0xff] %vm191, %v310
  %v423 = vpack.c.bf16 %v388, %v385
  %v424 = vpack.c.bf16 %v396, %v393
  %v425 = vpack.c.bf16 %v404, %v401
  %v426 = vpack.c.bf16 %v412, %v409
  %435 = vrot.lane.b32.xlu0 %v385, 127
  %v436 = vpop.permute.xlu0 %435
  %437 = vrot.lane.b32.xlu0 %v388, 127
  %v438 = vpop.permute.xlu0 %437
  %439 = vrot.lane.b32.xlu0 %v393, 127
  %v440 = vpop.permute.xlu0 %439
  %441 = vrot.lane.b32.xlu0 %v396, 127
  %v442 = vpop.permute.xlu0 %441
  %443 = vrot.lane.b32.xlu0 %v401, 127
  %v444 = vpop.permute.xlu0 %443
  %445 = vrot.lane.b32.xlu0 %v404, 127
  %v446 = vpop.permute.xlu0 %445
  %447 = vrot.lane.b32.xlu0 %v409, 127
  %v448 = vpop.permute.xlu0 %447
  %449 = vrot.lane.b32.xlu0 %v412, 127
  %v450 = vpop.permute.xlu0 %449
  %vm459 = vcmask 523264
  %v461 = vsel %vm459, %v42, 0
  %v464 = vsel %vm459, %v43, 0
  %v467 = vsel %vm459, %v44, 0
  %v470 = vsel %vm459, %v45, 0
  %472 = vmatprep.subr.bf16.mxu0 0
  %473 = vmatpush1.bf16.msra.mxu0 0
  %474 = vmatprep.subr.bf16.mxu0 0
  %475 = vmatpush1.bf16.msra.mxu0 0
  %476 = vmatprep.subr.bf16.mxu0 0
  %477 = vmatpush1.bf16.msra.mxu0 0
  %478 = vmatprep.subr.bf16.mxu0 0
  %479 = vmatpush1.bf16.msra.mxu0 0
  %480 = vmatprep.subr.bf16.mxu0 0
  %481 = vmatpush1.bf16.msra.mxu0 %v426
  %482 = vmatprep.subr.bf16.mxu0 0
  %483 = vmatpush1.bf16.msra.mxu0 %v425
  %484 = vmatprep.subr.bf16.mxu0 0
  %485 = vmatpush1.bf16.msra.mxu0 %v424
  %486 = vmatprep.subr.bf16.mxu0 0
  %487 = vmatpush1.bf16.msra.mxu0 %v423
  %488 = vmatprep.subr.bf16.mxu0 0
  %489 = vmatpush2.bf16.msra.mxu0 0
  %490 = vmatprep.subr.bf16.mxu0 0
  %491 = vmatpush2.bf16.msra.mxu0 0
  %492 = vmatprep.subr.bf16.mxu0 0
  %493 = vmatpush2.bf16.msra.mxu0 0
  %494 = vmatprep.subr.bf16.mxu0 0
  %495 = vmatpush2.bf16.msra.mxu0 0
  %496 = vmatprep.subr.bf16.mxu0 0
  %497 = vmatpush2.bf16.msra.mxu0 0
  %498 = vmatprep.subr.bf16.mxu0 0
  %499 = vmatpush2.bf16.msra.mxu0 0
  %500 = vmatprep.subr.bf16.mxu0 0
  %501 = vmatpush2.bf16.msra.mxu0 0
  %502 = vmatprep.subr.bf16.mxu0 0
  %503 = vmatpush2.bf16.msra.mxu0 0
  %504 = vmatprep.mubr.bf16.mxu0 0
  %505 = vmatmul.mubr.bf16.gmra.mxu0 %v461
  %v506 = vpop.f32.mrf.mxu0
  %v507 = vadd.f32 %v436, %v506
  %v508 = vpop.f32.mrf.mxu0
  %v509 = vpop.f32.mrf.mxu0
  %v510 = vadd.f32 %v438, %v509
  %v511 = vpop.f32.mrf.mxu0
  %512 = vmatprep.mubr.bf16.mxu0 0
  %513 = vmatmul.mubr.bf16.gmra.mxu0 %v464
  %v514 = vpop.f32.mrf.mxu0
  %v515 = vadd.f32 %v440, %v514
  %v516 = vpop.f32.mrf.mxu0
  %v517 = vpop.f32.mrf.mxu0
  %v518 = vadd.f32 %v442, %v517
  %v519 = vpop.f32.mrf.mxu0
  %520 = vmatprep.mubr.bf16.mxu0 0
  %521 = vmatmul.mubr.bf16.gmra.mxu0 %v467
  %v522 = vpop.f32.mrf.mxu0
  %v523 = vadd.f32 %v444, %v522
  %v524 = vpop.f32.mrf.mxu0
  %v525 = vpop.f32.mrf.mxu0
  %v526 = vadd.f32 %v446, %v525
  %v527 = vpop.f32.mrf.mxu0
  %528 = vmatprep.mubr.bf16.mxu0 0
  %529 = vmatmul.mubr.bf16.gmra.mxu0 %v470
  %v530 = vpop.f32.mrf.mxu0
  %v531 = vadd.f32 %v448, %v530
  %v532 = vpop.f32.mrf.mxu0
  %v533 = vpop.f32.mrf.mxu0
  %v534 = vadd.f32 %v450, %v533
  %v535 = vpop.f32.mrf.mxu0
  %536 = vdwg.mxu0
  %v537 = vtanh.pop %v507
  %v538 = vtanh.pop %v510
  %v539 = vtanh.pop %v515
  %v540 = vtanh.pop %v518
  %v541 = vtanh.pop %v523
  %v542 = vtanh.pop %v526
  %v543 = vtanh.pop %v531
  %v544 = vtanh.pop %v534
  %545 = vst.msk [vmem:[%s9] sm:$0xff] %vm160, %v537
  %546 = vst.msk [vmem:[%s9 + $0x8] sm:$0xff] %vm160, %v538
  %547 = vst.msk [vmem:[%s9 + $0x10] sm:$0xff] %vm160, %v539
  %548 = vst.msk [vmem:[%s9 + $0x18] sm:$0xff] %vm160, %v540
  %549 = vst.msk [vmem:[%s9 + $0x20] sm:$0xff] %vm160, %v541
  %550 = vst.msk [vmem:[%s9 + $0x28] sm:$0xff] %vm160, %v542
  %551 = vst.msk [vmem:[%s9 + $0x30] sm:$0xff] %vm160, %v543
  %552 = vst.msk [vmem:[%s9 + $0x38] sm:$0xff] %vm160, %v544
  // Predicated region
  $region34: #{graph_encoder_forward.8} parent=0 // pred_check
    _
  $region35: #{graph_encoder_forward.8} parent=0 // pred_check_branch
    %554 = sbr.rel (0) target = $region37
  $region36: #{graph_encoder_forward.8} parent=0 // pred_region
    _
  $region37: #{graph_encoder_forward.8} parent=0 // pred_fallthru
    _
  // Predicated region
  $region38: #{graph_encoder_forward.8} parent=0 // pred_check
    _
  $region39: #{graph_encoder_forward.8} parent=0 // pred_check_branch
    %556 = sbr.rel (0) target = $region41
  $region40: #{graph_encoder_forward.8} parent=0 // pred_region
    _
  $region41: #{graph_encoder_forward.8} parent=0 // pred_fallthru
    _
  // Predicated region
  $region42: #{graph_encoder_forward.8} parent=0 // pred_check
    _
  $region43: #{graph_encoder_forward.8} parent=0 // pred_check_branch
    %558 = sbr.rel (0) target = $region45
  $region44: #{graph_encoder_forward.8} parent=0 // pred_region
    _
  $region45: #{graph_encoder_forward.8} parent=0 // pred_fallthru
    _
  // Predicated region
  $region46: #{graph_encoder_forward.8} parent=0 // pred_check
    _
  $region47: #{graph_encoder_forward.8} parent=0 // pred_check_branch
    %560 = sbr.rel (0) target = $region49
  $region48: #{graph_encoder_forward.8} parent=0 // pred_region
    _
  $region49: #{graph_encoder_forward.8} parent=0 // pred_fallthru
    _

// kernel: graph_encoder_forward.7
$region0: #{graph_encoder_forward.7}
  #allocation0 [shape = 'u32[]', space=smem, size = 0x4, offset = 0x4, fixed_abs, tag = 'smem constant byte address 0x4 - core index']
  #allocation1 [shape = 'u32[144,128]{1,0:T(1,128)}', space=vmem, size = 0x12000, scoped, tag = 'internal scratch']
  %s0 = inlined_call_operand.vmem [shape: f32[64,32], index: 0, kind: input, shape index: {}]
  %s1 = inlined_call_operand.vmem [shape: f32[64,1], index: 1, kind: input, shape index: {}]
  %s2 = inlined_call_operand.vmem [shape: f32[64,1], index: 2, kind: input, shape index: {}]
  %s3 = inlined_call_operand.vmem [shape: s8[64,64], index: 3, kind: input, shape index: {}]
  %s4 = inlined_call_operand.vmem [shape: f32[1,32], index: 4, kind: input, shape index: {}]
  %s5 = inlined_call_operand.vmem [shape: f32[1,32], index: 5, kind: input, shape index: {}]
  %s6 = inlined_call_operand.vmem [shape: bf16[32,34], index: 6, kind: input, shape index: {}]
  %s7 = inlined_call_operand.vmem [shape: f32[1,34], index: 7, kind: input, shape index: {}]
  %s8 = inlined_call_operand.vmem [shape: f32[64,32], index: 8, kind: output, shape index: {0}]
  %s9 = inlined_call_operand.vmem [shape: f32[64,1], index: 9, kind: output, shape index: {1}]
  %10 = xla_tuple %s8, %s9
  %s11 = sld [smem:[#allocation0]]
  $region50: #{graph_encoder_forward.7} parent=0
    _
  %s13 = ssub.s32 1, %s11
  %s14 = scalar_select 0, %s13, %s11
  // Predicated region
  $region2: #{graph_encoder_forward.7} parent=0 // pred_check
    _
  $region3: #{graph_encoder_forward.7} parent=0 // pred_check_branch
    %16 = sbr.rel (0) target = $region5
  $region4: #{graph_encoder_forward.7} parent=0 // pred_region
    _
  $region5: #{graph_encoder_forward.7} parent=0 // pred_fallthru
    _
  // Predicated region
  $region6: #{graph_encoder_forward.7} parent=0 // pred_check
    _
  $region7: #{graph_encoder_forward.7} parent=0 // pred_check_branch
    %18 = sbr.rel (0) target = $region9
  $region8: #{graph_encoder_forward.7} parent=0 // pred_region
    _
  $region9: #{graph_encoder_forward.7} parent=0 // pred_fallthru
    _
  // Predicated region
  $region10: #{graph_encoder_forward.7} parent=0 // pred_check
    _
  $region11: #{graph_encoder_forward.7} parent=0 // pred_check_branch
    %20 = sbr.rel (0) target = $region13
  $region12: #{graph_encoder_forward.7} parent=0 // pred_region
    _
  $region13: #{graph_encoder_forward.7} parent=0 // pred_fallthru
    _
  // Predicated region
  $region14: #{graph_encoder_forward.7} parent=0 // pred_check
    _
  $region15: #{graph_encoder_forward.7} parent=0 // pred_check_branch
    %22 = sbr.rel (0) target = $region17
  $region16: #{graph_encoder_forward.7} parent=0 // pred_region
    _
  $region17: #{graph_encoder_forward.7} parent=0 // pred_fallthru
    _
  // Predicated region
  $region18: #{graph_encoder_forward.7} parent=0 // pred_check
    _
  $region19: #{graph_encoder_forward.7} parent=0 // pred_check_branch
    %24 = sbr.rel (0) target = $region21
  $region20: #{graph_encoder_forward.7} parent=0 // pred_region
    _
  $region21: #{graph_encoder_forward.7} parent=0 // pred_fallthru
    _
  // Predicated region
  $region22: #{graph_encoder_forward.7} parent=0 // pred_check
    _
  $region23: #{graph_encoder_forward.7} parent=0 // pred_check_branch
    %26 = sbr.rel (0) target = $region25
  $region24: #{graph_encoder_forward.7} parent=0 // pred_region
    _
  $region25: #{graph_encoder_forward.7} parent=0 // pred_fallthru
    _
  // Predicated region
  $region26: #{graph_encoder_forward.7} parent=0 // pred_check
    _
  $region27: #{graph_encoder_forward.7} parent=0 // pred_check_branch
    %28 = sbr.rel (0) target = $region29
  $region28: #{graph_encoder_forward.7} parent=0 // pred_region
    _
  $region29: #{graph_encoder_forward.7} parent=0 // pred_fallthru
    _
  // Predicated region
  $region30: #{graph_encoder_forward.7} parent=0 // pred_check
    _
  $region31: #{graph_encoder_forward.7} parent=0 // pred_check_branch
    %30 = sbr.rel (0) target = $region33
  $region32: #{graph_encoder_forward.7} parent=0 // pred_region
    _
  $region33: #{graph_encoder_forward.7} parent=0 // pred_fallthru
    _
  %v32 = vld [vmem:[%s2] sm:$0xff]
  %v33 = vld [vmem:[%s2 + $0x8] sm:$0xff]
  %v34 = vld [vmem:[%s2 + $0x10] sm:$0xff]
  %v35 = vld [vmem:[%s2 + $0x18] sm:$0xff]
  %v36 = vld [vmem:[%s2 + $0x20] sm:$0xff]
  %v37 = vld [vmem:[%s2 + $0x28] sm:$0xff]
  %v38 = vld [vmem:[%s2 + $0x30] sm:$0xff]
  %v39 = vld [vmem:[%s2 + $0x38] sm:$0xff]
  %v40 = vld [vmem:[%s3] sm:$0xff]
  %v41 = vld [vmem:[%s3 + $0x8] sm:$0xff]
  %v42 = vunpack.c.l.s8.bf16 %v40
  %v43 = vunpack.c.h.s8.bf16 %v40
  %v44 = vunpack.c.l.s8.bf16 %v41
  %v45 = vunpack.c.h.s8.bf16 %v41
  %v46 = vld [vmem:[%s0] sm:$0xff]
  %v47 = vld [vmem:[%s0 + $0x8] sm:$0xff]
  %v48 = vld [vmem:[%s0 + $0x10] sm:$0xff]
  %v49 = vld [vmem:[%s0 + $0x18] sm:$0xff]
  %v50 = vld [vmem:[%s0 + $0x20] sm:$0xff]
  %v51 = vld [vmem:[%s0 + $0x28] sm:$0xff]
  %v52 = vld [vmem:[%s0 + $0x30] sm:$0xff]
  %v53 = vld [vmem:[%s0 + $0x38] sm:$0xff]
  %v54 = vld [vmem:[%s1] sm:$0xff]
  %v55 = vld [vmem:[%s1 + $0x8] sm:$0xff]
  %v56 = vld [vmem:[%s1 + $0x10] sm:$0xff]
  %v57 = vld [vmem:[%s1 + $0x18] sm:$0xff]
  %v58 = vld [vmem:[%s1 + $0x20] sm:$0xff]
  %v59 = vld [vmem:[%s1 + $0x28] sm:$0xff]
  %v60 = vld [vmem:[%s1 + $0x30] sm:$0xff]
  %v61 = vld [vmem:[%s1 + $0x38] sm:$0xff]
  %63 = vset.pattern.permute.xlu0 0
  %64 = vperm.xlu0 %63, %v54
  %v65 = vpop.permute.xlu0 %64
  %68 = vset.pattern.permute.xlu0 0
  %69 = vperm.xlu0 %68, %v55
  %v70 = vpop.permute.xlu0 %69
  %73 = vset.pattern.permute.xlu0 0
  %74 = vperm.xlu0 %73, %v56
  %v75 = vpop.permute.xlu0 %74
  %78 = vset.pattern.permute.xlu0 0
  %79 = vperm.xlu0 %78, %v57
  %v80 = vpop.permute.xlu0 %79
  %83 = vset.pattern.permute.xlu0 0
  %84 = vperm.xlu0 %83, %v58
  %v85 = vpop.permute.xlu0 %84
  %88 = vset.pattern.permute.xlu0 0
  %89 = vperm.xlu0 %88, %v59
  %v90 = vpop.permute.xlu0 %89
  %93 = vset.pattern.permute.xlu0 0
  %94 = vperm.xlu0 %93, %v60
  %v95 = vpop.permute.xlu0 %94
  %98 = vset.pattern.permute.xlu0 0
  %99 = vperm.xlu0 %98, %v61
  %v100 = vpop.permute.xlu0 %99
  %v102 = vmul.f32 %v46, %v65
  %v103 = vmul.f32 %v47, %v70
  %v104 = vmul.f32 %v48, %v75
  %v105 = vmul.f32 %v49, %v80
  %v106 = vmul.f32 %v50, %v85
  %v107 = vmul.f32 %v51, %v90
  %v108 = vmul.f32 %v52, %v95
  %v109 = vmul.f32 %v53, %v100
  %111 = vset.pattern.permute.xlu0 0
  %112 = vperm.xlu0 %111, %v32
  %v113 = vpop.permute.xlu0 %112
  %116 = vset.pattern.permute.xlu0 0
  %117 = vperm.xlu0 %116, %v33
  %v118 = vpop.permute.xlu0 %117
  %121 = vset.pattern.permute.xlu0 0
  %122 = vperm.xlu0 %121, %v34
  %v123 = vpop.permute.xlu0 %122
  %126 = vset.pattern.permute.xlu0 0
  %127 = vperm.xlu0 %126, %v35
  %v128 = vpop.permute.xlu0 %127
  %131 = vset.pattern.permute.xlu0 0
  %132 = vperm.xlu0 %131, %v36
  %v133 = vpop.permute.xlu0 %132
  %136 = vset.pattern.permute.xlu0 0
  %137 = vperm.xlu0 %136, %v37
  %v138 = vpop.permute.xlu0 %137
  %141 = vset.pattern.permute.xlu0 0
  %142 = vperm.xlu0 %141, %v38
  %v143 = vpop.permute.xlu0 %142
  %146 = vset.pattern.permute.xlu0 0
  %147 = vperm.xlu0 %146, %v39
  %v148 = vpop.permute.xlu0 %147
  %v150 = vmul.f32 %v102, %v113
  %v151 = vmul.f32 %v103, %v118
  %v152 = vmul.f32 %v104, %v123
  %v153 = vmul.f32 %v105, %v128
  %v154 = vmul.f32 %v106, %v133
  %v155 = vmul.f32 %v107, %v138
  %v156 = vmul.f32 %v108, %v143
  %v157 = vmul.f32 %v109, %v148
  %v158 = vld [vmem:[%s4] sm:$0x1]
  %v159 = vld [vmem:[%s5] sm:$0x1]
  %vm160 = vcmask 7168
  %v161 = vsel %vm160, %v32, 0.0
  %v162 = vsel %vm160, %v33, 0.0
  %v163 = vadd.f32 %v161, %v162
  %v164 = vsel %vm160, %v34, 0.0
  %v165 = vadd.f32 %v163, %v164
  %v166 = vsel %vm160, %v35, 0.0
  %v167 = vadd.f32 %v165, %v166
  %v168 = vsel %vm160, %v36, 0.0
  %v169 = vadd.f32 %v167, %v168
  %v170 = vsel %vm160, %v37, 0.0
  %v171 = vadd.f32 %v169, %v170
  %v172 = vsel %vm160, %v38, 0.0
  %v173 = vadd.f32 %v171, %v172
  %v174 = vsel %vm160, %v39, 0.0
  %v175 = vadd.f32 %v173, %v174
  %v176 = vrot.slane %v175, 4
  %v177 = vadd.f32 %v175, %v176
  %v178 = vrot.slane %v177, 2
  %v179 = vadd.f32 %v177, %v178
  %v180 = vrot.slane %v179, 1
  %v181 = vadd.f32 %v179, %v180
  %v182 = vrcp.pop %v181
  %v183 = vmul.f32 %v150, %v113
  %v184 = vmul.f32 %v151, %v118
  %v185 = vmul.f32 %v152, %v123
  %v186 = vmul.f32 %v153, %v128
  %v187 = vmul.f32 %v154, %v133
  %v188 = vmul.f32 %v155, %v138
  %v189 = vmul.f32 %v156, %v143
  %v190 = vmul.f32 %v157, %v148
  %vm191 = vcmask 261120
  %v192 = vsel %vm191, %v183, 0.0
  %v193 = vsel %vm191, %v184, 0.0
  %v194 = vadd.f32 %v192, %v193
  %v195 = vsel %vm191, %v185, 0.0
  %v196 = vadd.f32 %v194, %v195
  %v197 = vsel %vm191, %v186, 0.0
  %v198 = vadd.f32 %v196, %v197
  %v199 = vsel %vm191, %v187, 0.0
  %v200 = vadd.f32 %v198, %v199
  %v201 = vsel %vm191, %v188, 0.0
  %v202 = vadd.f32 %v200, %v201
  %v203 = vsel %vm191, %v189, 0.0
  %v204 = vadd.f32 %v202, %v203
  %v205 = vsel %vm191, %v190, 0.0
  %v206 = vadd.f32 %v204, %v205
  %v207 = vrot.slane %v206, 4
  %v208 = vadd.f32 %v206, %v207
  %v209 = vrot.slane %v208, 2
  %v210 = vadd.f32 %v208, %v209
  %v211 = vrot.slane %v210, 1
  %v212 = vadd.f32 %v210, %v211
  %214 = vset.pattern.permute.xlu0 0
  %215 = vperm.xlu0 %214, %v182
  %v216 = vpop.permute.xlu0 %215
  %v218 = vmul.f32 %v212, %v216
  %v219 = vsub.f32 %v150, %v218
  %v220 = vsub.f32 %v151, %v218
  %v221 = vsub.f32 %v152, %v218
  %v222 = vsub.f32 %v153, %v218
  %v223 = vsub.f32 %v154, %v218
  %v224 = vsub.f32 %v155, %v218
  %v225 = vsub.f32 %v156, %v218
  %v226 = vsub.f32 %v157, %v218
  %v227 = vmul.f32 %v219, %v219
  %v228 = vmul.f32 %v220, %v220
  %v229 = vmul.f32 %v221, %v221
  %v230 = vmul.f32 %v222, %v222
  %v231 = vmul.f32 %v223, %v223
  %v232 = vmul.f32 %v224, %v224
  %v233 = vmul.f32 %v225, %v225
  %v234 = vmul.f32 %v226, %v226
  %v235 = vmul.f32 %v227, %v113
  %v236 = vmul.f32 %v228, %v118
  %v237 = vmul.f32 %v229, %v123
  %v238 = vmul.f32 %v230, %v128
  %v239 = vmul.f32 %v231, %v133
  %v240 = vmul.f32 %v232, %v138
  %v241 = vmul.f32 %v233, %v143
  %v242 = vmul.f32 %v234, %v148
  %v243 = vsel %vm191, %v235, 0.0
  %v244 = vsel %vm191, %v236, 0.0
  %v245 = vadd.f32 %v243, %v244
  %v246 = vsel %vm191, %v237, 0.0
  %v247 = vadd.f32 %v245, %v246
  %v248 = vsel %vm191, %v238, 0.0
  %v249 = vadd.f32 %v247, %v248
  %v250 = vsel %vm191, %v239, 0.0
  %v251 = vadd.f32 %v249, %v250
  %v252 = vsel %vm191, %v240, 0.0
  %v253 = vadd.f32 %v251, %v252
  %v254 = vsel %vm191, %v241, 0.0
  %v255 = vadd.f32 %v253, %v254
  %v256 = vsel %vm191, %v242, 0.0
  %v257 = vadd.f32 %v255, %v256
  %v258 = vrot.slane %v257, 4
  %v259 = vadd.f32 %v257, %v258
  %v260 = vrot.slane %v259, 2
  %v261 = vadd.f32 %v259, %v260
  %v262 = vrot.slane %v261, 1
  %v263 = vadd.f32 %v261, %v262
  %v264 = vmul.f32 %v263, %v216
  %v265 = vadd.f32 %v264, 0.0001
  %v266 = vrsqrt.pop %v265
  %v267 = vmul.f32 %v219, %v266
  %v268 = vmul.f32 %v220, %v266
  %v269 = vmul.f32 %v221, %v266
  %v270 = vmul.f32 %v222, %v266
  %v271 = vmul.f32 %v223, %v266
  %v272 = vmul.f32 %v224, %v266
  %v273 = vmul.f32 %v225, %v266
  %v274 = vmul.f32 %v226, %v266
  %v276 = vlaneseq
  %v277 = vshrl.u32 %v276, 7
  %v278 = vsub.s32 0, %v277
  %v279 = vrot.slane %v158, %v278
  %v281 = vmul.f32 %v267, %v279
  %v282 = vmul.f32 %v268, %v279
  %v283 = vmul.f32 %v269, %v279
  %v284 = vmul.f32 %v270, %v279
  %v285 = vmul.f32 %v271, %v279
  %v286 = vmul.f32 %v272, %v279
  %v287 = vmul.f32 %v273, %v279
  %v288 = vmul.f32 %v274, %v279
  %v290 = vlaneseq
  %v291 = vshrl.u32 %v290, 7
  %v292 = vsub.s32 0, %v291
  %v293 = vrot.slane %v159, %v292
  %v295 = vadd.f32 %v281, %v293
  %v296 = vadd.f32 %v282, %v293
  %v297 = vadd.f32 %v283, %v293
  %v298 = vadd.f32 %v284, %v293
  %v299 = vadd.f32 %v285, %v293
  %v300 = vadd.f32 %v286, %v293
  %v301 = vadd.f32 %v287, %v293
  %v302 = vadd.f32 %v288, %v293
  %v303 = vmul.f32 %v295, %v113
  %v304 = vmul.f32 %v296, %v118
  %v305 = vmul.f32 %v297, %v123
  %v306 = vmul.f32 %v298, %v128
  %v307 = vmul.f32 %v299, %v133
  %v308 = vmul.f32 %v300, %v138
  %v309 = vmul.f32 %v301, %v143
  %v310 = vmul.f32 %v302, %v148
  %v311 = vld [vmem:[%s6] sm:$0xf]
  %v312 = vld [vmem:[%s6 + $0x4] sm:$0xf]
  %v313 = vld [vmem:[%s6 + $0x8] sm:$0xf]
  %v314 = vld [vmem:[%s6 + $0xc] sm:$0xf]
  %v315 = vld [vmem:[%s7] sm:$0x1]
  %v316 = vpack.c.bf16 %v304, %v303
  %v317 = vpack.c.bf16 %v306, %v305
  %v318 = vpack.c.bf16 %v308, %v307
  %v319 = vpack.c.bf16 %v310, %v309
  %vm320 = vcmask 523264
  %v322 = vsel %vm320, %v42, 0
  %v325 = vsel %vm320, %v43, 0
  %v328 = vsel %vm320, %v44, 0
  %v331 = vsel %vm320, %v45, 0
  %333 = vmatprep.subr.bf16.mxu0 0
  %334 = vmatpush1.bf16.msra.mxu0 0
  %335 = vmatprep.subr.bf16.mxu0 0
  %336 = vmatpush1.bf16.msra.mxu0 0
  %337 = vmatprep.subr.bf16.mxu0 0
  %338 = vmatpush1.bf16.msra.mxu0 0
  %339 = vmatprep.subr.bf16.mxu0 0
  %340 = vmatpush1.bf16.msra.mxu0 0
  %341 = vmatprep.subr.bf16.mxu0 0
  %342 = vmatpush1.bf16.msra.mxu0 %v319
  %343 = vmatprep.subr.bf16.mxu0 0
  %344 = vmatpush1.bf16.msra.mxu0 %v318
  %345 = vmatprep.subr.bf16.mxu0 0
  %346 = vmatpush1.bf16.msra.mxu0 %v317
  %347 = vmatprep.subr.bf16.mxu0 0
  %348 = vmatpush1.bf16.msra.mxu0 %v316
  %349 = vmatprep.subr.bf16.mxu0 0
  %350 = vmatpush2.bf16.msra.mxu0 0
  %351 = vmatprep.subr.bf16.mxu0 0
  %352 = vmatpush2.bf16.msra.mxu0 0
  %353 = vmatprep.subr.bf16.mxu0 0
  %354 = vmatpush2.bf16.msra.mxu0 0
  %355 = vmatprep.subr.bf16.mxu0 0
  %356 = vmatpush2.bf16.msra.mxu0 0
  %357 = vmatprep.subr.bf16.mxu0 0
  %358 = vmatpush2.bf16.msra.mxu0 0
  %359 = vmatprep.subr.bf16.mxu0 0
  %360 = vmatpush2.bf16.msra.mxu0 0
  %361 = vmatprep.subr.bf16.mxu0 0
  %362 = vmatpush2.bf16.msra.mxu0 0
  %363 = vmatprep.subr.bf16.mxu0 0
  %364 = vmatpush2.bf16.msra.mxu0 0
  %365 = vmatprep.mubr.bf16.mxu0 0
  %366 = vmatmul.mubr.bf16.gmra.mxu0 %v322
  %v367 = vpop.f32.mrf.mxu0
  %v368 = vadd.f32 0.0, %v367
  %v369 = vpop.f32.mrf.mxu0
  %v370 = vpop.f32.mrf.mxu0
  %v371 = vadd.f32 0.0, %v370
  %v372 = vpop.f32.mrf.mxu0
  %373 = vmatprep.mubr.bf16.mxu0 0
  %374 = vmatmul.mubr.bf16.gmra.mxu0 %v325
  %v375 = vpop.f32.mrf.mxu0
  %v376 = vadd.f32 0.0, %v375
  %v377 = vpop.f32.mrf.mxu0
  %v378 = vpop.f32.mrf.mxu0
  %v379 = vadd.f32 0.0, %v378
  %v380 = vpop.f32.mrf.mxu0
  %381 = vmatprep.mubr.bf16.mxu0 0
  %382 = vmatmul.mubr.bf16.gmra.mxu0 %v328
  %v383 = vpop.f32.mrf.mxu0
  %v384 = vadd.f32 0.0, %v383
  %v385 = vpop.f32.mrf.mxu0
  %v386 = vpop.f32.mrf.mxu0
  %v387 = vadd.f32 0.0, %v386
  %v388 = vpop.f32.mrf.mxu0
  %389 = vmatprep.mubr.bf16.mxu0 0
  %390 = vmatmul.mubr.bf16.gmra.mxu0 %v331
  %v391 = vpop.f32.mrf.mxu0
  %v392 = vadd.f32 0.0, %v391
  %v393 = vpop.f32.mrf.mxu0
  %v394 = vpop.f32.mrf.mxu0
  %v395 = vadd.f32 0.0, %v394
  %v396 = vpop.f32.mrf.mxu0
  %397 = vdwg.mxu0
  %v398 = vmul.f32 %v303, 4.0
  %v399 = vmul.f32 %v304, 4.0
  %v400 = vmul.f32 %v305, 4.0
  %v401 = vmul.f32 %v306, 4.0
  %v402 = vmul.f32 %v307, 4.0
  %v403 = vmul.f32 %v308, 4.0
  %v404 = vmul.f32 %v309, 4.0
  %v405 = vmul.f32 %v310, 4.0
  %v406 = vadd.f32 %v398, %v368
  %v407 = vadd.f32 %v399, %v371
  %v408 = vadd.f32 %v400, %v376
  %v409 = vadd.f32 %v401, %v379
  %v410 = vadd.f32 %v402, %v384
  %v411 = vadd.f32 %v403, %v387
  %v412 = vadd.f32 %v404, %v392
  %v413 = vadd.f32 %v405, %v395
  %v414 = vpack.c.bf16 %v407, %v406
  %v415 = vpack.c.bf16 %v409, %v408
  %v416 = vpack.c.bf16 %v411, %v410
  %v417 = vpack.c.bf16 %v413, %v412
  %v419 = vlaneseq
  %v420 = vshrl.u32 %v419, 7
  %v421 = vsub.s32 0, %v420
  %v422 = vrot.slane %v315, %v421
  %v428 = vunpack.c.l.b16 %v311
  %v429 = vunpack.c.l.b16 %v312
  %v430 = vunpack.c.l.b16 %v313
  %v431 = vunpack.c.l.b16 %v314
  %v432 = vpack.c.b16 %v429, %v428
  %v433 = vpack.c.b16 %v431, %v430
  %v437 = vsel %vm191, %v414, 0
  %v440 = vsel %vm191, %v415, 0
  %v443 = vsel %vm191, %v416, 0
  %v446 = vsel %vm191, %v417, 0
  %448 = vmatprep.subr.bf16.mxu0 0
  %449 = vmatpush1.bf16.msra.mxu0 0
  %450 = vmatprep.subr.bf16.mxu0 0
  %451 = vmatpush1.bf16.msra.mxu0 0
  %452 = vmatprep.subr.bf16.mxu0 0
  %453 = vmatpush1.bf16.msra.mxu0 0
  %454 = vmatprep.subr.bf16.mxu0 0
  %455 = vmatpush1.bf16.msra.mxu0 0
  %456 = vmatprep.subr.bf16.mxu0 0
  %457 = vmatpush1.bf16.msra.mxu0 0
  %458 = vmatprep.subr.bf16.mxu0 0
  %459 = vmatpush1.bf16.msra.mxu0 0
  %460 = vmatprep.subr.bf16.mxu0 0
  %461 = vmatpush1.bf16.msra.mxu0 %v433
  %462 = vmatprep.subr.bf16.mxu0 0
  %463 = vmatpush1.bf16.msra.mxu0 %v432
  %464 = vmatprep.subr.bf16.mxu0 0
  %465 = vmatpush2.bf16.msra.mxu0 0
  %466 = vmatprep.subr.bf16.mxu0 0
  %467 = vmatpush2.bf16.msra.mxu0 0
  %468 = vmatprep.subr.bf16.mxu0 0
  %469 = vmatpush2.bf16.msra.mxu0 0
  %470 = vmatprep.subr.bf16.mxu0 0
  %471 = vmatpush2.bf16.msra.mxu0 0
  %472 = vmatprep.subr.bf16.mxu0 0
  %473 = vmatpush2.bf16.msra.mxu0 0
  %474 = vmatprep.subr.bf16.mxu0 0
  %475 = vmatpush2.bf16.msra.mxu0 0
  %476 = vmatprep.subr.bf16.mxu0 0
  %477 = vmatpush2.bf16.msra.mxu0 0
  %478 = vmatprep.subr.bf16.mxu0 0
  %479 = vmatpush2.bf16.msra.mxu0 0
  %480 = vmatprep.mubr.bf16.mxu0 0
  %481 = vmatmul.mubr.bf16.gmra.mxu0 %v437
  %v482 = vpop.f32.mrf.mxu0
  %v483 = vadd.f32 %v422, %v482
  %v484 = vpop.f32.mrf.mxu0
  %v485 = vpop.f32.mrf.mxu0
  %v486 = vadd.f32 %v422, %v485
  %v487 = vpop.f32.mrf.mxu0
  %488 = vmatprep.mubr.bf16.mxu0 0
  %489 = vmatmul.mubr.bf16.gmra.mxu0 %v440
  %v490 = vpop.f32.mrf.mxu0
  %v491 = vadd.f32 %v422, %v490
  %v492 = vpop.f32.mrf.mxu0
  %v493 = vpop.f32.mrf.mxu0
  %v494 = vadd.f32 %v422, %v493
  %v495 = vpop.f32.mrf.mxu0
  %496 = vmatprep.mubr.bf16.mxu0 0
  %497 = vmatmul.mubr.bf16.gmra.mxu0 %v443
  %v498 = vpop.f32.mrf.mxu0
  %v499 = vadd.f32 %v422, %v498
  %v500 = vpop.f32.mrf.mxu0
  %v501 = vpop.f32.mrf.mxu0
  %v502 = vadd.f32 %v422, %v501
  %v503 = vpop.f32.mrf.mxu0
  %504 = vmatprep.mubr.bf16.mxu0 0
  %505 = vmatmul.mubr.bf16.gmra.mxu0 %v446
  %v506 = vpop.f32.mrf.mxu0
  %v507 = vadd.f32 %v422, %v506
  %v508 = vpop.f32.mrf.mxu0
  %v509 = vpop.f32.mrf.mxu0
  %v510 = vadd.f32 %v422, %v509
  %v511 = vpop.f32.mrf.mxu0
  %512 = vdwg.mxu0
  %v513 = vmul.f32 %v483, %v113
  %v514 = vmul.f32 %v486, %v118
  %v515 = vmul.f32 %v491, %v123
  %v516 = vmul.f32 %v494, %v128
  %v517 = vmul.f32 %v499, %v133
  %v518 = vmul.f32 %v502, %v138
  %v519 = vmul.f32 %v507, %v143
  %v520 = vmul.f32 %v510, %v148
  %521 = vst.msk [vmem:[%s8] sm:$0xff] %vm191, %v513
  %522 = vst.msk [vmem:[%s8 + $0x8] sm:$0xff] %vm191, %v514
  %523 = vst.msk [vmem:[%s8 + $0x10] sm:$0xff] %vm191, %v515
  %524 = vst.msk [vmem:[%s8 + $0x18] sm:$0xff] %vm191, %v516
  %525 = vst.msk [vmem:[%s8 + $0x20] sm:$0xff] %vm191, %v517
  %526 = vst.msk [vmem:[%s8 + $0x28] sm:$0xff] %vm191, %v518
  %527 = vst.msk [vmem:[%s8 + $0x30] sm:$0xff] %vm191, %v519
  %528 = vst.msk [vmem:[%s8 + $0x38] sm:$0xff] %vm191, %v520
  %v529 = vpack.c.bf16 %v514, %v513
  %v530 = vpack.c.bf16 %v516, %v515
  %v531 = vpack.c.bf16 %v518, %v517
  %v532 = vpack.c.bf16 %v520, %v519
  %537 = vrot.lane.b32.xlu0 %v529, 96
  %v538 = vpop.permute.xlu0 %537
  %539 = vrot.lane.b32.xlu0 %v530, 96
  %v540 = vpop.permute.xlu0 %539
  %541 = vrot.lane.b32.xlu0 %v531, 96
  %v542 = vpop.permute.xlu0 %541
  %543 = vrot.lane.b32.xlu0 %v532, 96
  %v544 = vpop.permute.xlu0 %543
  %557 = vrot.lane.b32.xlu0 %v513, 95
  %v558 = vpop.permute.xlu0 %557
  %559 = vrot.lane.b32.xlu0 %v514, 95
  %v560 = vpop.permute.xlu0 %559
  %561 = vrot.lane.b32.xlu0 %v515, 95
  %v562 = vpop.permute.xlu0 %561
  %563 = vrot.lane.b32.xlu0 %v516, 95
  %v564 = vpop.permute.xlu0 %563
  %565 = vrot.lane.b32.xlu0 %v517, 95
  %v566 = vpop.permute.xlu0 %565
  %567 = vrot.lane.b32.xlu0 %v518, 95
  %v568 = vpop.permute.xlu0 %567
  %569 = vrot.lane.b32.xlu0 %v519, 95
  %v570 = vpop.permute.xlu0 %569
  %571 = vrot.lane.b32.xlu0 %v520, 95
  %v572 = vpop.permute.xlu0 %571
  %581 = vmatprep.subr.bf16.mxu0 0
  %582 = vmatpush1.bf16.msra.mxu0 0
  %583 = vmatprep.subr.bf16.mxu0 0
  %584 = vmatpush1.bf16.msra.mxu0 0
  %585 = vmatprep.subr.bf16.mxu0 0
  %586 = vmatpush1.bf16.msra.mxu0 0
  %587 = vmatprep.subr.bf16.mxu0 0
  %588 = vmatpush1.bf16.msra.mxu0 0
  %589 = vmatprep.subr.bf16.mxu0 0
  %590 = vmatpush1.bf16.msra.mxu0 %v544
  %591 = vmatprep.subr.bf16.mxu0 0
  %592 = vmatpush1.bf16.msra.mxu0 %v542
  %593 = vmatprep.subr.bf16.mxu0 0
  %594 = vmatpush1.bf16.msra.mxu0 %v540
  %595 = vmatprep.subr.bf16.mxu0 0
  %596 = vmatpush1.bf16.msra.mxu0 %v538
  %597 = vmatprep.subr.bf16.mxu0 0
  %598 = vmatpush2.bf16.msra.mxu0 0
  %599 = vmatprep.subr.bf16.mxu0 0
  %600 = vmatpush2.bf16.msra.mxu0 0
  %601 = vmatprep.subr.bf16.mxu0 0
  %602 = vmatpush2.bf16.msra.mxu0 0
  %603 = vmatprep.subr.bf16.mxu0 0
  %604 = vmatpush2.bf16.msra.mxu0 0
  %605 = vmatprep.subr.bf16.mxu0 0
  %606 = vmatpush2.bf16.msra.mxu0 0
  %607 = vmatprep.subr.bf16.mxu0 0
  %608 = vmatpush2.bf16.msra.mxu0 0
  %609 = vmatprep.subr.bf16.mxu0 0
  %610 = vmatpush2.bf16.msra.mxu0 0
  %611 = vmatprep.subr.bf16.mxu0 0
  %612 = vmatpush2.bf16.msra.mxu0 0
  %613 = vmatprep.mubr.bf16.mxu0 0
  %614 = vmatmul.mubr.bf16.gmra.mxu0 %v322
  %v615 = vpop.f32.mrf.mxu0
  %v616 = vadd.f32 %v558, %v615
  %v617 = vpop.f32.mrf.mxu0
  %v618 = vpop.f32.mrf.mxu0
  %v619 = vadd.f32 %v560, %v618
  %v620 = vpop.f32.mrf.mxu0
  %621 = vmatprep.mubr.bf16.mxu0 0
  %622 = vmatmul.mubr.bf16.gmra.mxu0 %v325
  %v623 = vpop.f32.mrf.mxu0
  %v624 = vadd.f32 %v562, %v623
  %v625 = vpop.f32.mrf.mxu0
  %v626 = vpop.f32.mrf.mxu0
  %v627 = vadd.f32 %v564, %v626
  %v628 = vpop.f32.mrf.mxu0
  %629 = vmatprep.mubr.bf16.mxu0 0
  %630 = vmatmul.mubr.bf16.gmra.mxu0 %v328
  %v631 = vpop.f32.mrf.mxu0
  %v632 = vadd.f32 %v566, %v631
  %v633 = vpop.f32.mrf.mxu0
  %v634 = vpop.f32.mrf.mxu0
  %v635 = vadd.f32 %v568, %v634
  %v636 = vpop.f32.mrf.mxu0
  %637 = vmatprep.mubr.bf16.mxu0 0
  %638 = vmatmul.mubr.bf16.gmra.mxu0 %v331
  %v639 = vpop.f32.mrf.mxu0
  %v640 = vadd.f32 %v570, %v639
  %v641 = vpop.f32.mrf.mxu0
  %v642 = vpop.f32.mrf.mxu0
  %v643 = vadd.f32 %v572, %v642
  %v644 = vpop.f32.mrf.mxu0
  %645 = vdwg.mxu0
  %v646 = vtanh.pop %v616
  %v647 = vtanh.pop %v619
  %v648 = vtanh.pop %v624
  %v649 = vtanh.pop %v627
  %v650 = vtanh.pop %v632
  %v651 = vtanh.pop %v635
  %v652 = vtanh.pop %v640
  %v653 = vtanh.pop %v643
  %654 = vst.msk [vmem:[%s9] sm:$0xff] %vm160, %v646
  %655 = vst.msk [vmem:[%s9 + $0x8] sm:$0xff] %vm160, %v647
  %656 = vst.msk [vmem:[%s9 + $0x10] sm:$0xff] %vm160, %v648
  %657 = vst.msk [vmem:[%s9 + $0x18] sm:$0xff] %vm160, %v649
  %658 = vst.msk [vmem:[%s9 + $0x20] sm:$0xff] %vm160, %v650
  %659 = vst.msk [vmem:[%s9 + $0x28] sm:$0xff] %vm160, %v651
  %660 = vst.msk [vmem:[%s9 + $0x30] sm:$0xff] %vm160, %v652
  %661 = vst.msk [vmem:[%s9 + $0x38] sm:$0xff] %vm160, %v653
  // Predicated region
  $region34: #{graph_encoder_forward.7} parent=0 // pred_check
    _
  $region35: #{graph_encoder_forward.7} parent=0 // pred_check_branch
    %663 = sbr.rel (0) target = $region37
  $region36: #{graph_encoder_forward.7} parent=0 // pred_region
    _
  $region37: #{graph_encoder_forward.7} parent=0 // pred_fallthru
    _
  // Predicated region
  $region38: #{graph_encoder_forward.7} parent=0 // pred_check
    _
  $region39: #{graph_encoder_forward.7} parent=0 // pred_check_branch
    %665 = sbr.rel (0) target = $region41
  $region40: #{graph_encoder_forward.7} parent=0 // pred_region
    _
  $region41: #{graph_encoder_forward.7} parent=0 // pred_fallthru
    _
  // Predicated region
  $region42: #{graph_encoder_forward.7} parent=0 // pred_check
    _
  $region43: #{graph_encoder_forward.7} parent=0 // pred_check_branch
    %667 = sbr.rel (0) target = $region45
  $region44: #{graph_encoder_forward.7} parent=0 // pred_region
    _
  $region45: #{graph_encoder_forward.7} parent=0 // pred_fallthru
    _
  // Predicated region
  $region46: #{graph_encoder_forward.7} parent=0 // pred_check
    _
  $region47: #{graph_encoder_forward.7} parent=0 // pred_check_branch
    %669 = sbr.rel (0) target = $region49
  $region48: #{graph_encoder_forward.7} parent=0 // pred_region
    _
  $region49: #{graph_encoder_forward.7} parent=0 // pred_fallthru
    _

// kernel: graph_encoder_forward.9
$region0: #{graph_encoder_forward.9}
  #allocation0 [shape = 'u32[]', space=smem, size = 0x4, offset = 0x4, fixed_abs, tag = 'smem constant byte address 0x4 - core index']
  #allocation1 [shape = 'u32[144,128]{1,0:T(1,128)}', space=vmem, size = 0x12000, scoped, tag = 'internal scratch']
  %s0 = inlined_call_operand.vmem [shape: f32[2,32], index: 0, kind: input, shape index: {}]
  %s1 = inlined_call_operand.vmem [shape: f32[1,32], index: 1, kind: input, shape index: {}]
  %s2 = inlined_call_operand.vmem [shape: f32[1,32], index: 2, kind: input, shape index: {}]
  %s3 = inlined_call_operand.vmem [shape: f32[32,64], index: 3, kind: input, shape index: {}]
  %s4 = inlined_call_operand.vmem [shape: f32[1,64], index: 4, kind: input, shape index: {}]
  %s5 = inlined_call_operand.vmem [shape: f32[2,64], index: 5, kind: output, shape index: {}]
  %s6 = sld [smem:[#allocation0]]
  $region30: #{graph_encoder_forward.9} parent=0
    _
  %s8 = ssub.s32 1, %s6
  %s9 = scalar_select 0, %s8, %s6
  // Predicated region
  $region2: #{graph_encoder_forward.9} parent=0 // pred_check
    _
  $region3: #{graph_encoder_forward.9} parent=0 // pred_check_branch
    %11 = sbr.rel (0) target = $region5
  $region4: #{graph_encoder_forward.9} parent=0 // pred_region
    _
  $region5: #{graph_encoder_forward.9} parent=0 // pred_fallthru
    _
  // Predicated region
  $region6: #{graph_encoder_forward.9} parent=0 // pred_check
    _
  $region7: #{graph_encoder_forward.9} parent=0 // pred_check_branch
    %13 = sbr.rel (0) target = $region9
  $region8: #{graph_encoder_forward.9} parent=0 // pred_region
    _
  $region9: #{graph_encoder_forward.9} parent=0 // pred_fallthru
    _
  // Predicated region
  $region10: #{graph_encoder_forward.9} parent=0 // pred_check
    _
  $region11: #{graph_encoder_forward.9} parent=0 // pred_check_branch
    %15 = sbr.rel (0) target = $region13
  $region12: #{graph_encoder_forward.9} parent=0 // pred_region
    _
  $region13: #{graph_encoder_forward.9} parent=0 // pred_fallthru
    _
  // Predicated region
  $region14: #{graph_encoder_forward.9} parent=0 // pred_check
    _
  $region15: #{graph_encoder_forward.9} parent=0 // pred_check_branch
    %17 = sbr.rel (0) target = $region17
  $region16: #{graph_encoder_forward.9} parent=0 // pred_region
    _
  $region17: #{graph_encoder_forward.9} parent=0 // pred_fallthru
    _
  // Predicated region
  $region18: #{graph_encoder_forward.9} parent=0 // pred_check
    _
  $region19: #{graph_encoder_forward.9} parent=0 // pred_check_branch
    %19 = sbr.rel (0) target = $region21
  $region20: #{graph_encoder_forward.9} parent=0 // pred_region
    _
  $region21: #{graph_encoder_forward.9} parent=0 // pred_fallthru
    _
  %v20 = vld [vmem:[%s0] sm:$0x3]
  %vm21 = vcmask 254976
  %v22 = vsel %vm21, %v20, 0.0
  %v23 = vrot.slane %v22, 4
  %v24 = vadd.f32 %v22, %v23
  %v25 = vrot.slane %v24, 2
  %v26 = vadd.f32 %v24, %v25
  %v27 = vrot.slane %v26, 1
  %v28 = vadd.f32 %v26, %v27
  %v29 = vrcp.pop 2.0
  %v30 = vmul.f32 %v28, %v29
  %v31 = vsub.f32 %v20, %v30
  %v32 = vmul.f32 %v31, %v31
  %v33 = vsel %vm21, %v32, 0.0
  %v34 = vrot.slane %v33, 4
  %v35 = vadd.f32 %v33, %v34
  %v36 = vrot.slane %v35, 2
  %v37 = vadd.f32 %v35, %v36
  %v38 = vrot.slane %v37, 1
  %v39 = vadd.f32 %v37, %v38
  %v40 = vmul.f32 %v39, %v29
  %v41 = vadd.f32 %v40, 0.0001
  %v42 = vrsqrt.pop %v41
  %v43 = vmul.f32 %v31, %v42
  %v44 = vld [vmem:[%s1] sm:$0x1]
  %v46 = vlaneseq
  %v47 = vshrl.u32 %v46, 7
  %v48 = vsub.s32 0, %v47
  %v49 = vrot.slane %v44, %v48
  %v51 = vmul.f32 %v43, %v49
  %v52 = vld [vmem:[%s2] sm:$0x1]
  %v54 = vlaneseq
  %v55 = vshrl.u32 %v54, 7
  %v56 = vsub.s32 0, %v55
  %v57 = vrot.slane %v52, %v56
  %v59 = vadd.f32 %v51, %v57
  %v60 = vld [vmem:[%s3] sm:$0xff]
  %v61 = vld [vmem:[%s3 + $0x8] sm:$0xff]
  %v62 = vld [vmem:[%s3 + $0x10] sm:$0xff]
  %v63 = vld [vmem:[%s3 + $0x18] sm:$0xff]
  %v64 = vld [vmem:[%s4] sm:$0x1]
  %v66 = vlaneseq
  %v67 = vshrl.u32 %v66, 7
  %v68 = vsub.s32 0, %v67
  %v69 = vrot.slane %v64, %v68
  %vm71 = vcmask 261120
  %v73 = vsel %vm71, %v59, 0
  %75 = vmatprep.subr.mxu0 0.0
  %76 = vmatpush1.msra.mxu0 0.0
  %77 = vmatprep.subr.mxu0 0.0
  %78 = vmatpush1.msra.mxu0 0.0
  %79 = vmatprep.subr.mxu0 0.0
  %80 = vmatpush1.msra.mxu0 0.0
  %81 = vmatprep.subr.mxu0 0.0
  %82 = vmatpush1.msra.mxu0 0.0
  %83 = vmatprep.subr.mxu0 0.0
  %84 = vmatpush1.msra.mxu0 0.0
  %85 = vmatprep.subr.mxu0 0.0
  %86 = vmatpush1.msra.mxu0 0.0
  %87 = vmatprep.subr.mxu0 0.0
  %88 = vmatpush1.msra.mxu0 0.0
  %89 = vmatprep.subr.mxu0 0.0
  %90 = vmatpush1.msra.mxu0 0.0
  %91 = vmatprep.subr.mxu0 0.0
  %92 = vmatpush1.msra.mxu0 0.0
  %93 = vmatprep.subr.mxu0 0.0
  %94 = vmatpush1.msra.mxu0 0.0
  %95 = vmatprep.subr.mxu0 0.0
  %96 = vmatpush1.msra.mxu0 0.0
  %97 = vmatprep.subr.mxu0 0.0
  %98 = vmatpush1.msra.mxu0 0.0
  %99 = vmatprep.subr.mxu0 0.0
  %100 = vmatpush1.msra.mxu0 %v63
  %101 = vmatprep.subr.mxu0 0.0
  %102 = vmatpush1.msra.mxu0 %v62
  %103 = vmatprep.subr.mxu0 0.0
  %104 = vmatpush1.msra.mxu0 %v61
  %105 = vmatprep.subr.mxu0 0.0
  %106 = vmatpush1.msra.mxu0 %v60
  %107 = vmatprep.subr.mxu0 0.0
  %108 = vmatpush2.msra.mxu0 0.0
  %109 = vmatprep.subr.mxu0 0.0
  %110 = vmatpush2.msra.mxu0 0.0
  %111 = vmatprep.subr.mxu0 0.0
  %112 = vmatpush2.msra.mxu0 0.0
  %113 = vmatprep.subr.mxu0 0.0
  %114 = vmatpush2.msra.mxu0 0.0
  %115 = vmatprep.subr.mxu0 0.0
  %116 = vmatpush2.msra.mxu0 0.0
  %117 = vmatprep.subr.mxu0 0.0
  %118 = vmatpush2.msra.mxu0 0.0
  %119 = vmatprep.subr.mxu0 0.0
  %120 = vmatpush2.msra.mxu0 0.0
  %121 = vmatprep.subr.mxu0 0.0
  %122 = vmatpush2.msra.mxu0 0.0
  %123 = vmatprep.subr.mxu0 0.0
  %124 = vmatpush2.msra.mxu0 0.0
  %125 = vmatprep.subr.mxu0 0.0
  %126 = vmatpush2.msra.mxu0 0.0
  %127 = vmatprep.subr.mxu0 0.0
  %128 = vmatpush2.msra.mxu0 0.0
  %129 = vmatprep.subr.mxu0 0.0
  %130 = vmatpush2.msra.mxu0 0.0
  %131 = vmatprep.subr.mxu0 0.0
  %132 = vmatpush2.msra.mxu0 0.0
  %133 = vmatprep.subr.mxu0 0.0
  %134 = vmatpush2.msra.mxu0 0.0
  %135 = vmatprep.subr.mxu0 0.0
  %136 = vmatpush2.msra.mxu0 0.0
  %137 = vmatprep.subr.mxu0 0.0
  %138 = vmatpush2.msra.mxu0 0.0
  %139 = vmatprep.mubr.f32.mxu0 0.0
  %140 = vmatmul.mubr.f32.gmra.mxu0 %v73
  %v141 = vpop.f32.mrf.mxu0
  %v142 = vadd.f32 %v69, %v141
  %v143 = vpop.f32.mrf.mxu0
  %144 = vdwg.mxu0
  %vm145 = vcmask 517120
  %146 = vst.msk [vmem:[%s5] sm:$0x3] %vm145, %v142
  // Predicated region
  $region22: #{graph_encoder_forward.9} parent=0 // pred_check
    _
  $region23: #{graph_encoder_forward.9} parent=0 // pred_check_branch
    %148 = sbr.rel (0) target = $region25
  $region24: #{graph_encoder_forward.9} parent=0 // pred_region
    _
  $region25: #{graph_encoder_forward.9} parent=0 // pred_fallthru
    _
  // Predicated region
  $region26: #{graph_encoder_forward.9} parent=0 // pred_check
    _
  $region27: #{graph_encoder_forward.9} parent=0 // pred_check_branch
    %150 = sbr.rel (0) target = $region29
  $region28: #{graph_encoder_forward.9} parent=0 // pred_region
    _
  $region29: #{graph_encoder_forward.9} parent=0 // pred_fallthru
    _

</llo_original>
